<compile_context>
chip_gen: v7x
topology: tpu7x:2x2x1
jax: 0.10.0
libtpu: 0.0.40
codegen_flags: <defaults>
</compile_context>

<pallas_src>
import functools

import jax
import jax.numpy as jnp
from jax.experimental import pallas as pl
from jax.experimental.pallas import tpu as pltpu


# ------------------------------ fused kernel --------------------------------


def _lagraph_fused_kernel(alpha_ref, x_ref, adj_ref, noise_ref, mask_ref,
                          w_ref, b_ref, gamma_ref, beta_ref,
                          xm_ref, enc_ref, dec_ref,
                          *, num_en_layers, num_de_layers):
    """Masking + all encoder/decoder GCN(+BN) layers for one graph."""
    num_layers = num_en_layers + num_de_layers
    n = x_ref.shape[0]
    inv_n = 1.0 / n

    # Fused 'whole'-mode node masking: replace masked node rows with noise
    # while the data is already resident in VMEM/vregs.
    mask_col = mask_ref[...]                                # (N, 1), 0/1
    h = jnp.where(mask_col > 0.5, noise_ref[...], x_ref[...])
    xm_ref[...] = h.astype(xm_ref.dtype)                    # x_embed (aliased in torch)

    adj = adj_ref[...]                                      # (N, N), stays resident
    ones_row = jnp.ones((1, n), jnp.float32)                # hoisted; reused by all BNs

    for l in range(num_layers):                             # static unroll (L = 10)
        # GCN:  h = PReLU(adj @ (h @ W_l) + b_l)   (two chained MXU matmuls)
        xw = jnp.dot(h, w_ref[l], preferred_element_type=jnp.float32)
        h = (jnp.dot(adj, xw, preferred_element_type=jnp.float32)
             + b_ref[pl.ds(l, 1), :])
        alpha = alpha_ref[l]                                # scalar read from SMEM
        h = jnp.where(h > 0, h, alpha * h)                  # single-parameter PReLU

        is_enc = l < num_en_layers
        apply_bn = is_enc or (l - num_en_layers) < num_de_layers - 1
        if apply_bn:
            # BatchNorm1d, training-mode batch stats.  Two-pass centered
            # variance (numerically safe vs E[x^2]-mean^2); both column sums
            # are done on the otherwise-idle MXU instead of XLU reductions.
            mean = jnp.dot(ones_row, h,
                           preferred_element_type=jnp.float32) * inv_n      # (1, D)
            c = h - mean
            var = jnp.dot(ones_row, c * c,
                          preferred_element_type=jnp.float32) * inv_n       # (1, D)
            scale = jax.lax.rsqrt(var + 1e-5) * gamma_ref[pl.ds(l, 1), :]
            h = c * scale + beta_ref[pl.ds(l, 1), :]

        if l == num_en_layers - 1:                          # encoder output snapshot
            enc_ref[...] = h.astype(enc_ref.dtype)

    dec_ref[...] = h.astype(dec_ref.dtype)


def lagraph_gcn_stack(x, adj, noise, mask_col, w_stack, b_stack, alpha_stack,
                      gamma_stack, beta_stack, num_en_layers, num_de_layers):
    """Run masking + full fused encoder/decoder stack.

    x:(B,N,D), adj:(B,N,N), noise:(B,N,D), mask_col:(B,N,1).
    Returns (x_masked, encoded, decoded), each (B,N,D).
    """
    b, n, d = x.shape
    num_layers = num_en_layers + num_de_layers
    kernel = functools.partial(
        _lagraph_fused_kernel,
        num_en_layers=num_en_layers,
        num_de_layers=num_de_layers,
    )

    per_graph = lambda bi: (bi, 0, 0)      # one graph per grid step
    shared3 = lambda bi: (0, 0, 0)         # parameters shared across the grid
    shared2 = lambda bi: (0, 0)

    in_specs = [
        pl.BlockSpec(memory_space=pltpu.MemorySpace.SMEM),   # PReLU alphas (L,)
        pl.BlockSpec((None, n, d), per_graph),               # x
        pl.BlockSpec((None, n, n), per_graph),               # adj
        pl.BlockSpec((None, n, d), per_graph),               # noise rows
        pl.BlockSpec((None, n, 1), per_graph),               # node mask column
        pl.BlockSpec((num_layers, d, d), shared3),           # W  (L, D, D)
        pl.BlockSpec((num_layers, d), shared2),              # bias (L, D)
        pl.BlockSpec((num_layers, d), shared2),              # BN gamma (L, D)
        pl.BlockSpec((num_layers, d), shared2),              # BN beta  (L, D)
    ]
    out_specs = (
        pl.BlockSpec((None, n, d), per_graph),               # x_masked (x_embed)
        pl.BlockSpec((None, n, d), per_graph),               # encoded_x
        pl.BlockSpec((None, n, d), per_graph),               # decoded_x
    )
    out_shape = (
        jax.ShapeDtypeStruct((b, n, d), jnp.float32),
        jax.ShapeDtypeStruct((b, n, d), jnp.float32),
        jax.ShapeDtypeStruct((b, n, d), jnp.float32),
    )

    # Advisory cost hint: two matmuls per layer plus BN column-sum matmuls.
    num_bn = num_layers - 1
    flops = b * (num_layers * (2 * n * d * d + 2 * n * n * d)
                 + num_bn * (4 * n * d))
    bytes_accessed = 4 * (b * (n * d      # x
                               + n * n    # adj
                               + n * d    # noise
                               + n        # mask
                               + 3 * n * d)   # outputs
                          + num_layers * (d * d + 3 * d)
                          + num_layers)       # alphas
    cost = pl.CostEstimate(flops=int(flops),
                           transcendentals=int(b * num_bn * d),
                           bytes_accessed=int(bytes_accessed))

    xm, enc, dec = pl.pallas_call(
        kernel,
        grid=(b,),
        in_specs=in_specs,
        out_specs=out_specs,
        out_shape=out_shape,
        compiler_params=pltpu.CompilerParams(
            dimension_semantics=("parallel",)),   # shards graphs across v7x TCs
        cost_estimate=cost,
    )(alpha_stack, x, adj, noise, mask_col, w_stack, b_stack,
      gamma_stack, beta_stack)
    return xm, enc, dec


# ----------------------------- parameter setup ------------------------------


def init_lagraph_params(key, dim_ft, dim_hid, num_en_layers, num_de_layers):
    # The fused kernel stacks per-layer weights into (L, D, D); the module
    # defaults (dim_ft = dim_hid = 32) make all layers square.
    assert dim_ft == dim_hid, "stacked fused kernel assumes dim_ft == dim_hid"
    d = dim_hid
    num_layers = num_en_layers + num_de_layers
    keys = jax.random.split(key, num_layers)
    limit = jnp.sqrt(6.0 / (d + d))                        # Xavier-uniform-like
    w_stack = jnp.stack([
        jax.random.uniform(keys[i], (d, d), jnp.float32, -limit, limit)
        for i in range(num_layers)
    ])
    b_stack = jnp.zeros((num_layers, d), jnp.float32)      # GCN bias
    alpha_stack = jnp.full((num_layers,), 0.25, jnp.float32)  # PReLU init
    gamma_stack = jnp.ones((num_layers, d), jnp.float32)   # BN weight init
    beta_stack = jnp.zeros((num_layers, d), jnp.float32)   # BN bias init
    # NOTE: embedding_layer and the affine=False BatchNorm of LaGraphNetNode
    # are defined in __init__ but never used in forward(); omitted here.
    return {
        "w": w_stack, "b": b_stack, "alpha": alpha_stack,
        "gamma": gamma_stack, "beta": beta_stack,
        "num_en_layers": num_en_layers, "num_de_layers": num_de_layers,
    }


# ------------------------------- forward glue -------------------------------


def lagraph_net_node_forward(x, adj, params, mask_key, mratio=0.25, mstd=0.1,
                             aug=True):
    """Mirrors LaGraphNetNode.forward (decoder='gnn', conv='gcn', sparse=False,
    mmode='whole').  The masking itself is fused into the Pallas kernel; only
    the random index/noise draws happen outside."""
    b, n, d = x.shape
    if aug:
        mask_num = int(n * mratio)
        k_idx, k_noise = jax.random.split(mask_key)
        idx_mask = jax.random.permutation(k_idx, n)[:mask_num]
        mask = jnp.zeros((b, n), jnp.float32).at[:, idx_mask].set(1.0)
        noise = mstd * jax.random.normal(k_noise, (b, n, d), jnp.float32)
    else:
        mask = jnp.zeros((b, n), jnp.float32)
        noise = jnp.zeros((b, n, d), jnp.float32)

    x_masked, encoded_x, decoded_x = lagraph_gcn_stack(
        x, adj, noise, mask[..., None],
        params["w"], params["b"], params["alpha"],
        params["gamma"], params["beta"],
        params["num_en_layers"], params["num_de_layers"],
    )
    # In PyTorch, mask_node mutates x in place, so the returned x_embed is the
    # masked tensor; here it is the kernel's masked copy (== x when aug=False).
    x_embed = x_masked
    # concat_enc (Encoder's second return) is unused by LaGraphNetNode.forward
    # and is intentionally not materialized.
    return x_embed, encoded_x, decoded_x, (mask if aug else None)


# ----------------------------------- main -----------------------------------

if __name__ == "__main__":
    key = jax.random.PRNGKey(0)
    k_x, k_adj, k_param, k_mask = jax.random.split(key, 4)

    # Small shapes consistent with the module: 16 nodes, 32-dim features/hidden.
    N, DIM_FT, DIM_HID = 16, 32, 32
    NUM_EN_LAYERS, NUM_DE_LAYERS = 5, 5

    x = jax.random.normal(k_x, (1, N, DIM_FT), jnp.float32)

    # Symmetrically normalized adjacency with self-loops (dense, sparse=False).
    a = (jax.random.uniform(k_adj, (N, N)) < 0.3).astype(jnp.float32)
    a = jnp.maximum(a, a.T)
    a = a + jnp.eye(N, dtype=jnp.float32)
    deg = jnp.sum(a, axis=1)
    d_inv_sqrt = 1.0 / jnp.sqrt(deg)
    adj = (a * d_inv_sqrt[:, None] * d_inv_sqrt[None, :])[None]  # (1, N, N)

    params = init_lagraph_params(k_param, DIM_FT, DIM_HID,
                                 NUM_EN_LAYERS, NUM_DE_LAYERS)

    x_embed, encoded_x, decoded_x, mask = lagraph_net_node_forward(
        x, adj, params, k_mask, mratio=0.25, mstd=0.1, aug=True
    )
    jax.block_until_ready((x_embed, encoded_x, decoded_x, mask))

    assert x_embed.shape == (1, N, DIM_FT)
    assert encoded_x.shape == (1, N, DIM_HID)
    assert decoded_x.shape == (1, N, DIM_FT)
    assert mask.shape == (1, N)
    assert bool(jnp.all(jnp.isfinite(x_embed)))
    assert bool(jnp.all(jnp.isfinite(encoded_x)))
    assert bool(jnp.all(jnp.isfinite(decoded_x)))
    # Masked rows of x_embed must equal the injected noise count.
    assert int(jnp.sum(mask)) == int(N * 0.25)
    print("KERNEL_OK")
</pallas_src>

<mosaic_0001>
module attributes {stable_mosaic.version = 11 : i64} {
  func.func @_lagraph_fused_kernel(%arg0: i32, %arg1: memref<10xf32, #tpu.memory_space<smem>>, %arg2: memref<1x16x32xf32, #tpu.memory_space<vmem>>, %arg3: memref<1x16x16xf32, #tpu.memory_space<vmem>>, %arg4: memref<1x16x32xf32, #tpu.memory_space<vmem>>, %arg5: memref<1x16x1xf32, #tpu.memory_space<vmem>>, %arg6: memref<10x32x32xf32, #tpu.memory_space<vmem>>, %arg7: memref<10x32xf32, #tpu.memory_space<vmem>>, %arg8: memref<10x32xf32, #tpu.memory_space<vmem>>, %arg9: memref<10x32xf32, #tpu.memory_space<vmem>>, %arg10: memref<1x16x32xf32, #tpu.memory_space<vmem>>, %arg11: memref<1x16x32xf32, #tpu.memory_space<vmem>>, %arg12: memref<1x16x32xf32, #tpu.memory_space<vmem>>) attributes {dimension_semantics = [#tpu.dimension_semantics<parallel>], iteration_bounds = array<i64: 1>, scalar_prefetch = 0 : i64, scratch_operands = 0 : i64, tpu.core_type = #tpu.core_type<tc>, window_params = [{transform_indices = @transform_0, window_bounds = array<i64: 10>}, {transform_indices = @transform_1, window_bounds = array<i64: 1, 16, 32>}, {transform_indices = @transform_2, window_bounds = array<i64: 1, 16, 16>}, {transform_indices = @transform_3, window_bounds = array<i64: 1, 16, 32>}, {transform_indices = @transform_4, window_bounds = array<i64: 1, 16, 1>}, {pipeline_mode = #tpu.pipeline_mode<synchronous>, transform_indices = @transform_5, window_bounds = array<i64: 10, 32, 32>}, {pipeline_mode = #tpu.pipeline_mode<synchronous>, transform_indices = @transform_6, window_bounds = array<i64: 10, 32>}, {pipeline_mode = #tpu.pipeline_mode<synchronous>, transform_indices = @transform_7, window_bounds = array<i64: 10, 32>}, {pipeline_mode = #tpu.pipeline_mode<synchronous>, transform_indices = @transform_8, window_bounds = array<i64: 10, 32>}, {transform_indices = @transform_9, window_bounds = array<i64: 1, 16, 32>}, {transform_indices = @transform_10, window_bounds = array<i64: 1, 16, 32>}, {transform_indices = @transform_11, window_bounds = array<i64: 1, 16, 32>}]} {
    %c0 = arith.constant 0 : index
    %c0_0 = arith.constant 0 : index
    %c0_1 = arith.constant 0 : index
    %0 = vector.load %arg5[%c0, %c0_0, %c0_1] : memref<1x16x1xf32, #tpu.memory_space<vmem>>, vector<1x16x1xf32>
    %1 = vector.shape_cast %0 : vector<1x16x1xf32> to vector<16x1xf32>
    %cst = arith.constant 5.000000e-01 : f32
    %2 = vector.broadcast %cst : f32 to vector<16x1xf32>
    %3 = arith.cmpf ogt, %1, %2 : vector<16x1xf32>
    %c0_2 = arith.constant 0 : index
    %c0_3 = arith.constant 0 : index
    %c0_4 = arith.constant 0 : index
    %4 = vector.load %arg4[%c0_2, %c0_3, %c0_4] : memref<1x16x32xf32, #tpu.memory_space<vmem>>, vector<1x16x32xf32>
    %5 = vector.shape_cast %4 : vector<1x16x32xf32> to vector<16x32xf32>
    %c0_5 = arith.constant 0 : index
    %c0_6 = arith.constant 0 : index
    %c0_7 = arith.constant 0 : index
    %6 = vector.load %arg2[%c0_5, %c0_6, %c0_7] : memref<1x16x32xf32, #tpu.memory_space<vmem>>, vector<1x16x32xf32>
    %7 = vector.shape_cast %6 : vector<1x16x32xf32> to vector<16x32xf32>
    %8 = vector.shape_cast %3 : vector<16x1xi1> to vector<16x1xi1>
    %9 = vector.broadcast %8 : vector<16x1xi1> to vector<16x32xi1>
    %10 = arith.select %9, %5, %7 : vector<16x32xi1>, vector<16x32xf32>
    %c0_8 = arith.constant 0 : index
    %c0_9 = arith.constant 0 : index
    %c0_10 = arith.constant 0 : index
    %11 = vector.load %arg10[%c0_8, %c0_9, %c0_10] : memref<1x16x32xf32, #tpu.memory_space<vmem>>, vector<1x16x32xf32>
    %12 = vector.shape_cast %11 : vector<1x16x32xf32> to vector<16x32xf32>
    %13 = vector.shape_cast %10 : vector<16x32xf32> to vector<1x16x32xf32>
    tpu.vector_store %arg10[%c0_8, %c0_9, %c0_10], %13 {strides = array<i32>} : memref<1x16x32xf32, #tpu.memory_space<vmem>>, vector<1x16x32xf32>,
    %c0_11 = arith.constant 0 : index
    %c0_12 = arith.constant 0 : index
    %c0_13 = arith.constant 0 : index
    %14 = vector.load %arg3[%c0_11, %c0_12, %c0_13] : memref<1x16x16xf32, #tpu.memory_space<vmem>>, vector<1x16x16xf32>
    %15 = vector.shape_cast %14 : vector<1x16x16xf32> to vector<16x16xf32>
    %cst_14 = arith.constant 1.000000e+00 : f32
    %16 = vector.broadcast %cst_14 : f32 to vector<1x16xf32>
    %c0_15 = arith.constant 0 : index
    %c0_16 = arith.constant 0 : index
    %c0_17 = arith.constant 0 : index
    %17 = vector.load %arg6[%c0_15, %c0_16, %c0_17] : memref<10x32x32xf32, #tpu.memory_space<vmem>>, vector<1x32x32xf32>
    %18 = vector.shape_cast %17 : vector<1x32x32xf32> to vector<32x32xf32>
    %cst_18 = arith.constant dense<0.000000e+00> : vector<16x32xf32>
    %19 = tpu.matmul %10, %18, %cst_18 {dimension_numbers = #tpu.dot_dimension_numbers<[1], [0], [0], [1], [0, 0, 1, 1], [], []>} : vector<16x32xf32>, vector<32x32xf32>, vector<16x32xf32> -> vector<16x32xf32>
    %cst_19 = arith.constant dense<0.000000e+00> : vector<16x32xf32>
    %20 = tpu.matmul %15, %19, %cst_19 {dimension_numbers = #tpu.dot_dimension_numbers<[1], [0], [0], [1], [0, 0, 1, 1], [], []>} : vector<16x16xf32>, vector<16x32xf32>, vector<16x32xf32> -> vector<16x32xf32>
    %c0_20 = arith.constant 0 : index
    %c0_21 = arith.constant 0 : index
    %21 = vector.load %arg7[%c0_20, %c0_21] : memref<10x32xf32, #tpu.memory_space<vmem>>, vector<1x32xf32>
    %22 = vector.broadcast %21 : vector<1x32xf32> to vector<16x32xf32>
    %23 = arith.addf %20, %22 : vector<16x32xf32>
    %c0_22 = arith.constant 0 : index
    %24 = memref.load %arg1[%c0_22] : memref<10xf32, #tpu.memory_space<smem>>
    %cst_23 = arith.constant 0.000000e+00 : f32
    %25 = vector.broadcast %cst_23 : f32 to vector<16x32xf32>
    %26 = arith.cmpf ogt, %23, %25 : vector<16x32xf32>
    %27 = vector.broadcast %24 : f32 to vector<16x32xf32>
    %28 = arith.mulf %27, %23 : vector<16x32xf32>
    %29 = arith.select %26, %23, %28 : vector<16x32xi1>, vector<16x32xf32>
    %cst_24 = arith.constant dense<0.000000e+00> : vector<1x32xf32>
    %30 = tpu.matmul %16, %29, %cst_24 {dimension_numbers = #tpu.dot_dimension_numbers<[1], [0], [0], [1], [0, 0, 1, 1], [], []>} : vector<1x16xf32>, vector<16x32xf32>, vector<1x32xf32> -> vector<1x32xf32>
    %cst_25 = arith.constant 6.250000e-02 : f32
    %31 = vector.broadcast %cst_25 : f32 to vector<1x32xf32>
    %32 = arith.mulf %30, %31 : vector<1x32xf32>
    %33 = vector.broadcast %32 : vector<1x32xf32> to vector<16x32xf32>
    %34 = arith.subf %29, %33 : vector<16x32xf32>
    %35 = arith.mulf %34, %34 : vector<16x32xf32>
    %cst_26 = arith.constant dense<0.000000e+00> : vector<1x32xf32>
    %36 = tpu.matmul %16, %35, %cst_26 {dimension_numbers = #tpu.dot_dimension_numbers<[1], [0], [0], [1], [0, 0, 1, 1], [], []>} : vector<1x16xf32>, vector<16x32xf32>, vector<1x32xf32> -> vector<1x32xf32>
    %cst_27 = arith.constant 6.250000e-02 : f32
    %37 = vector.broadcast %cst_27 : f32 to vector<1x32xf32>
    %38 = arith.mulf %36, %37 : vector<1x32xf32>
    %cst_28 = arith.constant 9.99999974E-6 : f32
    %39 = vector.broadcast %cst_28 : f32 to vector<1x32xf32>
    %40 = arith.addf %38, %39 : vector<1x32xf32>
    %41 = math.rsqrt %40 : vector<1x32xf32>
    %c0_29 = arith.constant 0 : index
    %c0_30 = arith.constant 0 : index
    %42 = vector.load %arg8[%c0_29, %c0_30] : memref<10x32xf32, #tpu.memory_space<vmem>>, vector<1x32xf32>
    %43 = arith.mulf %41, %42 : vector<1x32xf32>
    %44 = vector.broadcast %43 : vector<1x32xf32> to vector<16x32xf32>
    %45 = arith.mulf %34, %44 : vector<16x32xf32>
    %c0_31 = arith.constant 0 : index
    %c0_32 = arith.constant 0 : index
    %46 = vector.load %arg9[%c0_31, %c0_32] : memref<10x32xf32, #tpu.memory_space<vmem>>, vector<1x32xf32>
    %47 = vector.broadcast %46 : vector<1x32xf32> to vector<16x32xf32>
    %48 = arith.addf %45, %47 : vector<16x32xf32>
    %c1 = arith.constant 1 : index
    %c0_33 = arith.constant 0 : index
    %c0_34 = arith.constant 0 : index
    %49 = vector.load %arg6[%c1, %c0_33, %c0_34] : memref<10x32x32xf32, #tpu.memory_space<vmem>>, vector<1x32x32xf32>
    %50 = vector.shape_cast %49 : vector<1x32x32xf32> to vector<32x32xf32>
    %cst_35 = arith.constant dense<0.000000e+00> : vector<16x32xf32>
    %51 = tpu.matmul %48, %50, %cst_35 {dimension_numbers = #tpu.dot_dimension_numbers<[1], [0], [0], [1], [0, 0, 1, 1], [], []>} : vector<16x32xf32>, vector<32x32xf32>, vector<16x32xf32> -> vector<16x32xf32>
    %cst_36 = arith.constant dense<0.000000e+00> : vector<16x32xf32>
    %52 = tpu.matmul %15, %51, %cst_36 {dimension_numbers = #tpu.dot_dimension_numbers<[1], [0], [0], [1], [0, 0, 1, 1], [], []>} : vector<16x16xf32>, vector<16x32xf32>, vector<16x32xf32> -> vector<16x32xf32>
    %c1_37 = arith.constant 1 : index
    %c0_38 = arith.constant 0 : index
    %53 = vector.load %arg7[%c1_37, %c0_38] : memref<10x32xf32, #tpu.memory_space<vmem>>, vector<1x32xf32>
    %54 = vector.broadcast %53 : vector<1x32xf32> to vector<16x32xf32>
    %55 = arith.addf %52, %54 : vector<16x32xf32>
    %c1_39 = arith.constant 1 : index
    %56 = memref.load %arg1[%c1_39] : memref<10xf32, #tpu.memory_space<smem>>
    %cst_40 = arith.constant 0.000000e+00 : f32
    %57 = vector.broadcast %cst_40 : f32 to vector<16x32xf32>
    %58 = arith.cmpf ogt, %55, %57 : vector<16x32xf32>
    %59 = vector.broadcast %56 : f32 to vector<16x32xf32>
    %60 = arith.mulf %59, %55 : vector<16x32xf32>
    %61 = arith.select %58, %55, %60 : vector<16x32xi1>, vector<16x32xf32>
    %cst_41 = arith.constant dense<0.000000e+00> : vector<1x32xf32>
    %62 = tpu.matmul %16, %61, %cst_41 {dimension_numbers = #tpu.dot_dimension_numbers<[1], [0], [0], [1], [0, 0, 1, 1], [], []>} : vector<1x16xf32>, vector<16x32xf32>, vector<1x32xf32> -> vector<1x32xf32>
    %cst_42 = arith.constant 6.250000e-02 : f32
    %63 = vector.broadcast %cst_42 : f32 to vector<1x32xf32>
    %64 = arith.mulf %62, %63 : vector<1x32xf32>
    %65 = vector.broadcast %64 : vector<1x32xf32> to vector<16x32xf32>
    %66 = arith.subf %61, %65 : vector<16x32xf32>
    %67 = arith.mulf %66, %66 : vector<16x32xf32>
    %cst_43 = arith.constant dense<0.000000e+00> : vector<1x32xf32>
    %68 = tpu.matmul %16, %67, %cst_43 {dimension_numbers = #tpu.dot_dimension_numbers<[1], [0], [0], [1], [0, 0, 1, 1], [], []>} : vector<1x16xf32>, vector<16x32xf32>, vector<1x32xf32> -> vector<1x32xf32>
    %cst_44 = arith.constant 6.250000e-02 : f32
    %69 = vector.broadcast %cst_44 : f32 to vector<1x32xf32>
    %70 = arith.mulf %68, %69 : vector<1x32xf32>
    %cst_45 = arith.constant 9.99999974E-6 : f32
    %71 = vector.broadcast %cst_45 : f32 to vector<1x32xf32>
    %72 = arith.addf %70, %71 : vector<1x32xf32>
    %73 = math.rsqrt %72 : vector<1x32xf32>
    %c1_46 = arith.constant 1 : index
    %c0_47 = arith.constant 0 : index
    %74 = vector.load %arg8[%c1_46, %c0_47] : memref<10x32xf32, #tpu.memory_space<vmem>>, vector<1x32xf32>
    %75 = arith.mulf %73, %74 : vector<1x32xf32>
    %76 = vector.broadcast %75 : vector<1x32xf32> to vector<16x32xf32>
    %77 = arith.mulf %66, %76 : vector<16x32xf32>
    %c1_48 = arith.constant 1 : index
    %c0_49 = arith.constant 0 : index
    %78 = vector.load %arg9[%c1_48, %c0_49] : memref<10x32xf32, #tpu.memory_space<vmem>>, vector<1x32xf32>
    %79 = vector.broadcast %78 : vector<1x32xf32> to vector<16x32xf32>
    %80 = arith.addf %77, %79 : vector<16x32xf32>
    %c2 = arith.constant 2 : index
    %c0_50 = arith.constant 0 : index
    %c0_51 = arith.constant 0 : index
    %81 = vector.load %arg6[%c2, %c0_50, %c0_51] : memref<10x32x32xf32, #tpu.memory_space<vmem>>, vector<1x32x32xf32>
    %82 = vector.shape_cast %81 : vector<1x32x32xf32> to vector<32x32xf32>
    %cst_52 = arith.constant dense<0.000000e+00> : vector<16x32xf32>
    %83 = tpu.matmul %80, %82, %cst_52 {dimension_numbers = #tpu.dot_dimension_numbers<[1], [0], [0], [1], [0, 0, 1, 1], [], []>} : vector<16x32xf32>, vector<32x32xf32>, vector<16x32xf32> -> vector<16x32xf32>
    %cst_53 = arith.constant dense<0.000000e+00> : vector<16x32xf32>
    %84 = tpu.matmul %15, %83, %cst_53 {dimension_numbers = #tpu.dot_dimension_numbers<[1], [0], [0], [1], [0, 0, 1, 1], [], []>} : vector<16x16xf32>, vector<16x32xf32>, vector<16x32xf32> -> vector<16x32xf32>
    %c2_54 = arith.constant 2 : index
    %c0_55 = arith.constant 0 : index
    %85 = vector.load %arg7[%c2_54, %c0_55] : memref<10x32xf32, #tpu.memory_space<vmem>>, vector<1x32xf32>
    %86 = vector.broadcast %85 : vector<1x32xf32> to vector<16x32xf32>
    %87 = arith.addf %84, %86 : vector<16x32xf32>
    %c2_56 = arith.constant 2 : index
    %88 = memref.load %arg1[%c2_56] : memref<10xf32, #tpu.memory_space<smem>>
    %cst_57 = arith.constant 0.000000e+00 : f32
    %89 = vector.broadcast %cst_57 : f32 to vector<16x32xf32>
    %90 = arith.cmpf ogt, %87, %89 : vector<16x32xf32>
    %91 = vector.broadcast %88 : f32 to vector<16x32xf32>
    %92 = arith.mulf %91, %87 : vector<16x32xf32>
    %93 = arith.select %90, %87, %92 : vector<16x32xi1>, vector<16x32xf32>
    %cst_58 = arith.constant dense<0.000000e+00> : vector<1x32xf32>
    %94 = tpu.matmul %16, %93, %cst_58 {dimension_numbers = #tpu.dot_dimension_numbers<[1], [0], [0], [1], [0, 0, 1, 1], [], []>} : vector<1x16xf32>, vector<16x32xf32>, vector<1x32xf32> -> vector<1x32xf32>
    %cst_59 = arith.constant 6.250000e-02 : f32
    %95 = vector.broadcast %cst_59 : f32 to vector<1x32xf32>
    %96 = arith.mulf %94, %95 : vector<1x32xf32>
    %97 = vector.broadcast %96 : vector<1x32xf32> to vector<16x32xf32>
    %98 = arith.subf %93, %97 : vector<16x32xf32>
    %99 = arith.mulf %98, %98 : vector<16x32xf32>
    %cst_60 = arith.constant dense<0.000000e+00> : vector<1x32xf32>
    %100 = tpu.matmul %16, %99, %cst_60 {dimension_numbers = #tpu.dot_dimension_numbers<[1], [0], [0], [1], [0, 0, 1, 1], [], []>} : vector<1x16xf32>, vector<16x32xf32>, vector<1x32xf32> -> vector<1x32xf32>
    %cst_61 = arith.constant 6.250000e-02 : f32
    %101 = vector.broadcast %cst_61 : f32 to vector<1x32xf32>
    %102 = arith.mulf %100, %101 : vector<1x32xf32>
    %cst_62 = arith.constant 9.99999974E-6 : f32
    %103 = vector.broadcast %cst_62 : f32 to vector<1x32xf32>
    %104 = arith.addf %102, %103 : vector<1x32xf32>
    %105 = math.rsqrt %104 : vector<1x32xf32>
    %c2_63 = arith.constant 2 : index
    %c0_64 = arith.constant 0 : index
    %106 = vector.load %arg8[%c2_63, %c0_64] : memref<10x32xf32, #tpu.memory_space<vmem>>, vector<1x32xf32>
    %107 = arith.mulf %105, %106 : vector<1x32xf32>
    %108 = vector.broadcast %107 : vector<1x32xf32> to vector<16x32xf32>
    %109 = arith.mulf %98, %108 : vector<16x32xf32>
    %c2_65 = arith.constant 2 : index
    %c0_66 = arith.constant 0 : index
    %110 = vector.load %arg9[%c2_65, %c0_66] : memref<10x32xf32, #tpu.memory_space<vmem>>, vector<1x32xf32>
    %111 = vector.broadcast %110 : vector<1x32xf32> to vector<16x32xf32>
    %112 = arith.addf %109, %111 : vector<16x32xf32>
    %c3 = arith.constant 3 : index
    %c0_67 = arith.constant 0 : index
    %c0_68 = arith.constant 0 : index
    %113 = vector.load %arg6[%c3, %c0_67, %c0_68] : memref<10x32x32xf32, #tpu.memory_space<vmem>>, vector<1x32x32xf32>
    %114 = vector.shape_cast %113 : vector<1x32x32xf32> to vector<32x32xf32>
    %cst_69 = arith.constant dense<0.000000e+00> : vector<16x32xf32>
    %115 = tpu.matmul %112, %114, %cst_69 {dimension_numbers = #tpu.dot_dimension_numbers<[1], [0], [0], [1], [0, 0, 1, 1], [], []>} : vector<16x32xf32>, vector<32x32xf32>, vector<16x32xf32> -> vector<16x32xf32>
    %cst_70 = arith.constant dense<0.000000e+00> : vector<16x32xf32>
    %116 = tpu.matmul %15, %115, %cst_70 {dimension_numbers = #tpu.dot_dimension_numbers<[1], [0], [0], [1], [0, 0, 1, 1], [], []>} : vector<16x16xf32>, vector<16x32xf32>, vector<16x32xf32> -> vector<16x32xf32>
    %c3_71 = arith.constant 3 : index
    %c0_72 = arith.constant 0 : index
    %117 = vector.load %arg7[%c3_71, %c0_72] : memref<10x32xf32, #tpu.memory_space<vmem>>, vector<1x32xf32>
    %118 = vector.broadcast %117 : vector<1x32xf32> to vector<16x32xf32>
    %119 = arith.addf %116, %118 : vector<16x32xf32>
    %c3_73 = arith.constant 3 : index
    %120 = memref.load %arg1[%c3_73] : memref<10xf32, #tpu.memory_space<smem>>
    %cst_74 = arith.constant 0.000000e+00 : f32
    %121 = vector.broadcast %cst_74 : f32 to vector<16x32xf32>
    %122 = arith.cmpf ogt, %119, %121 : vector<16x32xf32>
    %123 = vector.broadcast %120 : f32 to vector<16x32xf32>
    %124 = arith.mulf %123, %119 : vector<16x32xf32>
    %125 = arith.select %122, %119, %124 : vector<16x32xi1>, vector<16x32xf32>
    %cst_75 = arith.constant dense<0.000000e+00> : vector<1x32xf32>
    %126 = tpu.matmul %16, %125, %cst_75 {dimension_numbers = #tpu.dot_dimension_numbers<[1], [0], [0], [1], [0, 0, 1, 1], [], []>} : vector<1x16xf32>, vector<16x32xf32>, vector<1x32xf32> -> vector<1x32xf32>
    %cst_76 = arith.constant 6.250000e-02 : f32
    %127 = vector.broadcast %cst_76 : f32 to vector<1x32xf32>
    %128 = arith.mulf %126, %127 : vector<1x32xf32>
    %129 = vector.broadcast %128 : vector<1x32xf32> to vector<16x32xf32>
    %130 = arith.subf %125, %129 : vector<16x32xf32>
    %131 = arith.mulf %130, %130 : vector<16x32xf32>
    %cst_77 = arith.constant dense<0.000000e+00> : vector<1x32xf32>
    %132 = tpu.matmul %16, %131, %cst_77 {dimension_numbers = #tpu.dot_dimension_numbers<[1], [0], [0], [1], [0, 0, 1, 1], [], []>} : vector<1x16xf32>, vector<16x32xf32>, vector<1x32xf32> -> vector<1x32xf32>
    %cst_78 = arith.constant 6.250000e-02 : f32
    %133 = vector.broadcast %cst_78 : f32 to vector<1x32xf32>
    %134 = arith.mulf %132, %133 : vector<1x32xf32>
    %cst_79 = arith.constant 9.99999974E-6 : f32
    %135 = vector.broadcast %cst_79 : f32 to vector<1x32xf32>
    %136 = arith.addf %134, %135 : vector<1x32xf32>
    %137 = math.rsqrt %136 : vector<1x32xf32>
    %c3_80 = arith.constant 3 : index
    %c0_81 = arith.constant 0 : index
    %138 = vector.load %arg8[%c3_80, %c0_81] : memref<10x32xf32, #tpu.memory_space<vmem>>, vector<1x32xf32>
    %139 = arith.mulf %137, %138 : vector<1x32xf32>
    %140 = vector.broadcast %139 : vector<1x32xf32> to vector<16x32xf32>
    %141 = arith.mulf %130, %140 : vector<16x32xf32>
    %c3_82 = arith.constant 3 : index
    %c0_83 = arith.constant 0 : index
    %142 = vector.load %arg9[%c3_82, %c0_83] : memref<10x32xf32, #tpu.memory_space<vmem>>, vector<1x32xf32>
    %143 = vector.broadcast %142 : vector<1x32xf32> to vector<16x32xf32>
    %144 = arith.addf %141, %143 : vector<16x32xf32>
    %c4 = arith.constant 4 : index
    %c0_84 = arith.constant 0 : index
    %c0_85 = arith.constant 0 : index
    %145 = vector.load %arg6[%c4, %c0_84, %c0_85] : memref<10x32x32xf32, #tpu.memory_space<vmem>>, vector<1x32x32xf32>
    %146 = vector.shape_cast %145 : vector<1x32x32xf32> to vector<32x32xf32>
    %cst_86 = arith.constant dense<0.000000e+00> : vector<16x32xf32>
    %147 = tpu.matmul %144, %146, %cst_86 {dimension_numbers = #tpu.dot_dimension_numbers<[1], [0], [0], [1], [0, 0, 1, 1], [], []>} : vector<16x32xf32>, vector<32x32xf32>, vector<16x32xf32> -> vector<16x32xf32>
    %cst_87 = arith.constant dense<0.000000e+00> : vector<16x32xf32>
    %148 = tpu.matmul %15, %147, %cst_87 {dimension_numbers = #tpu.dot_dimension_numbers<[1], [0], [0], [1], [0, 0, 1, 1], [], []>} : vector<16x16xf32>, vector<16x32xf32>, vector<16x32xf32> -> vector<16x32xf32>
    %c4_88 = arith.constant 4 : index
    %c0_89 = arith.constant 0 : index
    %149 = vector.load %arg7[%c4_88, %c0_89] : memref<10x32xf32, #tpu.memory_space<vmem>>, vector<1x32xf32>
    %150 = vector.broadcast %149 : vector<1x32xf32> to vector<16x32xf32>
    %151 = arith.addf %148, %150 : vector<16x32xf32>
    %c4_90 = arith.constant 4 : index
    %152 = memref.load %arg1[%c4_90] : memref<10xf32, #tpu.memory_space<smem>>
    %cst_91 = arith.constant 0.000000e+00 : f32
    %153 = vector.broadcast %cst_91 : f32 to vector<16x32xf32>
    %154 = arith.cmpf ogt, %151, %153 : vector<16x32xf32>
    %155 = vector.broadcast %152 : f32 to vector<16x32xf32>
    %156 = arith.mulf %155, %151 : vector<16x32xf32>
    %157 = arith.select %154, %151, %156 : vector<16x32xi1>, vector<16x32xf32>
    %cst_92 = arith.constant dense<0.000000e+00> : vector<1x32xf32>
    %158 = tpu.matmul %16, %157, %cst_92 {dimension_numbers = #tpu.dot_dimension_numbers<[1], [0], [0], [1], [0, 0, 1, 1], [], []>} : vector<1x16xf32>, vector<16x32xf32>, vector<1x32xf32> -> vector<1x32xf32>
    %cst_93 = arith.constant 6.250000e-02 : f32
    %159 = vector.broadcast %cst_93 : f32 to vector<1x32xf32>
    %160 = arith.mulf %158, %159 : vector<1x32xf32>
    %161 = vector.broadcast %160 : vector<1x32xf32> to vector<16x32xf32>
    %162 = arith.subf %157, %161 : vector<16x32xf32>
    %163 = arith.mulf %162, %162 : vector<16x32xf32>
    %cst_94 = arith.constant dense<0.000000e+00> : vector<1x32xf32>
    %164 = tpu.matmul %16, %163, %cst_94 {dimension_numbers = #tpu.dot_dimension_numbers<[1], [0], [0], [1], [0, 0, 1, 1], [], []>} : vector<1x16xf32>, vector<16x32xf32>, vector<1x32xf32> -> vector<1x32xf32>
    %cst_95 = arith.constant 6.250000e-02 : f32
    %165 = vector.broadcast %cst_95 : f32 to vector<1x32xf32>
    %166 = arith.mulf %164, %165 : vector<1x32xf32>
    %cst_96 = arith.constant 9.99999974E-6 : f32
    %167 = vector.broadcast %cst_96 : f32 to vector<1x32xf32>
    %168 = arith.addf %166, %167 : vector<1x32xf32>
    %169 = math.rsqrt %168 : vector<1x32xf32>
    %c4_97 = arith.constant 4 : index
    %c0_98 = arith.constant 0 : index
    %170 = vector.load %arg8[%c4_97, %c0_98] : memref<10x32xf32, #tpu.memory_space<vmem>>, vector<1x32xf32>
    %171 = arith.mulf %169, %170 : vector<1x32xf32>
    %172 = vector.broadcast %171 : vector<1x32xf32> to vector<16x32xf32>
    %173 = arith.mulf %162, %172 : vector<16x32xf32>
    %c4_99 = arith.constant 4 : index
    %c0_100 = arith.constant 0 : index
    %174 = vector.load %arg9[%c4_99, %c0_100] : memref<10x32xf32, #tpu.memory_space<vmem>>, vector<1x32xf32>
    %175 = vector.broadcast %174 : vector<1x32xf32> to vector<16x32xf32>
    %176 = arith.addf %173, %175 : vector<16x32xf32>
    %c0_101 = arith.constant 0 : index
    %c0_102 = arith.constant 0 : index
    %c0_103 = arith.constant 0 : index
    %177 = vector.load %arg11[%c0_101, %c0_102, %c0_103] : memref<1x16x32xf32, #tpu.memory_space<vmem>>, vector<1x16x32xf32>
    %178 = vector.shape_cast %177 : vector<1x16x32xf32> to vector<16x32xf32>
    %179 = vector.shape_cast %176 : vector<16x32xf32> to vector<1x16x32xf32>
    tpu.vector_store %arg11[%c0_101, %c0_102, %c0_103], %179 {strides = array<i32>} : memref<1x16x32xf32, #tpu.memory_space<vmem>>, vector<1x16x32xf32>,
    %c5 = arith.constant 5 : index
    %c0_104 = arith.constant 0 : index
    %c0_105 = arith.constant 0 : index
    %180 = vector.load %arg6[%c5, %c0_104, %c0_105] : memref<10x32x32xf32, #tpu.memory_space<vmem>>, vector<1x32x32xf32>
    %181 = vector.shape_cast %180 : vector<1x32x32xf32> to vector<32x32xf32>
    %cst_106 = arith.constant dense<0.000000e+00> : vector<16x32xf32>
    %182 = tpu.matmul %176, %181, %cst_106 {dimension_numbers = #tpu.dot_dimension_numbers<[1], [0], [0], [1], [0, 0, 1, 1], [], []>} : vector<16x32xf32>, vector<32x32xf32>, vector<16x32xf32> -> vector<16x32xf32>
    %cst_107 = arith.constant dense<0.000000e+00> : vector<16x32xf32>
    %183 = tpu.matmul %15, %182, %cst_107 {dimension_numbers = #tpu.dot_dimension_numbers<[1], [0], [0], [1], [0, 0, 1, 1], [], []>} : vector<16x16xf32>, vector<16x32xf32>, vector<16x32xf32> -> vector<16x32xf32>
    %c5_108 = arith.constant 5 : index
    %c0_109 = arith.constant 0 : index
    %184 = vector.load %arg7[%c5_108, %c0_109] : memref<10x32xf32, #tpu.memory_space<vmem>>, vector<1x32xf32>
    %185 = vector.broadcast %184 : vector<1x32xf32> to vector<16x32xf32>
    %186 = arith.addf %183, %185 : vector<16x32xf32>
    %c5_110 = arith.constant 5 : index
    %187 = memref.load %arg1[%c5_110] : memref<10xf32, #tpu.memory_space<smem>>
    %cst_111 = arith.constant 0.000000e+00 : f32
    %188 = vector.broadcast %cst_111 : f32 to vector<16x32xf32>
    %189 = arith.cmpf ogt, %186, %188 : vector<16x32xf32>
    %190 = vector.broadcast %187 : f32 to vector<16x32xf32>
    %191 = arith.mulf %190, %186 : vector<16x32xf32>
    %192 = arith.select %189, %186, %191 : vector<16x32xi1>, vector<16x32xf32>
    %cst_112 = arith.constant dense<0.000000e+00> : vector<1x32xf32>
    %193 = tpu.matmul %16, %192, %cst_112 {dimension_numbers = #tpu.dot_dimension_numbers<[1], [0], [0], [1], [0, 0, 1, 1], [], []>} : vector<1x16xf32>, vector<16x32xf32>, vector<1x32xf32> -> vector<1x32xf32>
    %cst_113 = arith.constant 6.250000e-02 : f32
    %194 = vector.broadcast %cst_113 : f32 to vector<1x32xf32>
    %195 = arith.mulf %193, %194 : vector<1x32xf32>
    %196 = vector.broadcast %195 : vector<1x32xf32> to vector<16x32xf32>
    %197 = arith.subf %192, %196 : vector<16x32xf32>
    %198 = arith.mulf %197, %197 : vector<16x32xf32>
    %cst_114 = arith.constant dense<0.000000e+00> : vector<1x32xf32>
    %199 = tpu.matmul %16, %198, %cst_114 {dimension_numbers = #tpu.dot_dimension_numbers<[1], [0], [0], [1], [0, 0, 1, 1], [], []>} : vector<1x16xf32>, vector<16x32xf32>, vector<1x32xf32> -> vector<1x32xf32>
    %cst_115 = arith.constant 6.250000e-02 : f32
    %200 = vector.broadcast %cst_115 : f32 to vector<1x32xf32>
    %201 = arith.mulf %199, %200 : vector<1x32xf32>
    %cst_116 = arith.constant 9.99999974E-6 : f32
    %202 = vector.broadcast %cst_116 : f32 to vector<1x32xf32>
    %203 = arith.addf %201, %202 : vector<1x32xf32>
    %204 = math.rsqrt %203 : vector<1x32xf32>
    %c5_117 = arith.constant 5 : index
    %c0_118 = arith.constant 0 : index
    %205 = vector.load %arg8[%c5_117, %c0_118] : memref<10x32xf32, #tpu.memory_space<vmem>>, vector<1x32xf32>
    %206 = arith.mulf %204, %205 : vector<1x32xf32>
    %207 = vector.broadcast %206 : vector<1x32xf32> to vector<16x32xf32>
    %208 = arith.mulf %197, %207 : vector<16x32xf32>
    %c5_119 = arith.constant 5 : index
    %c0_120 = arith.constant 0 : index
    %209 = vector.load %arg9[%c5_119, %c0_120] : memref<10x32xf32, #tpu.memory_space<vmem>>, vector<1x32xf32>
    %210 = vector.broadcast %209 : vector<1x32xf32> to vector<16x32xf32>
    %211 = arith.addf %208, %210 : vector<16x32xf32>
    %c6 = arith.constant 6 : index
    %c0_121 = arith.constant 0 : index
    %c0_122 = arith.constant 0 : index
    %212 = vector.load %arg6[%c6, %c0_121, %c0_122] : memref<10x32x32xf32, #tpu.memory_space<vmem>>, vector<1x32x32xf32>
    %213 = vector.shape_cast %212 : vector<1x32x32xf32> to vector<32x32xf32>
    %cst_123 = arith.constant dense<0.000000e+00> : vector<16x32xf32>
    %214 = tpu.matmul %211, %213, %cst_123 {dimension_numbers = #tpu.dot_dimension_numbers<[1], [0], [0], [1], [0, 0, 1, 1], [], []>} : vector<16x32xf32>, vector<32x32xf32>, vector<16x32xf32> -> vector<16x32xf32>
    %cst_124 = arith.constant dense<0.000000e+00> : vector<16x32xf32>
    %215 = tpu.matmul %15, %214, %cst_124 {dimension_numbers = #tpu.dot_dimension_numbers<[1], [0], [0], [1], [0, 0, 1, 1], [], []>} : vector<16x16xf32>, vector<16x32xf32>, vector<16x32xf32> -> vector<16x32xf32>
    %c6_125 = arith.constant 6 : index
    %c0_126 = arith.constant 0 : index
    %216 = vector.load %arg7[%c6_125, %c0_126] : memref<10x32xf32, #tpu.memory_space<vmem>>, vector<1x32xf32>
    %217 = vector.broadcast %216 : vector<1x32xf32> to vector<16x32xf32>
    %218 = arith.addf %215, %217 : vector<16x32xf32>
    %c6_127 = arith.constant 6 : index
    %219 = memref.load %arg1[%c6_127] : memref<10xf32, #tpu.memory_space<smem>>
    %cst_128 = arith.constant 0.000000e+00 : f32
    %220 = vector.broadcast %cst_128 : f32 to vector<16x32xf32>
    %221 = arith.cmpf ogt, %218, %220 : vector<16x32xf32>
    %222 = vector.broadcast %219 : f32 to vector<16x32xf32>
    %223 = arith.mulf %222, %218 : vector<16x32xf32>
    %224 = arith.select %221, %218, %223 : vector<16x32xi1>, vector<16x32xf32>
    %cst_129 = arith.constant dense<0.000000e+00> : vector<1x32xf32>
    %225 = tpu.matmul %16, %224, %cst_129 {dimension_numbers = #tpu.dot_dimension_numbers<[1], [0], [0], [1], [0, 0, 1, 1], [], []>} : vector<1x16xf32>, vector<16x32xf32>, vector<1x32xf32> -> vector<1x32xf32>
    %cst_130 = arith.constant 6.250000e-02 : f32
    %226 = vector.broadcast %cst_130 : f32 to vector<1x32xf32>
    %227 = arith.mulf %225, %226 : vector<1x32xf32>
    %228 = vector.broadcast %227 : vector<1x32xf32> to vector<16x32xf32>
    %229 = arith.subf %224, %228 : vector<16x32xf32>
    %230 = arith.mulf %229, %229 : vector<16x32xf32>
    %cst_131 = arith.constant dense<0.000000e+00> : vector<1x32xf32>
    %231 = tpu.matmul %16, %230, %cst_131 {dimension_numbers = #tpu.dot_dimension_numbers<[1], [0], [0], [1], [0, 0, 1, 1], [], []>} : vector<1x16xf32>, vector<16x32xf32>, vector<1x32xf32> -> vector<1x32xf32>
    %cst_132 = arith.constant 6.250000e-02 : f32
    %232 = vector.broadcast %cst_132 : f32 to vector<1x32xf32>
    %233 = arith.mulf %231, %232 : vector<1x32xf32>
    %cst_133 = arith.constant 9.99999974E-6 : f32
    %234 = vector.broadcast %cst_133 : f32 to vector<1x32xf32>
    %235 = arith.addf %233, %234 : vector<1x32xf32>
    %236 = math.rsqrt %235 : vector<1x32xf32>
    %c6_134 = arith.constant 6 : index
    %c0_135 = arith.constant 0 : index
    %237 = vector.load %arg8[%c6_134, %c0_135] : memref<10x32xf32, #tpu.memory_space<vmem>>, vector<1x32xf32>
    %238 = arith.mulf %236, %237 : vector<1x32xf32>
    %239 = vector.broadcast %238 : vector<1x32xf32> to vector<16x32xf32>
    %240 = arith.mulf %229, %239 : vector<16x32xf32>
    %c6_136 = arith.constant 6 : index
    %c0_137 = arith.constant 0 : index
    %241 = vector.load %arg9[%c6_136, %c0_137] : memref<10x32xf32, #tpu.memory_space<vmem>>, vector<1x32xf32>
    %242 = vector.broadcast %241 : vector<1x32xf32> to vector<16x32xf32>
    %243 = arith.addf %240, %242 : vector<16x32xf32>
    %c7 = arith.constant 7 : index
    %c0_138 = arith.constant 0 : index
    %c0_139 = arith.constant 0 : index
    %244 = vector.load %arg6[%c7, %c0_138, %c0_139] : memref<10x32x32xf32, #tpu.memory_space<vmem>>, vector<1x32x32xf32>
    %245 = vector.shape_cast %244 : vector<1x32x32xf32> to vector<32x32xf32>
    %cst_140 = arith.constant dense<0.000000e+00> : vector<16x32xf32>
    %246 = tpu.matmul %243, %245, %cst_140 {dimension_numbers = #tpu.dot_dimension_numbers<[1], [0], [0], [1], [0, 0, 1, 1], [], []>} : vector<16x32xf32>, vector<32x32xf32>, vector<16x32xf32> -> vector<16x32xf32>
    %cst_141 = arith.constant dense<0.000000e+00> : vector<16x32xf32>
    %247 = tpu.matmul %15, %246, %cst_141 {dimension_numbers = #tpu.dot_dimension_numbers<[1], [0], [0], [1], [0, 0, 1, 1], [], []>} : vector<16x16xf32>, vector<16x32xf32>, vector<16x32xf32> -> vector<16x32xf32>
    %c7_142 = arith.constant 7 : index
    %c0_143 = arith.constant 0 : index
    %248 = vector.load %arg7[%c7_142, %c0_143] : memref<10x32xf32, #tpu.memory_space<vmem>>, vector<1x32xf32>
    %249 = vector.broadcast %248 : vector<1x32xf32> to vector<16x32xf32>
    %250 = arith.addf %247, %249 : vector<16x32xf32>
    %c7_144 = arith.constant 7 : index
    %251 = memref.load %arg1[%c7_144] : memref<10xf32, #tpu.memory_space<smem>>
    %cst_145 = arith.constant 0.000000e+00 : f32
    %252 = vector.broadcast %cst_145 : f32 to vector<16x32xf32>
    %253 = arith.cmpf ogt, %250, %252 : vector<16x32xf32>
    %254 = vector.broadcast %251 : f32 to vector<16x32xf32>
    %255 = arith.mulf %254, %250 : vector<16x32xf32>
    %256 = arith.select %253, %250, %255 : vector<16x32xi1>, vector<16x32xf32>
    %cst_146 = arith.constant dense<0.000000e+00> : vector<1x32xf32>
    %257 = tpu.matmul %16, %256, %cst_146 {dimension_numbers = #tpu.dot_dimension_numbers<[1], [0], [0], [1], [0, 0, 1, 1], [], []>} : vector<1x16xf32>, vector<16x32xf32>, vector<1x32xf32> -> vector<1x32xf32>
    %cst_147 = arith.constant 6.250000e-02 : f32
    %258 = vector.broadcast %cst_147 : f32 to vector<1x32xf32>
    %259 = arith.mulf %257, %258 : vector<1x32xf32>
    %260 = vector.broadcast %259 : vector<1x32xf32> to vector<16x32xf32>
    %261 = arith.subf %256, %260 : vector<16x32xf32>
    %262 = arith.mulf %261, %261 : vector<16x32xf32>
    %cst_148 = arith.constant dense<0.000000e+00> : vector<1x32xf32>
    %263 = tpu.matmul %16, %262, %cst_148 {dimension_numbers = #tpu.dot_dimension_numbers<[1], [0], [0], [1], [0, 0, 1, 1], [], []>} : vector<1x16xf32>, vector<16x32xf32>, vector<1x32xf32> -> vector<1x32xf32>
    %cst_149 = arith.constant 6.250000e-02 : f32
    %264 = vector.broadcast %cst_149 : f32 to vector<1x32xf32>
    %265 = arith.mulf %263, %264 : vector<1x32xf32>
    %cst_150 = arith.constant 9.99999974E-6 : f32
    %266 = vector.broadcast %cst_150 : f32 to vector<1x32xf32>
    %267 = arith.addf %265, %266 : vector<1x32xf32>
    %268 = math.rsqrt %267 : vector<1x32xf32>
    %c7_151 = arith.constant 7 : index
    %c0_152 = arith.constant 0 : index
    %269 = vector.load %arg8[%c7_151, %c0_152] : memref<10x32xf32, #tpu.memory_space<vmem>>, vector<1x32xf32>
    %270 = arith.mulf %268, %269 : vector<1x32xf32>
    %271 = vector.broadcast %270 : vector<1x32xf32> to vector<16x32xf32>
    %272 = arith.mulf %261, %271 : vector<16x32xf32>
    %c7_153 = arith.constant 7 : index
    %c0_154 = arith.constant 0 : index
    %273 = vector.load %arg9[%c7_153, %c0_154] : memref<10x32xf32, #tpu.memory_space<vmem>>, vector<1x32xf32>
    %274 = vector.broadcast %273 : vector<1x32xf32> to vector<16x32xf32>
    %275 = arith.addf %272, %274 : vector<16x32xf32>
    %c8 = arith.constant 8 : index
    %c0_155 = arith.constant 0 : index
    %c0_156 = arith.constant 0 : index
    %276 = vector.load %arg6[%c8, %c0_155, %c0_156] : memref<10x32x32xf32, #tpu.memory_space<vmem>>, vector<1x32x32xf32>
    %277 = vector.shape_cast %276 : vector<1x32x32xf32> to vector<32x32xf32>
    %cst_157 = arith.constant dense<0.000000e+00> : vector<16x32xf32>
    %278 = tpu.matmul %275, %277, %cst_157 {dimension_numbers = #tpu.dot_dimension_numbers<[1], [0], [0], [1], [0, 0, 1, 1], [], []>} : vector<16x32xf32>, vector<32x32xf32>, vector<16x32xf32> -> vector<16x32xf32>
    %cst_158 = arith.constant dense<0.000000e+00> : vector<16x32xf32>
    %279 = tpu.matmul %15, %278, %cst_158 {dimension_numbers = #tpu.dot_dimension_numbers<[1], [0], [0], [1], [0, 0, 1, 1], [], []>} : vector<16x16xf32>, vector<16x32xf32>, vector<16x32xf32> -> vector<16x32xf32>
    %c8_159 = arith.constant 8 : index
    %c0_160 = arith.constant 0 : index
    %280 = vector.load %arg7[%c8_159, %c0_160] : memref<10x32xf32, #tpu.memory_space<vmem>>, vector<1x32xf32>
    %281 = vector.broadcast %280 : vector<1x32xf32> to vector<16x32xf32>
    %282 = arith.addf %279, %281 : vector<16x32xf32>
    %c8_161 = arith.constant 8 : index
    %283 = memref.load %arg1[%c8_161] : memref<10xf32, #tpu.memory_space<smem>>
    %cst_162 = arith.constant 0.000000e+00 : f32
    %284 = vector.broadcast %cst_162 : f32 to vector<16x32xf32>
    %285 = arith.cmpf ogt, %282, %284 : vector<16x32xf32>
    %286 = vector.broadcast %283 : f32 to vector<16x32xf32>
    %287 = arith.mulf %286, %282 : vector<16x32xf32>
    %288 = arith.select %285, %282, %287 : vector<16x32xi1>, vector<16x32xf32>
    %cst_163 = arith.constant dense<0.000000e+00> : vector<1x32xf32>
    %289 = tpu.matmul %16, %288, %cst_163 {dimension_numbers = #tpu.dot_dimension_numbers<[1], [0], [0], [1], [0, 0, 1, 1], [], []>} : vector<1x16xf32>, vector<16x32xf32>, vector<1x32xf32> -> vector<1x32xf32>
    %cst_164 = arith.constant 6.250000e-02 : f32
    %290 = vector.broadcast %cst_164 : f32 to vector<1x32xf32>
    %291 = arith.mulf %289, %290 : vector<1x32xf32>
    %292 = vector.broadcast %291 : vector<1x32xf32> to vector<16x32xf32>
    %293 = arith.subf %288, %292 : vector<16x32xf32>
    %294 = arith.mulf %293, %293 : vector<16x32xf32>
    %cst_165 = arith.constant dense<0.000000e+00> : vector<1x32xf32>
    %295 = tpu.matmul %16, %294, %cst_165 {dimension_numbers = #tpu.dot_dimension_numbers<[1], [0], [0], [1], [0, 0, 1, 1], [], []>} : vector<1x16xf32>, vector<16x32xf32>, vector<1x32xf32> -> vector<1x32xf32>
    %cst_166 = arith.constant 6.250000e-02 : f32
    %296 = vector.broadcast %cst_166 : f32 to vector<1x32xf32>
    %297 = arith.mulf %295, %296 : vector<1x32xf32>
    %cst_167 = arith.constant 9.99999974E-6 : f32
    %298 = vector.broadcast %cst_167 : f32 to vector<1x32xf32>
    %299 = arith.addf %297, %298 : vector<1x32xf32>
    %300 = math.rsqrt %299 : vector<1x32xf32>
    %c8_168 = arith.constant 8 : index
    %c0_169 = arith.constant 0 : index
    %301 = vector.load %arg8[%c8_168, %c0_169] : memref<10x32xf32, #tpu.memory_space<vmem>>, vector<1x32xf32>
    %302 = arith.mulf %300, %301 : vector<1x32xf32>
    %303 = vector.broadcast %302 : vector<1x32xf32> to vector<16x32xf32>
    %304 = arith.mulf %293, %303 : vector<16x32xf32>
    %c8_170 = arith.constant 8 : index
    %c0_171 = arith.constant 0 : index
    %305 = vector.load %arg9[%c8_170, %c0_171] : memref<10x32xf32, #tpu.memory_space<vmem>>, vector<1x32xf32>
    %306 = vector.broadcast %305 : vector<1x32xf32> to vector<16x32xf32>
    %307 = arith.addf %304, %306 : vector<16x32xf32>
    %c9 = arith.constant 9 : index
    %c0_172 = arith.constant 0 : index
    %c0_173 = arith.constant 0 : index
    %308 = vector.load %arg6[%c9, %c0_172, %c0_173] : memref<10x32x32xf32, #tpu.memory_space<vmem>>, vector<1x32x32xf32>
    %309 = vector.shape_cast %308 : vector<1x32x32xf32> to vector<32x32xf32>
    %cst_174 = arith.constant dense<0.000000e+00> : vector<16x32xf32>
    %310 = tpu.matmul %307, %309, %cst_174 {dimension_numbers = #tpu.dot_dimension_numbers<[1], [0], [0], [1], [0, 0, 1, 1], [], []>} : vector<16x32xf32>, vector<32x32xf32>, vector<16x32xf32> -> vector<16x32xf32>
    %cst_175 = arith.constant dense<0.000000e+00> : vector<16x32xf32>
    %311 = tpu.matmul %15, %310, %cst_175 {dimension_numbers = #tpu.dot_dimension_numbers<[1], [0], [0], [1], [0, 0, 1, 1], [], []>} : vector<16x16xf32>, vector<16x32xf32>, vector<16x32xf32> -> vector<16x32xf32>
    %c9_176 = arith.constant 9 : index
    %c0_177 = arith.constant 0 : index
    %312 = vector.load %arg7[%c9_176, %c0_177] : memref<10x32xf32, #tpu.memory_space<vmem>>, vector<1x32xf32>
    %313 = vector.broadcast %312 : vector<1x32xf32> to vector<16x32xf32>
    %314 = arith.addf %311, %313 : vector<16x32xf32>
    %c9_178 = arith.constant 9 : index
    %315 = memref.load %arg1[%c9_178] : memref<10xf32, #tpu.memory_space<smem>>
    %cst_179 = arith.constant 0.000000e+00 : f32
    %316 = vector.broadcast %cst_179 : f32 to vector<16x32xf32>
    %317 = arith.cmpf ogt, %314, %316 : vector<16x32xf32>
    %318 = vector.broadcast %315 : f32 to vector<16x32xf32>
    %319 = arith.mulf %318, %314 : vector<16x32xf32>
    %320 = arith.select %317, %314, %319 : vector<16x32xi1>, vector<16x32xf32>
    %c0_180 = arith.constant 0 : index
    %c0_181 = arith.constant 0 : index
    %c0_182 = arith.constant 0 : index
    %321 = vector.load %arg12[%c0_180, %c0_181, %c0_182] : memref<1x16x32xf32, #tpu.memory_space<vmem>>, vector<1x16x32xf32>
    %322 = vector.shape_cast %321 : vector<1x16x32xf32> to vector<16x32xf32>
    %323 = vector.shape_cast %320 : vector<16x32xf32> to vector<1x16x32xf32>
    tpu.vector_store %arg12[%c0_180, %c0_181, %c0_182], %323 {strides = array<i32>} : memref<1x16x32xf32, #tpu.memory_space<vmem>>, vector<1x16x32xf32>,
    return
  }
  func.func @transform_0(%arg0: i32) -> i32 {
    %c0_i32 = arith.constant 0 : i32
    %c0_i32_0 = arith.constant 0 : i32
    return %c0_i32 : i32
  }
  func.func @transform_1(%arg0: i32) -> (i32, i32, i32) {
    %c0_i32 = arith.constant 0 : i32
    %c0_i32_0 = arith.constant 0 : i32
    %c0_i32_1 = arith.constant 0 : i32
    return %arg0, %c0_i32, %c0_i32_0 : i32, i32, i32
  }
  func.func @transform_2(%arg0: i32) -> (i32, i32, i32) {
    %c0_i32 = arith.constant 0 : i32
    %c0_i32_0 = arith.constant 0 : i32
    %c0_i32_1 = arith.constant 0 : i32
    return %arg0, %c0_i32, %c0_i32_0 : i32, i32, i32
  }
  func.func @transform_3(%arg0: i32) -> (i32, i32, i32) {
    %c0_i32 = arith.constant 0 : i32
    %c0_i32_0 = arith.constant 0 : i32
    %c0_i32_1 = arith.constant 0 : i32
    return %arg0, %c0_i32, %c0_i32_0 : i32, i32, i32
  }
  func.func @transform_4(%arg0: i32) -> (i32, i32, i32) {
    %c0_i32 = arith.constant 0 : i32
    %c0_i32_0 = arith.constant 0 : i32
    %c0_i32_1 = arith.constant 0 : i32
    return %arg0, %c0_i32, %c0_i32_0 : i32, i32, i32
  }
  func.func @transform_5(%arg0: i32) -> (i32, i32, i32) {
    %c0_i32 = arith.constant 0 : i32
    %c0_i32_0 = arith.constant 0 : i32
    %c0_i32_1 = arith.constant 0 : i32
    %c0_i32_2 = arith.constant 0 : i32
    return %c0_i32, %c0_i32_0, %c0_i32_1 : i32, i32, i32
  }
  func.func @transform_6(%arg0: i32) -> (i32, i32) {
    %c0_i32 = arith.constant 0 : i32
    %c0_i32_0 = arith.constant 0 : i32
    %c0_i32_1 = arith.constant 0 : i32
    return %c0_i32, %c0_i32_0 : i32, i32
  }
  func.func @transform_7(%arg0: i32) -> (i32, i32) {
    %c0_i32 = arith.constant 0 : i32
    %c0_i32_0 = arith.constant 0 : i32
    %c0_i32_1 = arith.constant 0 : i32
    return %c0_i32, %c0_i32_0 : i32, i32
  }
  func.func @transform_8(%arg0: i32) -> (i32, i32) {
    %c0_i32 = arith.constant 0 : i32
    %c0_i32_0 = arith.constant 0 : i32
    %c0_i32_1 = arith.constant 0 : i32
    return %c0_i32, %c0_i32_0 : i32, i32
  }
  func.func @transform_9(%arg0: i32) -> (i32, i32, i32) {
    %c0_i32 = arith.constant 0 : i32
    %c0_i32_0 = arith.constant 0 : i32
    %c0_i32_1 = arith.constant 0 : i32
    return %arg0, %c0_i32, %c0_i32_0 : i32, i32, i32
  }
  func.func @transform_10(%arg0: i32) -> (i32, i32, i32) {
    %c0_i32 = arith.constant 0 : i32
    %c0_i32_0 = arith.constant 0 : i32
    %c0_i32_1 = arith.constant 0 : i32
    return %arg0, %c0_i32, %c0_i32_0 : i32, i32, i32
  }
  func.func @transform_11(%arg0: i32) -> (i32, i32, i32) {
    %c0_i32 = arith.constant 0 : i32
    %c0_i32_0 = arith.constant 0 : i32
    %c0_i32_1 = arith.constant 0 : i32
    return %arg0, %c0_i32, %c0_i32_0 : i32, i32, i32
  }
}

</mosaic_0001>

<llo_original>
// kernel: tpu_custom_call.1
$region0: #{tpu_custom_call.1}
  #allocation0 [shape = 'u32[]', space=smem, size = 0x4, offset = 0x4, fixed_abs, tag = 'smem constant byte address 0x4 - core index']
  #allocation1 [shape = 'u32[144,128]{1,0:T(1,128)}', space=vmem, size = 0x12000, scoped, tag = 'internal scratch']
  %s0 = inlined_call_operand.hbm [shape: f32[10], index: 0, kind: input, shape index: {}]
  %s1 = inlined_call_operand.vmem [shape: f32[1,16,32], index: 1, kind: input, shape index: {}]
  %s2 = inlined_call_operand.hbm [shape: f32[1,16,16], index: 2, kind: input, shape index: {}]
  %s3 = inlined_call_operand.hbm [shape: f32[1,16,32], index: 3, kind: input, shape index: {}]
  %s4 = inlined_call_operand.vmem [shape: f32[1,16,1], index: 4, kind: input, shape index: {}]
  %s5 = inlined_call_operand.hbm [shape: f32[10,32,32], index: 5, kind: input, shape index: {}]
  %s6 = inlined_call_operand.vmem [shape: f32[10,32], index: 6, kind: input, shape index: {}]
  %s7 = inlined_call_operand.hbm [shape: f32[10,32], index: 7, kind: input, shape index: {}]
  %s8 = inlined_call_operand.hbm [shape: f32[10,32], index: 8, kind: input, shape index: {}]
  %s9 = inlined_call_operand.hbm [shape: f32[1,16,32], index: 9, kind: output, shape index: {0}]
  %s10 = inlined_call_operand.hbm [shape: f32[1,16,32], index: 10, kind: output, shape index: {1}]
  %s11 = inlined_call_operand.hbm [shape: f32[1,16,32], index: 11, kind: output, shape index: {2}]
  %12 = xla_tuple %s9, %s10, %s11
  %s13 = sld [smem:[#allocation0]]
  $region86: #{tpu_custom_call.1} parent=0
    _
  %s15 = ssub.s32 1, %s13
  %s16 = scalar_select 0, %s15, %s13
  $region1: #{tpu_custom_call.1} parent=0
    #allocation2 [shape = 'u8[512]{0}', space=smem, size = 0x200, scoped, tag = 'input window, operand 0, single buffered']
    #allocation3 [shape = 's32[1]{0}', space=sflag, size = 0x4, scoped, tag = 'scoped memory for tpu_custom_call.1']
    #allocation4 [shape = 's32[1]{0}', space=sflag, size = 0x4, scoped, tag = 'scoped memory for tpu_custom_call.1']
    #allocation5 [shape = 's32[1]{0}', space=sflag, size = 0x4, scoped, tag = 'scoped memory for tpu_custom_call.1']
    #allocation6 [shape = 'u8[8192]{0}', space=vmem, size = 0x2000, scoped, tag = 'input window, operand 2, single buffered']
    #allocation7 [shape = 'u8[8192]{0}', space=vmem, size = 0x2000, scoped, tag = 'input window, operand 3, single buffered']
    #allocation8 [shape = 's32[1]{0}', space=sflag, size = 0x4, scoped, tag = 'scoped memory for tpu_custom_call.1']
    #allocation9 [shape = 'u8[163840]{0}', space=vmem, size = 0x28000, scoped, tag = 'input window, operand 5, single buffered']
    #allocation10 [shape = 'u8[8192]{0}', space=vmem, size = 0x2000, scoped, tag = 'input window, operand 7, single buffered']
    #allocation11 [shape = 's32[1]{0}', space=sflag, size = 0x4, scoped, tag = 'scoped memory for tpu_custom_call.1']
    #allocation12 [shape = 'u8[8192]{0}', space=vmem, size = 0x2000, scoped, tag = 'input window, operand 8, single buffered']
    #allocation13 [shape = 'u8[8192]{0}', space=vmem, size = 0x2000, scoped, tag = 'output window, operand 0, single buffered']
    #allocation14 [shape = 'u8[8192]{0}', space=vmem, size = 0x2000, scoped, tag = 'output window, operand 1, single buffered']
    #allocation15 [shape = 's32[1]{0}', space=sflag, size = 0x4, scoped, tag = 'scoped memory for tpu_custom_call.1']
    #allocation16 [shape = 'u8[8192]{0}', space=vmem, size = 0x2000, scoped, tag = 'output window, operand 2, single buffered']
    %17 = vsyncpa [#allocation5], 0
    %18 = vsyncpa [#allocation3], 0
    %19 = vsyncpa [#allocation8], 0
    %20 = vsyncpa [#allocation11], 0
    %21 = vsyncpa [#allocation4], 0
    %22 = vsyncpa [#allocation15], 0
    // Predicated region
    $region2: #{tpu_custom_call.1} parent=1 // pred_check
      _
    $region3: #{tpu_custom_call.1} parent=1 // pred_check_branch
      %24 = sbr.rel (0) target = $region5
    $region4: #{tpu_custom_call.1} parent=1 // pred_region
      %s26 = ssub.s32 16, 16
      %27 = vsyncadd [#allocation5], %s26
      %30 = dma.hbm_to_smem %s0, 16, [#allocation2], [#allocation5]
    $region5: #{tpu_custom_call.1} parent=1 // pred_fallthru
      _
    // Predicated region
    $region6: #{tpu_custom_call.1} parent=1 // pred_check
      _
    $region7: #{tpu_custom_call.1} parent=1 // pred_check_branch
      %32 = sbr.rel (0) target = $region9
    $region8: #{tpu_custom_call.1} parent=1 // pred_region
      _
    $region9: #{tpu_custom_call.1} parent=1 // pred_fallthru
      _
    // Predicated region
    $region10: #{tpu_custom_call.1} parent=1 // pred_check
      _
    $region11: #{tpu_custom_call.1} parent=1 // pred_check_branch
      %34 = sbr.rel (0) target = $region13
    $region12: #{tpu_custom_call.1} parent=1 // pred_region
      %s36 = ssub.s32 256, 256
      %37 = vsyncadd [#allocation3], %s36
      %s38 = sshll.u32 [#allocation6], 4
      %s39 = int_to_ptr.vmem [resolvable:$true] %s38
      %44 = dma.hbm_to_vmem [thread:$0]  %s2, 256, %s39, [#allocation3], 128, 128, 8
    $region13: #{tpu_custom_call.1} parent=1 // pred_fallthru
      _
    // Predicated region
    $region14: #{tpu_custom_call.1} parent=1 // pred_check
      _
    $region15: #{tpu_custom_call.1} parent=1 // pred_check_branch
      %46 = sbr.rel (0) target = $region17
    $region16: #{tpu_custom_call.1} parent=1 // pred_region
      %s48 = ssub.s32 256, 256
      %49 = vsyncadd [#allocation8], %s48
      %s50 = sshll.u32 [#allocation7], 4
      %s51 = int_to_ptr.vmem [resolvable:$true] %s50
      %56 = dma.hbm_to_vmem [thread:$0]  %s3, 256, %s51, [#allocation8], 128, 128, 8
    $region17: #{tpu_custom_call.1} parent=1 // pred_fallthru
      _
    // Predicated region
    $region18: #{tpu_custom_call.1} parent=1 // pred_check
      _
    $region19: #{tpu_custom_call.1} parent=1 // pred_check_branch
      %58 = sbr.rel (0) target = $region21
    $region20: #{tpu_custom_call.1} parent=1 // pred_region
      _
    $region21: #{tpu_custom_call.1} parent=1 // pred_fallthru
      _
    // Predicated region
    $region22: #{tpu_custom_call.1} parent=1 // pred_check
      _
    $region23: #{tpu_custom_call.1} parent=1 // pred_check_branch
      %60 = sbr.rel (0) target = $region25
    $region24: #{tpu_custom_call.1} parent=1 // pred_region
      %s62 = ssub.s32 5120, 5120
      %63 = vsyncadd [#allocation8], %s62
      %s64 = sshll.u32 [#allocation9], 4
      %s65 = int_to_ptr.vmem [resolvable:$true] %s64
      %70 = dma.hbm_to_vmem [thread:$0]  %s5, 5120, %s65, [#allocation8], 128, 128, 8
    $region25: #{tpu_custom_call.1} parent=1 // pred_fallthru
      _
    // Predicated region
    $region26: #{tpu_custom_call.1} parent=1 // pred_check
      _
    $region27: #{tpu_custom_call.1} parent=1 // pred_check_branch
      %72 = sbr.rel (0) target = $region29
    $region28: #{tpu_custom_call.1} parent=1 // pred_region
      _
    $region29: #{tpu_custom_call.1} parent=1 // pred_fallthru
      _
    // Predicated region
    $region30: #{tpu_custom_call.1} parent=1 // pred_check
      _
    $region31: #{tpu_custom_call.1} parent=1 // pred_check_branch
      %74 = sbr.rel (0) target = $region33
    $region32: #{tpu_custom_call.1} parent=1 // pred_region
      %s76 = ssub.s32 256, 256
      %77 = vsyncadd [#allocation11], %s76
      %s78 = sshll.u32 [#allocation10], 4
      %s79 = int_to_ptr.vmem [resolvable:$true] %s78
      %84 = dma.hbm_to_vmem [thread:$0]  %s7, 256, %s79, [#allocation11], 128, 128, 8
    $region33: #{tpu_custom_call.1} parent=1 // pred_fallthru
      _
    // Predicated region
    $region34: #{tpu_custom_call.1} parent=1 // pred_check
      _
    $region35: #{tpu_custom_call.1} parent=1 // pred_check_branch
      %86 = sbr.rel (0) target = $region37
    $region36: #{tpu_custom_call.1} parent=1 // pred_region
      %s88 = ssub.s32 256, 256
      %89 = vsyncadd [#allocation11], %s88
      %s90 = sshll.u32 [#allocation12], 4
      %s91 = int_to_ptr.vmem [resolvable:$true] %s90
      %96 = dma.hbm_to_vmem [thread:$0]  %s8, 256, %s91, [#allocation11], 128, 128, 8
    $region37: #{tpu_custom_call.1} parent=1 // pred_fallthru
      _
    // Predicated region
    $region38: #{tpu_custom_call.1} parent=1 // pred_check
      _
    $region39: #{tpu_custom_call.1} parent=1 // pred_check_branch
      %98 = sbr.rel (0) target = $region41
    $region40: #{tpu_custom_call.1} parent=1 // pred_region
      %99 = dma.done [#allocation5], 16
    $region41: #{tpu_custom_call.1} parent=1 // pred_fallthru
      _
    // Predicated region
    $region42: #{tpu_custom_call.1} parent=1 // pred_check
      _
    $region43: #{tpu_custom_call.1} parent=1 // pred_check_branch
      %101 = sbr.rel (0) target = $region45
    $region44: #{tpu_custom_call.1} parent=1 // pred_region
      %102 = dma.done [#allocation3], 256
    $region45: #{tpu_custom_call.1} parent=1 // pred_fallthru
      _
    // Predicated region
    $region46: #{tpu_custom_call.1} parent=1 // pred_check
      _
    $region47: #{tpu_custom_call.1} parent=1 // pred_check_branch
      %104 = sbr.rel (0) target = $region49
    $region48: #{tpu_custom_call.1} parent=1 // pred_region
      %105 = dma.done [#allocation8], 256
    $region49: #{tpu_custom_call.1} parent=1 // pred_fallthru
      _
    // Predicated region
    $region50: #{tpu_custom_call.1} parent=1 // pred_check
      _
    $region51: #{tpu_custom_call.1} parent=1 // pred_check_branch
      %107 = sbr.rel (0) target = $region53
    $region52: #{tpu_custom_call.1} parent=1 // pred_region
      %108 = dma.done [#allocation8], 5120
    $region53: #{tpu_custom_call.1} parent=1 // pred_fallthru
      _
    // Predicated region
    $region54: #{tpu_custom_call.1} parent=1 // pred_check
      _
    $region55: #{tpu_custom_call.1} parent=1 // pred_check_branch
      %110 = sbr.rel (0) target = $region57
    $region56: #{tpu_custom_call.1} parent=1 // pred_region
      %111 = dma.done [#allocation11], 256
    $region57: #{tpu_custom_call.1} parent=1 // pred_fallthru
      _
    // Predicated region
    $region58: #{tpu_custom_call.1} parent=1 // pred_check
      _
    $region59: #{tpu_custom_call.1} parent=1 // pred_check_branch
      %113 = sbr.rel (0) target = $region61
    $region60: #{tpu_custom_call.1} parent=1 // pred_region
      %114 = dma.done [#allocation11], 256
    $region61: #{tpu_custom_call.1} parent=1 // pred_fallthru
      _
    %115 = sfence
    %v116 = vld [vmem:[%s4] sm:$0xff]
    %v117 = vld [vmem:[%s4 + $0x8] sm:$0xff]
    %vm118 = vcmp.gt.f32.partialorder %v116, 0.5
    %vm119 = vcmp.gt.f32.partialorder %v117, 0.5
    %v120 = vld [vmem:[#allocation7] sm:$0xff]
    %v121 = vld [vmem:[#allocation7 + $0x8] sm:$0xff]
    %v122 = vld [vmem:[%s1] sm:$0xff]
    %v123 = vld [vmem:[%s1 + $0x8] sm:$0xff]
    %v124 = vsel %vm118, 1, 0
    %v125 = vsel %vm119, 1, 0
    %126 = vset.pattern.permute.xlu0 0
    %127 = vperm.xlu0 %126, %v124
    %v128 = vpop.permute.xlu0 %127
    %129 = vset.pattern.permute.xlu0 0
    %130 = vperm.xlu0 %129, %v125
    %v131 = vpop.permute.xlu0 %130
    %vm132 = vcmp.eq.s32.totalorder %v128, 1
    %vm133 = vcmp.eq.s32.totalorder %v131, 1
    %v134 = vsel %vm132, %v120, %v122
    %v135 = vsel %vm133, %v121, %v123
    %vm136 = vcmask 261120
    %137 = vst.msk [vmem:[#allocation13] sm:$0xff] %vm136, %v134
    %138 = vst.msk [vmem:[#allocation13 + $0x8] sm:$0xff] %vm136, %v135
    %v139 = vld [vmem:[#allocation6] sm:$0xff]
    %v140 = vld [vmem:[#allocation6 + $0x8] sm:$0xff]
    %v141 = vld [vmem:[#allocation9] sm:$0xff]
    %v142 = vld [vmem:[#allocation9 + $0x8] sm:$0xff]
    %v143 = vld [vmem:[#allocation9 + $0x10] sm:$0xff]
    %v144 = vld [vmem:[#allocation9 + $0x18] sm:$0xff]
    %v146 = vsel %vm136, %v134, 0
    %v149 = vsel %vm136, %v135, 0
    %151 = vmatprep.subr.mxu0 0.0
    %152 = vmatpush1.msra.mxu0 %v141
    %153 = vmatprep.subr.mxu0 0.0
    %154 = vmatpush1.msra.mxu0 %v142
    %155 = vmatprep.subr.mxu0 0.0
    %156 = vmatpush1.msra.mxu0 %v143
    %157 = vmatprep.subr.mxu0 0.0
    %158 = vmatpush1.msra.mxu0 %v144
    %159 = vmatprep.subr.mxu0 0.0
    %160 = vmatpush1.msra.mxu0 0.0
    %161 = vmatprep.subr.mxu0 0.0
    %162 = vmatpush1.msra.mxu0 0.0
    %163 = vmatprep.subr.mxu0 0.0
    %164 = vmatpush1.msra.mxu0 0.0
    %165 = vmatprep.subr.mxu0 0.0
    %166 = vmatpush1.msra.mxu0 0.0
    %167 = vmatprep.subr.mxu0 0.0
    %168 = vmatpush1.msra.mxu0 0.0
    %169 = vmatprep.subr.mxu0 0.0
    %170 = vmatpush1.msra.mxu0 0.0
    %171 = vmatprep.subr.mxu0 0.0
    %172 = vmatpush1.msra.mxu0 0.0
    %173 = vmatprep.subr.mxu0 0.0
    %174 = vmatpush1.msra.mxu0 0.0
    %175 = vmatprep.subr.mxu0 0.0
    %176 = vmatpush1.msra.mxu0 0.0
    %177 = vmatprep.subr.mxu0 0.0
    %178 = vmatpush1.msra.mxu0 0.0
    %179 = vmatprep.subr.mxu0 0.0
    %180 = vmatpush1.msra.mxu0 0.0
    %181 = vmatprep.subr.mxu0 0.0
    %182 = vmatpush1.msra.mxu0 0.0
    %183 = vmatprep.subr.mxu0 0.0
    %184 = vmatpush1.msra.mxu0 0.0
    %185 = vmatprep.subr.mxu0 0.0
    %186 = vmatpush1.msra.mxu0 0.0
    %187 = vmatprep.subr.mxu0 0.0
    %188 = vmatpush1.msra.mxu0 0.0
    %189 = vmatprep.subr.mxu0 0.0
    %190 = vmatpush1.msra.mxu0 0.0
    %191 = vmatprep.subr.mxu0 0.0
    %192 = vmatpush1.msra.mxu0 0.0
    %193 = vmatprep.subr.mxu0 0.0
    %194 = vmatpush1.msra.mxu0 0.0
    %195 = vmatprep.subr.mxu0 0.0
    %196 = vmatpush1.msra.mxu0 0.0
    %197 = vmatprep.subr.mxu0 0.0
    %198 = vmatpush1.msra.mxu0 0.0
    %199 = vmatprep.subr.mxu0 0.0
    %200 = vmatpush1.msra.mxu0 0.0
    %201 = vmatprep.subr.mxu0 0.0
    %202 = vmatpush1.msra.mxu0 0.0
    %203 = vmatprep.subr.mxu0 0.0
    %204 = vmatpush1.msra.mxu0 0.0
    %205 = vmatprep.subr.mxu0 0.0
    %206 = vmatpush1.msra.mxu0 0.0
    %207 = vmatprep.subr.mxu0 0.0
    %208 = vmatpush1.msra.mxu0 0.0
    %209 = vmatprep.subr.mxu0 0.0
    %210 = vmatpush1.msra.mxu0 0.0
    %211 = vmatprep.subr.mxu0 0.0
    %212 = vmatpush1.msra.mxu0 0.0
    %213 = vmatprep.subr.mxu0 0.0
    %214 = vmatpush1.msra.mxu0 0.0
    %215 = vmatprep.mubr.f32.mxu0 0.0
    %216 = vmatmul.mubr.f32.gmra.mrb[0].mxu0 %v146
    %v217 = vpop.f32.mrb[0].mxu0
    %v218 = vadd.f32 0.0, %v217
    %v219 = vpop.f32.mrb[0].mxu0
    %220 = vmatprep.mubr.f32.mxu0 0.0
    %221 = vmatmul.mubr.f32.gmra.mrb[0].mxu0 %v149
    %v222 = vpop.f32.mrb[0].mxu0
    %v223 = vadd.f32 0.0, %v222
    %v224 = vpop.f32.mrb[0].mxu0
    %225 = vdwg.mxu0
    %v226 = vld [vmem:[%s6] sm:$0x1]
    %v227 = vlaneseq
    %v228 = vshrl.u32 %v227, 7
    %v229 = vsub.s32 0, %v228
    %v230 = vrot.slane %v226, %v229
    %vm231 = vcmask 130048
    %v233 = vsel %vm231, %v139, 0
    %v236 = vsel %vm231, %v140, 0
    %238 = vmatprep.subr.mxu0 0.0
    %239 = vmatpush1.msra.mxu0 %v218
    %240 = vmatprep.subr.mxu0 0.0
    %241 = vmatpush1.msra.mxu0 %v223
    %242 = vmatprep.subr.mxu0 0.0
    %243 = vmatpush1.msra.mxu0 0.0
    %244 = vmatprep.subr.mxu0 0.0
    %245 = vmatpush1.msra.mxu0 0.0
    %246 = vmatprep.subr.mxu0 0.0
    %247 = vmatpush1.msra.mxu0 0.0
    %248 = vmatprep.subr.mxu0 0.0
    %249 = vmatpush1.msra.mxu0 0.0
    %250 = vmatprep.subr.mxu0 0.0
    %251 = vmatpush1.msra.mxu0 0.0
    %252 = vmatprep.subr.mxu0 0.0
    %253 = vmatpush1.msra.mxu0 0.0
    %254 = vmatprep.subr.mxu0 0.0
    %255 = vmatpush1.msra.mxu0 0.0
    %256 = vmatprep.subr.mxu0 0.0
    %257 = vmatpush1.msra.mxu0 0.0
    %258 = vmatprep.subr.mxu0 0.0
    %259 = vmatpush1.msra.mxu0 0.0
    %260 = vmatprep.subr.mxu0 0.0
    %261 = vmatpush1.msra.mxu0 0.0
    %262 = vmatprep.subr.mxu0 0.0
    %263 = vmatpush1.msra.mxu0 0.0
    %264 = vmatprep.subr.mxu0 0.0
    %265 = vmatpush1.msra.mxu0 0.0
    %266 = vmatprep.subr.mxu0 0.0
    %267 = vmatpush1.msra.mxu0 0.0
    %268 = vmatprep.subr.mxu0 0.0
    %269 = vmatpush1.msra.mxu0 0.0
    %270 = vmatprep.subr.mxu0 0.0
    %271 = vmatpush1.msra.mxu0 0.0
    %272 = vmatprep.subr.mxu0 0.0
    %273 = vmatpush1.msra.mxu0 0.0
    %274 = vmatprep.subr.mxu0 0.0
    %275 = vmatpush1.msra.mxu0 0.0
    %276 = vmatprep.subr.mxu0 0.0
    %277 = vmatpush1.msra.mxu0 0.0
    %278 = vmatprep.subr.mxu0 0.0
    %279 = vmatpush1.msra.mxu0 0.0
    %280 = vmatprep.subr.mxu0 0.0
    %281 = vmatpush1.msra.mxu0 0.0
    %282 = vmatprep.subr.mxu0 0.0
    %283 = vmatpush1.msra.mxu0 0.0
    %284 = vmatprep.subr.mxu0 0.0
    %285 = vmatpush1.msra.mxu0 0.0
    %286 = vmatprep.subr.mxu0 0.0
    %287 = vmatpush1.msra.mxu0 0.0
    %288 = vmatprep.subr.mxu0 0.0
    %289 = vmatpush1.msra.mxu0 0.0
    %290 = vmatprep.subr.mxu0 0.0
    %291 = vmatpush1.msra.mxu0 0.0
    %292 = vmatprep.subr.mxu0 0.0
    %293 = vmatpush1.msra.mxu0 0.0
    %294 = vmatprep.subr.mxu0 0.0
    %295 = vmatpush1.msra.mxu0 0.0
    %296 = vmatprep.subr.mxu0 0.0
    %297 = vmatpush1.msra.mxu0 0.0
    %298 = vmatprep.subr.mxu0 0.0
    %299 = vmatpush1.msra.mxu0 0.0
    %300 = vmatprep.subr.mxu0 0.0
    %301 = vmatpush1.msra.mxu0 0.0
    %302 = vmatprep.mubr.f32.mxu0 0.0
    %303 = vmatmul.mubr.f32.gmra.mrb[0].mxu0 %v233
    %v304 = vpop.f32.mrb[0].mxu0
    %v305 = vadd.f32 %v230, %v304
    %v306 = vpop.f32.mrb[0].mxu0
    %307 = vmatprep.mubr.f32.mxu0 0.0
    %308 = vmatmul.mubr.f32.gmra.mrb[0].mxu0 %v236
    %v309 = vpop.f32.mrb[0].mxu0
    %v310 = vadd.f32 %v230, %v309
    %v311 = vpop.f32.mrb[0].mxu0
    %312 = vdwg.mxu0
    %s313 = sld [smem:[#allocation2]]
    %vm314 = vcmp.gt.f32.partialorder %v305, 0.0
    %vm315 = vcmp.gt.f32.partialorder %v310, 0.0
    %v316 = vstv %s313
    %v317 = vmul.f32 %v316, %v305
    %v318 = vmul.f32 %v316, %v310
    %v319 = vsel %vm314, %v305, %v317
    %v320 = vsel %vm315, %v310, %v318
    %v322 = vsel %vm231, 1.0, 0
    %324 = vmatprep.subr.mxu0 0.0
    %325 = vmatpush1.msra.mxu0 %v319
    %326 = vmatprep.subr.mxu0 0.0
    %327 = vmatpush1.msra.mxu0 %v320
    %328 = vmatprep.subr.mxu0 0.0
    %329 = vmatpush1.msra.mxu0 0.0
    %330 = vmatprep.subr.mxu0 0.0
    %331 = vmatpush1.msra.mxu0 0.0
    %332 = vmatprep.subr.mxu0 0.0
    %333 = vmatpush1.msra.mxu0 0.0
    %334 = vmatprep.subr.mxu0 0.0
    %335 = vmatpush1.msra.mxu0 0.0
    %336 = vmatprep.subr.mxu0 0.0
    %337 = vmatpush1.msra.mxu0 0.0
    %338 = vmatprep.subr.mxu0 0.0
    %339 = vmatpush1.msra.mxu0 0.0
    %340 = vmatprep.subr.mxu0 0.0
    %341 = vmatpush1.msra.mxu0 0.0
    %342 = vmatprep.subr.mxu0 0.0
    %343 = vmatpush1.msra.mxu0 0.0
    %344 = vmatprep.subr.mxu0 0.0
    %345 = vmatpush1.msra.mxu0 0.0
    %346 = vmatprep.subr.mxu0 0.0
    %347 = vmatpush1.msra.mxu0 0.0
    %348 = vmatprep.subr.mxu0 0.0
    %349 = vmatpush1.msra.mxu0 0.0
    %350 = vmatprep.subr.mxu0 0.0
    %351 = vmatpush1.msra.mxu0 0.0
    %352 = vmatprep.subr.mxu0 0.0
    %353 = vmatpush1.msra.mxu0 0.0
    %354 = vmatprep.subr.mxu0 0.0
    %355 = vmatpush1.msra.mxu0 0.0
    %356 = vmatprep.subr.mxu0 0.0
    %357 = vmatpush1.msra.mxu0 0.0
    %358 = vmatprep.subr.mxu0 0.0
    %359 = vmatpush1.msra.mxu0 0.0
    %360 = vmatprep.subr.mxu0 0.0
    %361 = vmatpush1.msra.mxu0 0.0
    %362 = vmatprep.subr.mxu0 0.0
    %363 = vmatpush1.msra.mxu0 0.0
    %364 = vmatprep.subr.mxu0 0.0
    %365 = vmatpush1.msra.mxu0 0.0
    %366 = vmatprep.subr.mxu0 0.0
    %367 = vmatpush1.msra.mxu0 0.0
    %368 = vmatprep.subr.mxu0 0.0
    %369 = vmatpush1.msra.mxu0 0.0
    %370 = vmatprep.subr.mxu0 0.0
    %371 = vmatpush1.msra.mxu0 0.0
    %372 = vmatprep.subr.mxu0 0.0
    %373 = vmatpush1.msra.mxu0 0.0
    %374 = vmatprep.subr.mxu0 0.0
    %375 = vmatpush1.msra.mxu0 0.0
    %376 = vmatprep.subr.mxu0 0.0
    %377 = vmatpush1.msra.mxu0 0.0
    %378 = vmatprep.subr.mxu0 0.0
    %379 = vmatpush1.msra.mxu0 0.0
    %380 = vmatprep.subr.mxu0 0.0
    %381 = vmatpush1.msra.mxu0 0.0
    %382 = vmatprep.subr.mxu0 0.0
    %383 = vmatpush1.msra.mxu0 0.0
    %384 = vmatprep.subr.mxu0 0.0
    %385 = vmatpush1.msra.mxu0 0.0
    %386 = vmatprep.subr.mxu0 0.0
    %387 = vmatpush1.msra.mxu0 0.0
    %388 = vmatprep.mubr.f32.mxu0 0.0
    %389 = vmatmul.mubr.f32.gmra.mrb[0].mxu0 %v322
    %v390 = vpop.f32.mrb[0].mxu0
    %v391 = vadd.f32 0.0, %v390
    %v392 = vpop.f32.mrb[0].mxu0
    %393 = vdwg.mxu0
    %v394 = vmul.f32 %v391, 0.0625
    %v395 = vlaneseq
    %v396 = vshrl.u32 %v395, 7
    %v397 = vsub.s32 0, %v396
    %v398 = vrot.slane %v394, %v397
    %v399 = vsub.f32 %v319, %v398
    %v400 = vsub.f32 %v320, %v398
    %v401 = vmul.f32 %v399, %v399
    %v402 = vmul.f32 %v400, %v400
    %403 = vmatprep.subr.mxu0 0.0
    %404 = vmatpush1.msra.mxu0 %v401
    %405 = vmatprep.subr.mxu0 0.0
    %406 = vmatpush1.msra.mxu0 %v402
    %407 = vmatprep.subr.mxu0 0.0
    %408 = vmatpush1.msra.mxu0 0.0
    %409 = vmatprep.subr.mxu0 0.0
    %410 = vmatpush1.msra.mxu0 0.0
    %411 = vmatprep.subr.mxu0 0.0
    %412 = vmatpush1.msra.mxu0 0.0
    %413 = vmatprep.subr.mxu0 0.0
    %414 = vmatpush1.msra.mxu0 0.0
    %415 = vmatprep.subr.mxu0 0.0
    %416 = vmatpush1.msra.mxu0 0.0
    %417 = vmatprep.subr.mxu0 0.0
    %418 = vmatpush1.msra.mxu0 0.0
    %419 = vmatprep.subr.mxu0 0.0
    %420 = vmatpush1.msra.mxu0 0.0
    %421 = vmatprep.subr.mxu0 0.0
    %422 = vmatpush1.msra.mxu0 0.0
    %423 = vmatprep.subr.mxu0 0.0
    %424 = vmatpush1.msra.mxu0 0.0
    %425 = vmatprep.subr.mxu0 0.0
    %426 = vmatpush1.msra.mxu0 0.0
    %427 = vmatprep.subr.mxu0 0.0
    %428 = vmatpush1.msra.mxu0 0.0
    %429 = vmatprep.subr.mxu0 0.0
    %430 = vmatpush1.msra.mxu0 0.0
    %431 = vmatprep.subr.mxu0 0.0
    %432 = vmatpush1.msra.mxu0 0.0
    %433 = vmatprep.subr.mxu0 0.0
    %434 = vmatpush1.msra.mxu0 0.0
    %435 = vmatprep.subr.mxu0 0.0
    %436 = vmatpush1.msra.mxu0 0.0
    %437 = vmatprep.subr.mxu0 0.0
    %438 = vmatpush1.msra.mxu0 0.0
    %439 = vmatprep.subr.mxu0 0.0
    %440 = vmatpush1.msra.mxu0 0.0
    %441 = vmatprep.subr.mxu0 0.0
    %442 = vmatpush1.msra.mxu0 0.0
    %443 = vmatprep.subr.mxu0 0.0
    %444 = vmatpush1.msra.mxu0 0.0
    %445 = vmatprep.subr.mxu0 0.0
    %446 = vmatpush1.msra.mxu0 0.0
    %447 = vmatprep.subr.mxu0 0.0
    %448 = vmatpush1.msra.mxu0 0.0
    %449 = vmatprep.subr.mxu0 0.0
    %450 = vmatpush1.msra.mxu0 0.0
    %451 = vmatprep.subr.mxu0 0.0
    %452 = vmatpush1.msra.mxu0 0.0
    %453 = vmatprep.subr.mxu0 0.0
    %454 = vmatpush1.msra.mxu0 0.0
    %455 = vmatprep.subr.mxu0 0.0
    %456 = vmatpush1.msra.mxu0 0.0
    %457 = vmatprep.subr.mxu0 0.0
    %458 = vmatpush1.msra.mxu0 0.0
    %459 = vmatprep.subr.mxu0 0.0
    %460 = vmatpush1.msra.mxu0 0.0
    %461 = vmatprep.subr.mxu0 0.0
    %462 = vmatpush1.msra.mxu0 0.0
    %463 = vmatprep.subr.mxu0 0.0
    %464 = vmatpush1.msra.mxu0 0.0
    %465 = vmatprep.subr.mxu0 0.0
    %466 = vmatpush1.msra.mxu0 0.0
    %467 = vmatprep.mubr.f32.mxu0 0.0
    %468 = vmatmul.mubr.f32.gmra.mrb[0].mxu0 %v322
    %v469 = vpop.f32.mrb[0].mxu0
    %v470 = vadd.f32 0.0, %v469
    %v471 = vpop.f32.mrb[0].mxu0
    %472 = vdwg.mxu0
    %v473 = vmul.f32 %v470, 0.0625
    %v474 = vadd.f32 %v473, 1e-05
    %v475 = vrsqrt.pop %v474
    %v476 = vld [vmem:[#allocation10] sm:$0x1]
    %v477 = vmul.f32 %v475, %v476
    %v478 = vlaneseq
    %v479 = vshrl.u32 %v478, 7
    %v480 = vsub.s32 0, %v479
    %v481 = vrot.slane %v477, %v480
    %v482 = vmul.f32 %v399, %v481
    %v483 = vmul.f32 %v400, %v481
    %v484 = vld [vmem:[#allocation12] sm:$0x1]
    %v485 = vlaneseq
    %v486 = vshrl.u32 %v485, 7
    %v487 = vsub.s32 0, %v486
    %v488 = vrot.slane %v484, %v487
    %v489 = vadd.f32 %v482, %v488
    %v490 = vadd.f32 %v483, %v488
    %s491 = scalar_lea.vmem [#allocation9], 32
    %v492 = vld [vmem:[%s491] sm:$0xff]
    %v493 = vld [vmem:[%s491 + $0x8] sm:$0xff]
    %v494 = vld [vmem:[%s491 + $0x10] sm:$0xff]
    %v495 = vld [vmem:[%s491 + $0x18] sm:$0xff]
    %v497 = vsel %vm136, %v489, 0
    %v500 = vsel %vm136, %v490, 0
    %502 = vmatprep.subr.mxu0 0.0
    %503 = vmatpush1.msra.mxu0 %v492
    %504 = vmatprep.subr.mxu0 0.0
    %505 = vmatpush1.msra.mxu0 %v493
    %506 = vmatprep.subr.mxu0 0.0
    %507 = vmatpush1.msra.mxu0 %v494
    %508 = vmatprep.subr.mxu0 0.0
    %509 = vmatpush1.msra.mxu0 %v495
    %510 = vmatprep.subr.mxu0 0.0
    %511 = vmatpush1.msra.mxu0 0.0
    %512 = vmatprep.subr.mxu0 0.0
    %513 = vmatpush1.msra.mxu0 0.0
    %514 = vmatprep.subr.mxu0 0.0
    %515 = vmatpush1.msra.mxu0 0.0
    %516 = vmatprep.subr.mxu0 0.0
    %517 = vmatpush1.msra.mxu0 0.0
    %518 = vmatprep.subr.mxu0 0.0
    %519 = vmatpush1.msra.mxu0 0.0
    %520 = vmatprep.subr.mxu0 0.0
    %521 = vmatpush1.msra.mxu0 0.0
    %522 = vmatprep.subr.mxu0 0.0
    %523 = vmatpush1.msra.mxu0 0.0
    %524 = vmatprep.subr.mxu0 0.0
    %525 = vmatpush1.msra.mxu0 0.0
    %526 = vmatprep.subr.mxu0 0.0
    %527 = vmatpush1.msra.mxu0 0.0
    %528 = vmatprep.subr.mxu0 0.0
    %529 = vmatpush1.msra.mxu0 0.0
    %530 = vmatprep.subr.mxu0 0.0
    %531 = vmatpush1.msra.mxu0 0.0
    %532 = vmatprep.subr.mxu0 0.0
    %533 = vmatpush1.msra.mxu0 0.0
    %534 = vmatprep.subr.mxu0 0.0
    %535 = vmatpush1.msra.mxu0 0.0
    %536 = vmatprep.subr.mxu0 0.0
    %537 = vmatpush1.msra.mxu0 0.0
    %538 = vmatprep.subr.mxu0 0.0
    %539 = vmatpush1.msra.mxu0 0.0
    %540 = vmatprep.subr.mxu0 0.0
    %541 = vmatpush1.msra.mxu0 0.0
    %542 = vmatprep.subr.mxu0 0.0
    %543 = vmatpush1.msra.mxu0 0.0
    %544 = vmatprep.subr.mxu0 0.0
    %545 = vmatpush1.msra.mxu0 0.0
    %546 = vmatprep.subr.mxu0 0.0
    %547 = vmatpush1.msra.mxu0 0.0
    %548 = vmatprep.subr.mxu0 0.0
    %549 = vmatpush1.msra.mxu0 0.0
    %550 = vmatprep.subr.mxu0 0.0
    %551 = vmatpush1.msra.mxu0 0.0
    %552 = vmatprep.subr.mxu0 0.0
    %553 = vmatpush1.msra.mxu0 0.0
    %554 = vmatprep.subr.mxu0 0.0
    %555 = vmatpush1.msra.mxu0 0.0
    %556 = vmatprep.subr.mxu0 0.0
    %557 = vmatpush1.msra.mxu0 0.0
    %558 = vmatprep.subr.mxu0 0.0
    %559 = vmatpush1.msra.mxu0 0.0
    %560 = vmatprep.subr.mxu0 0.0
    %561 = vmatpush1.msra.mxu0 0.0
    %562 = vmatprep.subr.mxu0 0.0
    %563 = vmatpush1.msra.mxu0 0.0
    %564 = vmatprep.subr.mxu0 0.0
    %565 = vmatpush1.msra.mxu0 0.0
    %566 = vmatprep.mubr.f32.mxu0 0.0
    %567 = vmatmul.mubr.f32.gmra.mrb[0].mxu0 %v497
    %v568 = vpop.f32.mrb[0].mxu0
    %v569 = vadd.f32 0.0, %v568
    %v570 = vpop.f32.mrb[0].mxu0
    %571 = vmatprep.mubr.f32.mxu0 0.0
    %572 = vmatmul.mubr.f32.gmra.mrb[0].mxu0 %v500
    %v573 = vpop.f32.mrb[0].mxu0
    %v574 = vadd.f32 0.0, %v573
    %v575 = vpop.f32.mrb[0].mxu0
    %576 = vdwg.mxu0
    %v577 = vld [vmem:[%s6 + $0x1] sm:$0x1]
    %v578 = vlaneseq
    %v579 = vshrl.u32 %v578, 7
    %v580 = vsub.s32 0, %v579
    %v581 = vrot.slane %v577, %v580
    %582 = vmatprep.subr.mxu0 0.0
    %583 = vmatpush1.msra.mxu0 %v569
    %584 = vmatprep.subr.mxu0 0.0
    %585 = vmatpush1.msra.mxu0 %v574
    %586 = vmatprep.subr.mxu0 0.0
    %587 = vmatpush1.msra.mxu0 0.0
    %588 = vmatprep.subr.mxu0 0.0
    %589 = vmatpush1.msra.mxu0 0.0
    %590 = vmatprep.subr.mxu0 0.0
    %591 = vmatpush1.msra.mxu0 0.0
    %592 = vmatprep.subr.mxu0 0.0
    %593 = vmatpush1.msra.mxu0 0.0
    %594 = vmatprep.subr.mxu0 0.0
    %595 = vmatpush1.msra.mxu0 0.0
    %596 = vmatprep.subr.mxu0 0.0
    %597 = vmatpush1.msra.mxu0 0.0
    %598 = vmatprep.subr.mxu0 0.0
    %599 = vmatpush1.msra.mxu0 0.0
    %600 = vmatprep.subr.mxu0 0.0
    %601 = vmatpush1.msra.mxu0 0.0
    %602 = vmatprep.subr.mxu0 0.0
    %603 = vmatpush1.msra.mxu0 0.0
    %604 = vmatprep.subr.mxu0 0.0
    %605 = vmatpush1.msra.mxu0 0.0
    %606 = vmatprep.subr.mxu0 0.0
    %607 = vmatpush1.msra.mxu0 0.0
    %608 = vmatprep.subr.mxu0 0.0
    %609 = vmatpush1.msra.mxu0 0.0
    %610 = vmatprep.subr.mxu0 0.0
    %611 = vmatpush1.msra.mxu0 0.0
    %612 = vmatprep.subr.mxu0 0.0
    %613 = vmatpush1.msra.mxu0 0.0
    %614 = vmatprep.subr.mxu0 0.0
    %615 = vmatpush1.msra.mxu0 0.0
    %616 = vmatprep.subr.mxu0 0.0
    %617 = vmatpush1.msra.mxu0 0.0
    %618 = vmatprep.subr.mxu0 0.0
    %619 = vmatpush1.msra.mxu0 0.0
    %620 = vmatprep.subr.mxu0 0.0
    %621 = vmatpush1.msra.mxu0 0.0
    %622 = vmatprep.subr.mxu0 0.0
    %623 = vmatpush1.msra.mxu0 0.0
    %624 = vmatprep.subr.mxu0 0.0
    %625 = vmatpush1.msra.mxu0 0.0
    %626 = vmatprep.subr.mxu0 0.0
    %627 = vmatpush1.msra.mxu0 0.0
    %628 = vmatprep.subr.mxu0 0.0
    %629 = vmatpush1.msra.mxu0 0.0
    %630 = vmatprep.subr.mxu0 0.0
    %631 = vmatpush1.msra.mxu0 0.0
    %632 = vmatprep.subr.mxu0 0.0
    %633 = vmatpush1.msra.mxu0 0.0
    %634 = vmatprep.subr.mxu0 0.0
    %635 = vmatpush1.msra.mxu0 0.0
    %636 = vmatprep.subr.mxu0 0.0
    %637 = vmatpush1.msra.mxu0 0.0
    %638 = vmatprep.subr.mxu0 0.0
    %639 = vmatpush1.msra.mxu0 0.0
    %640 = vmatprep.subr.mxu0 0.0
    %641 = vmatpush1.msra.mxu0 0.0
    %642 = vmatprep.subr.mxu0 0.0
    %643 = vmatpush1.msra.mxu0 0.0
    %644 = vmatprep.subr.mxu0 0.0
    %645 = vmatpush1.msra.mxu0 0.0
    %646 = vmatprep.mubr.f32.mxu0 0.0
    %647 = vmatmul.mubr.f32.gmra.mrb[0].mxu0 %v233
    %v648 = vpop.f32.mrb[0].mxu0
    %v649 = vadd.f32 %v581, %v648
    %v650 = vpop.f32.mrb[0].mxu0
    %651 = vmatprep.mubr.f32.mxu0 0.0
    %652 = vmatmul.mubr.f32.gmra.mrb[0].mxu0 %v236
    %v653 = vpop.f32.mrb[0].mxu0
    %v654 = vadd.f32 %v581, %v653
    %v655 = vpop.f32.mrb[0].mxu0
    %656 = vdwg.mxu0
    %s657 = sld [smem:[#allocation2 + $0x1]]
    %vm658 = vcmp.gt.f32.partialorder %v649, 0.0
    %vm659 = vcmp.gt.f32.partialorder %v654, 0.0
    %v660 = vstv %s657
    %v661 = vmul.f32 %v660, %v649
    %v662 = vmul.f32 %v660, %v654
    %v663 = vsel %vm658, %v649, %v661
    %v664 = vsel %vm659, %v654, %v662
    %665 = vmatprep.subr.mxu0 0.0
    %666 = vmatpush1.msra.mxu0 %v663
    %667 = vmatprep.subr.mxu0 0.0
    %668 = vmatpush1.msra.mxu0 %v664
    %669 = vmatprep.subr.mxu0 0.0
    %670 = vmatpush1.msra.mxu0 0.0
    %671 = vmatprep.subr.mxu0 0.0
    %672 = vmatpush1.msra.mxu0 0.0
    %673 = vmatprep.subr.mxu0 0.0
    %674 = vmatpush1.msra.mxu0 0.0
    %675 = vmatprep.subr.mxu0 0.0
    %676 = vmatpush1.msra.mxu0 0.0
    %677 = vmatprep.subr.mxu0 0.0
    %678 = vmatpush1.msra.mxu0 0.0
    %679 = vmatprep.subr.mxu0 0.0
    %680 = vmatpush1.msra.mxu0 0.0
    %681 = vmatprep.subr.mxu0 0.0
    %682 = vmatpush1.msra.mxu0 0.0
    %683 = vmatprep.subr.mxu0 0.0
    %684 = vmatpush1.msra.mxu0 0.0
    %685 = vmatprep.subr.mxu0 0.0
    %686 = vmatpush1.msra.mxu0 0.0
    %687 = vmatprep.subr.mxu0 0.0
    %688 = vmatpush1.msra.mxu0 0.0
    %689 = vmatprep.subr.mxu0 0.0
    %690 = vmatpush1.msra.mxu0 0.0
    %691 = vmatprep.subr.mxu0 0.0
    %692 = vmatpush1.msra.mxu0 0.0
    %693 = vmatprep.subr.mxu0 0.0
    %694 = vmatpush1.msra.mxu0 0.0
    %695 = vmatprep.subr.mxu0 0.0
    %696 = vmatpush1.msra.mxu0 0.0
    %697 = vmatprep.subr.mxu0 0.0
    %698 = vmatpush1.msra.mxu0 0.0
    %699 = vmatprep.subr.mxu0 0.0
    %700 = vmatpush1.msra.mxu0 0.0
    %701 = vmatprep.subr.mxu0 0.0
    %702 = vmatpush1.msra.mxu0 0.0
    %703 = vmatprep.subr.mxu0 0.0
    %704 = vmatpush1.msra.mxu0 0.0
    %705 = vmatprep.subr.mxu0 0.0
    %706 = vmatpush1.msra.mxu0 0.0
    %707 = vmatprep.subr.mxu0 0.0
    %708 = vmatpush1.msra.mxu0 0.0
    %709 = vmatprep.subr.mxu0 0.0
    %710 = vmatpush1.msra.mxu0 0.0
    %711 = vmatprep.subr.mxu0 0.0
    %712 = vmatpush1.msra.mxu0 0.0
    %713 = vmatprep.subr.mxu0 0.0
    %714 = vmatpush1.msra.mxu0 0.0
    %715 = vmatprep.subr.mxu0 0.0
    %716 = vmatpush1.msra.mxu0 0.0
    %717 = vmatprep.subr.mxu0 0.0
    %718 = vmatpush1.msra.mxu0 0.0
    %719 = vmatprep.subr.mxu0 0.0
    %720 = vmatpush1.msra.mxu0 0.0
    %721 = vmatprep.subr.mxu0 0.0
    %722 = vmatpush1.msra.mxu0 0.0
    %723 = vmatprep.subr.mxu0 0.0
    %724 = vmatpush1.msra.mxu0 0.0
    %725 = vmatprep.subr.mxu0 0.0
    %726 = vmatpush1.msra.mxu0 0.0
    %727 = vmatprep.subr.mxu0 0.0
    %728 = vmatpush1.msra.mxu0 0.0
    %729 = vmatprep.mubr.f32.mxu0 0.0
    %730 = vmatmul.mubr.f32.gmra.mrb[0].mxu0 %v322
    %v731 = vpop.f32.mrb[0].mxu0
    %v732 = vadd.f32 0.0, %v731
    %v733 = vpop.f32.mrb[0].mxu0
    %734 = vdwg.mxu0
    %v735 = vmul.f32 %v732, 0.0625
    %v736 = vlaneseq
    %v737 = vshrl.u32 %v736, 7
    %v738 = vsub.s32 0, %v737
    %v739 = vrot.slane %v735, %v738
    %v740 = vsub.f32 %v663, %v739
    %v741 = vsub.f32 %v664, %v739
    %v742 = vmul.f32 %v740, %v740
    %v743 = vmul.f32 %v741, %v741
    %744 = vmatprep.subr.mxu0 0.0
    %745 = vmatpush1.msra.mxu0 %v742
    %746 = vmatprep.subr.mxu0 0.0
    %747 = vmatpush1.msra.mxu0 %v743
    %748 = vmatprep.subr.mxu0 0.0
    %749 = vmatpush1.msra.mxu0 0.0
    %750 = vmatprep.subr.mxu0 0.0
    %751 = vmatpush1.msra.mxu0 0.0
    %752 = vmatprep.subr.mxu0 0.0
    %753 = vmatpush1.msra.mxu0 0.0
    %754 = vmatprep.subr.mxu0 0.0
    %755 = vmatpush1.msra.mxu0 0.0
    %756 = vmatprep.subr.mxu0 0.0
    %757 = vmatpush1.msra.mxu0 0.0
    %758 = vmatprep.subr.mxu0 0.0
    %759 = vmatpush1.msra.mxu0 0.0
    %760 = vmatprep.subr.mxu0 0.0
    %761 = vmatpush1.msra.mxu0 0.0
    %762 = vmatprep.subr.mxu0 0.0
    %763 = vmatpush1.msra.mxu0 0.0
    %764 = vmatprep.subr.mxu0 0.0
    %765 = vmatpush1.msra.mxu0 0.0
    %766 = vmatprep.subr.mxu0 0.0
    %767 = vmatpush1.msra.mxu0 0.0
    %768 = vmatprep.subr.mxu0 0.0
    %769 = vmatpush1.msra.mxu0 0.0
    %770 = vmatprep.subr.mxu0 0.0
    %771 = vmatpush1.msra.mxu0 0.0
    %772 = vmatprep.subr.mxu0 0.0
    %773 = vmatpush1.msra.mxu0 0.0
    %774 = vmatprep.subr.mxu0 0.0
    %775 = vmatpush1.msra.mxu0 0.0
    %776 = vmatprep.subr.mxu0 0.0
    %777 = vmatpush1.msra.mxu0 0.0
    %778 = vmatprep.subr.mxu0 0.0
    %779 = vmatpush1.msra.mxu0 0.0
    %780 = vmatprep.subr.mxu0 0.0
    %781 = vmatpush1.msra.mxu0 0.0
    %782 = vmatprep.subr.mxu0 0.0
    %783 = vmatpush1.msra.mxu0 0.0
    %784 = vmatprep.subr.mxu0 0.0
    %785 = vmatpush1.msra.mxu0 0.0
    %786 = vmatprep.subr.mxu0 0.0
    %787 = vmatpush1.msra.mxu0 0.0
    %788 = vmatprep.subr.mxu0 0.0
    %789 = vmatpush1.msra.mxu0 0.0
    %790 = vmatprep.subr.mxu0 0.0
    %791 = vmatpush1.msra.mxu0 0.0
    %792 = vmatprep.subr.mxu0 0.0
    %793 = vmatpush1.msra.mxu0 0.0
    %794 = vmatprep.subr.mxu0 0.0
    %795 = vmatpush1.msra.mxu0 0.0
    %796 = vmatprep.subr.mxu0 0.0
    %797 = vmatpush1.msra.mxu0 0.0
    %798 = vmatprep.subr.mxu0 0.0
    %799 = vmatpush1.msra.mxu0 0.0
    %800 = vmatprep.subr.mxu0 0.0
    %801 = vmatpush1.msra.mxu0 0.0
    %802 = vmatprep.subr.mxu0 0.0
    %803 = vmatpush1.msra.mxu0 0.0
    %804 = vmatprep.subr.mxu0 0.0
    %805 = vmatpush1.msra.mxu0 0.0
    %806 = vmatprep.subr.mxu0 0.0
    %807 = vmatpush1.msra.mxu0 0.0
    %808 = vmatprep.mubr.f32.mxu0 0.0
    %809 = vmatmul.mubr.f32.gmra.mrb[0].mxu0 %v322
    %v810 = vpop.f32.mrb[0].mxu0
    %v811 = vadd.f32 0.0, %v810
    %v812 = vpop.f32.mrb[0].mxu0
    %813 = vdwg.mxu0
    %v814 = vmul.f32 %v811, 0.0625
    %v815 = vadd.f32 %v814, 1e-05
    %v816 = vrsqrt.pop %v815
    %v817 = vld [vmem:[#allocation10 + $0x1] sm:$0x1]
    %v818 = vmul.f32 %v816, %v817
    %v819 = vlaneseq
    %v820 = vshrl.u32 %v819, 7
    %v821 = vsub.s32 0, %v820
    %v822 = vrot.slane %v818, %v821
    %v823 = vmul.f32 %v740, %v822
    %v824 = vmul.f32 %v741, %v822
    %v825 = vld [vmem:[#allocation12 + $0x1] sm:$0x1]
    %v826 = vlaneseq
    %v827 = vshrl.u32 %v826, 7
    %v828 = vsub.s32 0, %v827
    %v829 = vrot.slane %v825, %v828
    %v830 = vadd.f32 %v823, %v829
    %v831 = vadd.f32 %v824, %v829
    %s832 = scalar_lea.vmem [#allocation9], 64
    %v833 = vld [vmem:[%s832] sm:$0xff]
    %v834 = vld [vmem:[%s832 + $0x8] sm:$0xff]
    %v835 = vld [vmem:[%s832 + $0x10] sm:$0xff]
    %v836 = vld [vmem:[%s832 + $0x18] sm:$0xff]
    %v838 = vsel %vm136, %v830, 0
    %v841 = vsel %vm136, %v831, 0
    %843 = vmatprep.subr.mxu0 0.0
    %844 = vmatpush1.msra.mxu0 %v833
    %845 = vmatprep.subr.mxu0 0.0
    %846 = vmatpush1.msra.mxu0 %v834
    %847 = vmatprep.subr.mxu0 0.0
    %848 = vmatpush1.msra.mxu0 %v835
    %849 = vmatprep.subr.mxu0 0.0
    %850 = vmatpush1.msra.mxu0 %v836
    %851 = vmatprep.subr.mxu0 0.0
    %852 = vmatpush1.msra.mxu0 0.0
    %853 = vmatprep.subr.mxu0 0.0
    %854 = vmatpush1.msra.mxu0 0.0
    %855 = vmatprep.subr.mxu0 0.0
    %856 = vmatpush1.msra.mxu0 0.0
    %857 = vmatprep.subr.mxu0 0.0
    %858 = vmatpush1.msra.mxu0 0.0
    %859 = vmatprep.subr.mxu0 0.0
    %860 = vmatpush1.msra.mxu0 0.0
    %861 = vmatprep.subr.mxu0 0.0
    %862 = vmatpush1.msra.mxu0 0.0
    %863 = vmatprep.subr.mxu0 0.0
    %864 = vmatpush1.msra.mxu0 0.0
    %865 = vmatprep.subr.mxu0 0.0
    %866 = vmatpush1.msra.mxu0 0.0
    %867 = vmatprep.subr.mxu0 0.0
    %868 = vmatpush1.msra.mxu0 0.0
    %869 = vmatprep.subr.mxu0 0.0
    %870 = vmatpush1.msra.mxu0 0.0
    %871 = vmatprep.subr.mxu0 0.0
    %872 = vmatpush1.msra.mxu0 0.0
    %873 = vmatprep.subr.mxu0 0.0
    %874 = vmatpush1.msra.mxu0 0.0
    %875 = vmatprep.subr.mxu0 0.0
    %876 = vmatpush1.msra.mxu0 0.0
    %877 = vmatprep.subr.mxu0 0.0
    %878 = vmatpush1.msra.mxu0 0.0
    %879 = vmatprep.subr.mxu0 0.0
    %880 = vmatpush1.msra.mxu0 0.0
    %881 = vmatprep.subr.mxu0 0.0
    %882 = vmatpush1.msra.mxu0 0.0
    %883 = vmatprep.subr.mxu0 0.0
    %884 = vmatpush1.msra.mxu0 0.0
    %885 = vmatprep.subr.mxu0 0.0
    %886 = vmatpush1.msra.mxu0 0.0
    %887 = vmatprep.subr.mxu0 0.0
    %888 = vmatpush1.msra.mxu0 0.0
    %889 = vmatprep.subr.mxu0 0.0
    %890 = vmatpush1.msra.mxu0 0.0
    %891 = vmatprep.subr.mxu0 0.0
    %892 = vmatpush1.msra.mxu0 0.0
    %893 = vmatprep.subr.mxu0 0.0
    %894 = vmatpush1.msra.mxu0 0.0
    %895 = vmatprep.subr.mxu0 0.0
    %896 = vmatpush1.msra.mxu0 0.0
    %897 = vmatprep.subr.mxu0 0.0
    %898 = vmatpush1.msra.mxu0 0.0
    %899 = vmatprep.subr.mxu0 0.0
    %900 = vmatpush1.msra.mxu0 0.0
    %901 = vmatprep.subr.mxu0 0.0
    %902 = vmatpush1.msra.mxu0 0.0
    %903 = vmatprep.subr.mxu0 0.0
    %904 = vmatpush1.msra.mxu0 0.0
    %905 = vmatprep.subr.mxu0 0.0
    %906 = vmatpush1.msra.mxu0 0.0
    %907 = vmatprep.mubr.f32.mxu0 0.0
    %908 = vmatmul.mubr.f32.gmra.mrb[0].mxu0 %v838
    %v909 = vpop.f32.mrb[0].mxu0
    %v910 = vadd.f32 0.0, %v909
    %v911 = vpop.f32.mrb[0].mxu0
    %912 = vmatprep.mubr.f32.mxu0 0.0
    %913 = vmatmul.mubr.f32.gmra.mrb[0].mxu0 %v841
    %v914 = vpop.f32.mrb[0].mxu0
    %v915 = vadd.f32 0.0, %v914
    %v916 = vpop.f32.mrb[0].mxu0
    %917 = vdwg.mxu0
    %v918 = vld [vmem:[%s6 + $0x2] sm:$0x1]
    %v919 = vlaneseq
    %v920 = vshrl.u32 %v919, 7
    %v921 = vsub.s32 0, %v920
    %v922 = vrot.slane %v918, %v921
    %923 = vmatprep.subr.mxu0 0.0
    %924 = vmatpush1.msra.mxu0 %v910
    %925 = vmatprep.subr.mxu0 0.0
    %926 = vmatpush1.msra.mxu0 %v915
    %927 = vmatprep.subr.mxu0 0.0
    %928 = vmatpush1.msra.mxu0 0.0
    %929 = vmatprep.subr.mxu0 0.0
    %930 = vmatpush1.msra.mxu0 0.0
    %931 = vmatprep.subr.mxu0 0.0
    %932 = vmatpush1.msra.mxu0 0.0
    %933 = vmatprep.subr.mxu0 0.0
    %934 = vmatpush1.msra.mxu0 0.0
    %935 = vmatprep.subr.mxu0 0.0
    %936 = vmatpush1.msra.mxu0 0.0
    %937 = vmatprep.subr.mxu0 0.0
    %938 = vmatpush1.msra.mxu0 0.0
    %939 = vmatprep.subr.mxu0 0.0
    %940 = vmatpush1.msra.mxu0 0.0
    %941 = vmatprep.subr.mxu0 0.0
    %942 = vmatpush1.msra.mxu0 0.0
    %943 = vmatprep.subr.mxu0 0.0
    %944 = vmatpush1.msra.mxu0 0.0
    %945 = vmatprep.subr.mxu0 0.0
    %946 = vmatpush1.msra.mxu0 0.0
    %947 = vmatprep.subr.mxu0 0.0
    %948 = vmatpush1.msra.mxu0 0.0
    %949 = vmatprep.subr.mxu0 0.0
    %950 = vmatpush1.msra.mxu0 0.0
    %951 = vmatprep.subr.mxu0 0.0
    %952 = vmatpush1.msra.mxu0 0.0
    %953 = vmatprep.subr.mxu0 0.0
    %954 = vmatpush1.msra.mxu0 0.0
    %955 = vmatprep.subr.mxu0 0.0
    %956 = vmatpush1.msra.mxu0 0.0
    %957 = vmatprep.subr.mxu0 0.0
    %958 = vmatpush1.msra.mxu0 0.0
    %959 = vmatprep.subr.mxu0 0.0
    %960 = vmatpush1.msra.mxu0 0.0
    %961 = vmatprep.subr.mxu0 0.0
    %962 = vmatpush1.msra.mxu0 0.0
    %963 = vmatprep.subr.mxu0 0.0
    %964 = vmatpush1.msra.mxu0 0.0
    %965 = vmatprep.subr.mxu0 0.0
    %966 = vmatpush1.msra.mxu0 0.0
    %967 = vmatprep.subr.mxu0 0.0
    %968 = vmatpush1.msra.mxu0 0.0
    %969 = vmatprep.subr.mxu0 0.0
    %970 = vmatpush1.msra.mxu0 0.0
    %971 = vmatprep.subr.mxu0 0.0
    %972 = vmatpush1.msra.mxu0 0.0
    %973 = vmatprep.subr.mxu0 0.0
    %974 = vmatpush1.msra.mxu0 0.0
    %975 = vmatprep.subr.mxu0 0.0
    %976 = vmatpush1.msra.mxu0 0.0
    %977 = vmatprep.subr.mxu0 0.0
    %978 = vmatpush1.msra.mxu0 0.0
    %979 = vmatprep.subr.mxu0 0.0
    %980 = vmatpush1.msra.mxu0 0.0
    %981 = vmatprep.subr.mxu0 0.0
    %982 = vmatpush1.msra.mxu0 0.0
    %983 = vmatprep.subr.mxu0 0.0
    %984 = vmatpush1.msra.mxu0 0.0
    %985 = vmatprep.subr.mxu0 0.0
    %986 = vmatpush1.msra.mxu0 0.0
    %987 = vmatprep.mubr.f32.mxu0 0.0
    %988 = vmatmul.mubr.f32.gmra.mrb[0].mxu0 %v233
    %v989 = vpop.f32.mrb[0].mxu0
    %v990 = vadd.f32 %v922, %v989
    %v991 = vpop.f32.mrb[0].mxu0
    %992 = vmatprep.mubr.f32.mxu0 0.0
    %993 = vmatmul.mubr.f32.gmra.mrb[0].mxu0 %v236
    %v994 = vpop.f32.mrb[0].mxu0
    %v995 = vadd.f32 %v922, %v994
    %v996 = vpop.f32.mrb[0].mxu0
    %997 = vdwg.mxu0
    %s998 = sld [smem:[#allocation2 + $0x2]]
    %vm999 = vcmp.gt.f32.partialorder %v990, 0.0
    %vm1000 = vcmp.gt.f32.partialorder %v995, 0.0
    %v1001 = vstv %s998
    %v1002 = vmul.f32 %v1001, %v990
    %v1003 = vmul.f32 %v1001, %v995
    %v1004 = vsel %vm999, %v990, %v1002
    %v1005 = vsel %vm1000, %v995, %v1003
    %1006 = vmatprep.subr.mxu0 0.0
    %1007 = vmatpush1.msra.mxu0 %v1004
    %1008 = vmatprep.subr.mxu0 0.0
    %1009 = vmatpush1.msra.mxu0 %v1005
    %1010 = vmatprep.subr.mxu0 0.0
    %1011 = vmatpush1.msra.mxu0 0.0
    %1012 = vmatprep.subr.mxu0 0.0
    %1013 = vmatpush1.msra.mxu0 0.0
    %1014 = vmatprep.subr.mxu0 0.0
    %1015 = vmatpush1.msra.mxu0 0.0
    %1016 = vmatprep.subr.mxu0 0.0
    %1017 = vmatpush1.msra.mxu0 0.0
    %1018 = vmatprep.subr.mxu0 0.0
    %1019 = vmatpush1.msra.mxu0 0.0
    %1020 = vmatprep.subr.mxu0 0.0
    %1021 = vmatpush1.msra.mxu0 0.0
    %1022 = vmatprep.subr.mxu0 0.0
    %1023 = vmatpush1.msra.mxu0 0.0
    %1024 = vmatprep.subr.mxu0 0.0
    %1025 = vmatpush1.msra.mxu0 0.0
    %1026 = vmatprep.subr.mxu0 0.0
    %1027 = vmatpush1.msra.mxu0 0.0
    %1028 = vmatprep.subr.mxu0 0.0
    %1029 = vmatpush1.msra.mxu0 0.0
    %1030 = vmatprep.subr.mxu0 0.0
    %1031 = vmatpush1.msra.mxu0 0.0
    %1032 = vmatprep.subr.mxu0 0.0
    %1033 = vmatpush1.msra.mxu0 0.0
    %1034 = vmatprep.subr.mxu0 0.0
    %1035 = vmatpush1.msra.mxu0 0.0
    %1036 = vmatprep.subr.mxu0 0.0
    %1037 = vmatpush1.msra.mxu0 0.0
    %1038 = vmatprep.subr.mxu0 0.0
    %1039 = vmatpush1.msra.mxu0 0.0
    %1040 = vmatprep.subr.mxu0 0.0
    %1041 = vmatpush1.msra.mxu0 0.0
    %1042 = vmatprep.subr.mxu0 0.0
    %1043 = vmatpush1.msra.mxu0 0.0
    %1044 = vmatprep.subr.mxu0 0.0
    %1045 = vmatpush1.msra.mxu0 0.0
    %1046 = vmatprep.subr.mxu0 0.0
    %1047 = vmatpush1.msra.mxu0 0.0
    %1048 = vmatprep.subr.mxu0 0.0
    %1049 = vmatpush1.msra.mxu0 0.0
    %1050 = vmatprep.subr.mxu0 0.0
    %1051 = vmatpush1.msra.mxu0 0.0
    %1052 = vmatprep.subr.mxu0 0.0
    %1053 = vmatpush1.msra.mxu0 0.0
    %1054 = vmatprep.subr.mxu0 0.0
    %1055 = vmatpush1.msra.mxu0 0.0
    %1056 = vmatprep.subr.mxu0 0.0
    %1057 = vmatpush1.msra.mxu0 0.0
    %1058 = vmatprep.subr.mxu0 0.0
    %1059 = vmatpush1.msra.mxu0 0.0
    %1060 = vmatprep.subr.mxu0 0.0
    %1061 = vmatpush1.msra.mxu0 0.0
    %1062 = vmatprep.subr.mxu0 0.0
    %1063 = vmatpush1.msra.mxu0 0.0
    %1064 = vmatprep.subr.mxu0 0.0
    %1065 = vmatpush1.msra.mxu0 0.0
    %1066 = vmatprep.subr.mxu0 0.0
    %1067 = vmatpush1.msra.mxu0 0.0
    %1068 = vmatprep.subr.mxu0 0.0
    %1069 = vmatpush1.msra.mxu0 0.0
    %1070 = vmatprep.mubr.f32.mxu0 0.0
    %1071 = vmatmul.mubr.f32.gmra.mrb[0].mxu0 %v322
    %v1072 = vpop.f32.mrb[0].mxu0
    %v1073 = vadd.f32 0.0, %v1072
    %v1074 = vpop.f32.mrb[0].mxu0
    %1075 = vdwg.mxu0
    %v1076 = vmul.f32 %v1073, 0.0625
    %v1077 = vlaneseq
    %v1078 = vshrl.u32 %v1077, 7
    %v1079 = vsub.s32 0, %v1078
    %v1080 = vrot.slane %v1076, %v1079
    %v1081 = vsub.f32 %v1004, %v1080
    %v1082 = vsub.f32 %v1005, %v1080
    %v1083 = vmul.f32 %v1081, %v1081
    %v1084 = vmul.f32 %v1082, %v1082
    %1085 = vmatprep.subr.mxu0 0.0
    %1086 = vmatpush1.msra.mxu0 %v1083
    %1087 = vmatprep.subr.mxu0 0.0
    %1088 = vmatpush1.msra.mxu0 %v1084
    %1089 = vmatprep.subr.mxu0 0.0
    %1090 = vmatpush1.msra.mxu0 0.0
    %1091 = vmatprep.subr.mxu0 0.0
    %1092 = vmatpush1.msra.mxu0 0.0
    %1093 = vmatprep.subr.mxu0 0.0
    %1094 = vmatpush1.msra.mxu0 0.0
    %1095 = vmatprep.subr.mxu0 0.0
    %1096 = vmatpush1.msra.mxu0 0.0
    %1097 = vmatprep.subr.mxu0 0.0
    %1098 = vmatpush1.msra.mxu0 0.0
    %1099 = vmatprep.subr.mxu0 0.0
    %1100 = vmatpush1.msra.mxu0 0.0
    %1101 = vmatprep.subr.mxu0 0.0
    %1102 = vmatpush1.msra.mxu0 0.0
    %1103 = vmatprep.subr.mxu0 0.0
    %1104 = vmatpush1.msra.mxu0 0.0
    %1105 = vmatprep.subr.mxu0 0.0
    %1106 = vmatpush1.msra.mxu0 0.0
    %1107 = vmatprep.subr.mxu0 0.0
    %1108 = vmatpush1.msra.mxu0 0.0
    %1109 = vmatprep.subr.mxu0 0.0
    %1110 = vmatpush1.msra.mxu0 0.0
    %1111 = vmatprep.subr.mxu0 0.0
    %1112 = vmatpush1.msra.mxu0 0.0
    %1113 = vmatprep.subr.mxu0 0.0
    %1114 = vmatpush1.msra.mxu0 0.0
    %1115 = vmatprep.subr.mxu0 0.0
    %1116 = vmatpush1.msra.mxu0 0.0
    %1117 = vmatprep.subr.mxu0 0.0
    %1118 = vmatpush1.msra.mxu0 0.0
    %1119 = vmatprep.subr.mxu0 0.0
    %1120 = vmatpush1.msra.mxu0 0.0
    %1121 = vmatprep.subr.mxu0 0.0
    %1122 = vmatpush1.msra.mxu0 0.0
    %1123 = vmatprep.subr.mxu0 0.0
    %1124 = vmatpush1.msra.mxu0 0.0
    %1125 = vmatprep.subr.mxu0 0.0
    %1126 = vmatpush1.msra.mxu0 0.0
    %1127 = vmatprep.subr.mxu0 0.0
    %1128 = vmatpush1.msra.mxu0 0.0
    %1129 = vmatprep.subr.mxu0 0.0
    %1130 = vmatpush1.msra.mxu0 0.0
    %1131 = vmatprep.subr.mxu0 0.0
    %1132 = vmatpush1.msra.mxu0 0.0
    %1133 = vmatprep.subr.mxu0 0.0
    %1134 = vmatpush1.msra.mxu0 0.0
    %1135 = vmatprep.subr.mxu0 0.0
    %1136 = vmatpush1.msra.mxu0 0.0
    %1137 = vmatprep.subr.mxu0 0.0
    %1138 = vmatpush1.msra.mxu0 0.0
    %1139 = vmatprep.subr.mxu0 0.0
    %1140 = vmatpush1.msra.mxu0 0.0
    %1141 = vmatprep.subr.mxu0 0.0
    %1142 = vmatpush1.msra.mxu0 0.0
    %1143 = vmatprep.subr.mxu0 0.0
    %1144 = vmatpush1.msra.mxu0 0.0
    %1145 = vmatprep.subr.mxu0 0.0
    %1146 = vmatpush1.msra.mxu0 0.0
    %1147 = vmatprep.subr.mxu0 0.0
    %1148 = vmatpush1.msra.mxu0 0.0
    %1149 = vmatprep.mubr.f32.mxu0 0.0
    %1150 = vmatmul.mubr.f32.gmra.mrb[0].mxu0 %v322
    %v1151 = vpop.f32.mrb[0].mxu0
    %v1152 = vadd.f32 0.0, %v1151
    %v1153 = vpop.f32.mrb[0].mxu0
    %1154 = vdwg.mxu0
    %v1155 = vmul.f32 %v1152, 0.0625
    %v1156 = vadd.f32 %v1155, 1e-05
    %v1157 = vrsqrt.pop %v1156
    %v1158 = vld [vmem:[#allocation10 + $0x2] sm:$0x1]
    %v1159 = vmul.f32 %v1157, %v1158
    %v1160 = vlaneseq
    %v1161 = vshrl.u32 %v1160, 7
    %v1162 = vsub.s32 0, %v1161
    %v1163 = vrot.slane %v1159, %v1162
    %v1164 = vmul.f32 %v1081, %v1163
    %v1165 = vmul.f32 %v1082, %v1163
    %v1166 = vld [vmem:[#allocation12 + $0x2] sm:$0x1]
    %v1167 = vlaneseq
    %v1168 = vshrl.u32 %v1167, 7
    %v1169 = vsub.s32 0, %v1168
    %v1170 = vrot.slane %v1166, %v1169
    %v1171 = vadd.f32 %v1164, %v1170
    %v1172 = vadd.f32 %v1165, %v1170
    %s1173 = scalar_lea.vmem [#allocation9], 96
    %v1174 = vld [vmem:[%s1173] sm:$0xff]
    %v1175 = vld [vmem:[%s1173 + $0x8] sm:$0xff]
    %v1176 = vld [vmem:[%s1173 + $0x10] sm:$0xff]
    %v1177 = vld [vmem:[%s1173 + $0x18] sm:$0xff]
    %v1179 = vsel %vm136, %v1171, 0
    %v1182 = vsel %vm136, %v1172, 0
    %1184 = vmatprep.subr.mxu0 0.0
    %1185 = vmatpush1.msra.mxu0 %v1174
    %1186 = vmatprep.subr.mxu0 0.0
    %1187 = vmatpush1.msra.mxu0 %v1175
    %1188 = vmatprep.subr.mxu0 0.0
    %1189 = vmatpush1.msra.mxu0 %v1176
    %1190 = vmatprep.subr.mxu0 0.0
    %1191 = vmatpush1.msra.mxu0 %v1177
    %1192 = vmatprep.subr.mxu0 0.0
    %1193 = vmatpush1.msra.mxu0 0.0
    %1194 = vmatprep.subr.mxu0 0.0
    %1195 = vmatpush1.msra.mxu0 0.0
    %1196 = vmatprep.subr.mxu0 0.0
    %1197 = vmatpush1.msra.mxu0 0.0
    %1198 = vmatprep.subr.mxu0 0.0
    %1199 = vmatpush1.msra.mxu0 0.0
    %1200 = vmatprep.subr.mxu0 0.0
    %1201 = vmatpush1.msra.mxu0 0.0
    %1202 = vmatprep.subr.mxu0 0.0
    %1203 = vmatpush1.msra.mxu0 0.0
    %1204 = vmatprep.subr.mxu0 0.0
    %1205 = vmatpush1.msra.mxu0 0.0
    %1206 = vmatprep.subr.mxu0 0.0
    %1207 = vmatpush1.msra.mxu0 0.0
    %1208 = vmatprep.subr.mxu0 0.0
    %1209 = vmatpush1.msra.mxu0 0.0
    %1210 = vmatprep.subr.mxu0 0.0
    %1211 = vmatpush1.msra.mxu0 0.0
    %1212 = vmatprep.subr.mxu0 0.0
    %1213 = vmatpush1.msra.mxu0 0.0
    %1214 = vmatprep.subr.mxu0 0.0
    %1215 = vmatpush1.msra.mxu0 0.0
    %1216 = vmatprep.subr.mxu0 0.0
    %1217 = vmatpush1.msra.mxu0 0.0
    %1218 = vmatprep.subr.mxu0 0.0
    %1219 = vmatpush1.msra.mxu0 0.0
    %1220 = vmatprep.subr.mxu0 0.0
    %1221 = vmatpush1.msra.mxu0 0.0
    %1222 = vmatprep.subr.mxu0 0.0
    %1223 = vmatpush1.msra.mxu0 0.0
    %1224 = vmatprep.subr.mxu0 0.0
    %1225 = vmatpush1.msra.mxu0 0.0
    %1226 = vmatprep.subr.mxu0 0.0
    %1227 = vmatpush1.msra.mxu0 0.0
    %1228 = vmatprep.subr.mxu0 0.0
    %1229 = vmatpush1.msra.mxu0 0.0
    %1230 = vmatprep.subr.mxu0 0.0
    %1231 = vmatpush1.msra.mxu0 0.0
    %1232 = vmatprep.subr.mxu0 0.0
    %1233 = vmatpush1.msra.mxu0 0.0
    %1234 = vmatprep.subr.mxu0 0.0
    %1235 = vmatpush1.msra.mxu0 0.0
    %1236 = vmatprep.subr.mxu0 0.0
    %1237 = vmatpush1.msra.mxu0 0.0
    %1238 = vmatprep.subr.mxu0 0.0
    %1239 = vmatpush1.msra.mxu0 0.0
    %1240 = vmatprep.subr.mxu0 0.0
    %1241 = vmatpush1.msra.mxu0 0.0
    %1242 = vmatprep.subr.mxu0 0.0
    %1243 = vmatpush1.msra.mxu0 0.0
    %1244 = vmatprep.subr.mxu0 0.0
    %1245 = vmatpush1.msra.mxu0 0.0
    %1246 = vmatprep.subr.mxu0 0.0
    %1247 = vmatpush1.msra.mxu0 0.0
    %1248 = vmatprep.mubr.f32.mxu0 0.0
    %1249 = vmatmul.mubr.f32.gmra.mrb[0].mxu0 %v1179
    %v1250 = vpop.f32.mrb[0].mxu0
    %v1251 = vadd.f32 0.0, %v1250
    %v1252 = vpop.f32.mrb[0].mxu0
    %1253 = vmatprep.mubr.f32.mxu0 0.0
    %1254 = vmatmul.mubr.f32.gmra.mrb[0].mxu0 %v1182
    %v1255 = vpop.f32.mrb[0].mxu0
    %v1256 = vadd.f32 0.0, %v1255
    %v1257 = vpop.f32.mrb[0].mxu0
    %1258 = vdwg.mxu0
    %v1259 = vld [vmem:[%s6 + $0x3] sm:$0x1]
    %v1260 = vlaneseq
    %v1261 = vshrl.u32 %v1260, 7
    %v1262 = vsub.s32 0, %v1261
    %v1263 = vrot.slane %v1259, %v1262
    %1264 = vmatprep.subr.mxu0 0.0
    %1265 = vmatpush1.msra.mxu0 %v1251
    %1266 = vmatprep.subr.mxu0 0.0
    %1267 = vmatpush1.msra.mxu0 %v1256
    %1268 = vmatprep.subr.mxu0 0.0
    %1269 = vmatpush1.msra.mxu0 0.0
    %1270 = vmatprep.subr.mxu0 0.0
    %1271 = vmatpush1.msra.mxu0 0.0
    %1272 = vmatprep.subr.mxu0 0.0
    %1273 = vmatpush1.msra.mxu0 0.0
    %1274 = vmatprep.subr.mxu0 0.0
    %1275 = vmatpush1.msra.mxu0 0.0
    %1276 = vmatprep.subr.mxu0 0.0
    %1277 = vmatpush1.msra.mxu0 0.0
    %1278 = vmatprep.subr.mxu0 0.0
    %1279 = vmatpush1.msra.mxu0 0.0
    %1280 = vmatprep.subr.mxu0 0.0
    %1281 = vmatpush1.msra.mxu0 0.0
    %1282 = vmatprep.subr.mxu0 0.0
    %1283 = vmatpush1.msra.mxu0 0.0
    %1284 = vmatprep.subr.mxu0 0.0
    %1285 = vmatpush1.msra.mxu0 0.0
    %1286 = vmatprep.subr.mxu0 0.0
    %1287 = vmatpush1.msra.mxu0 0.0
    %1288 = vmatprep.subr.mxu0 0.0
    %1289 = vmatpush1.msra.mxu0 0.0
    %1290 = vmatprep.subr.mxu0 0.0
    %1291 = vmatpush1.msra.mxu0 0.0
    %1292 = vmatprep.subr.mxu0 0.0
    %1293 = vmatpush1.msra.mxu0 0.0
    %1294 = vmatprep.subr.mxu0 0.0
    %1295 = vmatpush1.msra.mxu0 0.0
    %1296 = vmatprep.subr.mxu0 0.0
    %1297 = vmatpush1.msra.mxu0 0.0
    %1298 = vmatprep.subr.mxu0 0.0
    %1299 = vmatpush1.msra.mxu0 0.0
    %1300 = vmatprep.subr.mxu0 0.0
    %1301 = vmatpush1.msra.mxu0 0.0
    %1302 = vmatprep.subr.mxu0 0.0
    %1303 = vmatpush1.msra.mxu0 0.0
    %1304 = vmatprep.subr.mxu0 0.0
    %1305 = vmatpush1.msra.mxu0 0.0
    %1306 = vmatprep.subr.mxu0 0.0
    %1307 = vmatpush1.msra.mxu0 0.0
    %1308 = vmatprep.subr.mxu0 0.0
    %1309 = vmatpush1.msra.mxu0 0.0
    %1310 = vmatprep.subr.mxu0 0.0
    %1311 = vmatpush1.msra.mxu0 0.0
    %1312 = vmatprep.subr.mxu0 0.0
    %1313 = vmatpush1.msra.mxu0 0.0
    %1314 = vmatprep.subr.mxu0 0.0
    %1315 = vmatpush1.msra.mxu0 0.0
    %1316 = vmatprep.subr.mxu0 0.0
    %1317 = vmatpush1.msra.mxu0 0.0
    %1318 = vmatprep.subr.mxu0 0.0
    %1319 = vmatpush1.msra.mxu0 0.0
    %1320 = vmatprep.subr.mxu0 0.0
    %1321 = vmatpush1.msra.mxu0 0.0
    %1322 = vmatprep.subr.mxu0 0.0
    %1323 = vmatpush1.msra.mxu0 0.0
    %1324 = vmatprep.subr.mxu0 0.0
    %1325 = vmatpush1.msra.mxu0 0.0
    %1326 = vmatprep.subr.mxu0 0.0
    %1327 = vmatpush1.msra.mxu0 0.0
    %1328 = vmatprep.mubr.f32.mxu0 0.0
    %1329 = vmatmul.mubr.f32.gmra.mrb[0].mxu0 %v233
    %v1330 = vpop.f32.mrb[0].mxu0
    %v1331 = vadd.f32 %v1263, %v1330
    %v1332 = vpop.f32.mrb[0].mxu0
    %1333 = vmatprep.mubr.f32.mxu0 0.0
    %1334 = vmatmul.mubr.f32.gmra.mrb[0].mxu0 %v236
    %v1335 = vpop.f32.mrb[0].mxu0
    %v1336 = vadd.f32 %v1263, %v1335
    %v1337 = vpop.f32.mrb[0].mxu0
    %1338 = vdwg.mxu0
    %s1339 = sld [smem:[#allocation2 + $0x3]]
    %vm1340 = vcmp.gt.f32.partialorder %v1331, 0.0
    %vm1341 = vcmp.gt.f32.partialorder %v1336, 0.0
    %v1342 = vstv %s1339
    %v1343 = vmul.f32 %v1342, %v1331
    %v1344 = vmul.f32 %v1342, %v1336
    %v1345 = vsel %vm1340, %v1331, %v1343
    %v1346 = vsel %vm1341, %v1336, %v1344
    %1347 = vmatprep.subr.mxu0 0.0
    %1348 = vmatpush1.msra.mxu0 %v1345
    %1349 = vmatprep.subr.mxu0 0.0
    %1350 = vmatpush1.msra.mxu0 %v1346
    %1351 = vmatprep.subr.mxu0 0.0
    %1352 = vmatpush1.msra.mxu0 0.0
    %1353 = vmatprep.subr.mxu0 0.0
    %1354 = vmatpush1.msra.mxu0 0.0
    %1355 = vmatprep.subr.mxu0 0.0
    %1356 = vmatpush1.msra.mxu0 0.0
    %1357 = vmatprep.subr.mxu0 0.0
    %1358 = vmatpush1.msra.mxu0 0.0
    %1359 = vmatprep.subr.mxu0 0.0
    %1360 = vmatpush1.msra.mxu0 0.0
    %1361 = vmatprep.subr.mxu0 0.0
    %1362 = vmatpush1.msra.mxu0 0.0
    %1363 = vmatprep.subr.mxu0 0.0
    %1364 = vmatpush1.msra.mxu0 0.0
    %1365 = vmatprep.subr.mxu0 0.0
    %1366 = vmatpush1.msra.mxu0 0.0
    %1367 = vmatprep.subr.mxu0 0.0
    %1368 = vmatpush1.msra.mxu0 0.0
    %1369 = vmatprep.subr.mxu0 0.0
    %1370 = vmatpush1.msra.mxu0 0.0
    %1371 = vmatprep.subr.mxu0 0.0
    %1372 = vmatpush1.msra.mxu0 0.0
    %1373 = vmatprep.subr.mxu0 0.0
    %1374 = vmatpush1.msra.mxu0 0.0
    %1375 = vmatprep.subr.mxu0 0.0
    %1376 = vmatpush1.msra.mxu0 0.0
    %1377 = vmatprep.subr.mxu0 0.0
    %1378 = vmatpush1.msra.mxu0 0.0
    %1379 = vmatprep.subr.mxu0 0.0
    %1380 = vmatpush1.msra.mxu0 0.0
    %1381 = vmatprep.subr.mxu0 0.0
    %1382 = vmatpush1.msra.mxu0 0.0
    %1383 = vmatprep.subr.mxu0 0.0
    %1384 = vmatpush1.msra.mxu0 0.0
    %1385 = vmatprep.subr.mxu0 0.0
    %1386 = vmatpush1.msra.mxu0 0.0
    %1387 = vmatprep.subr.mxu0 0.0
    %1388 = vmatpush1.msra.mxu0 0.0
    %1389 = vmatprep.subr.mxu0 0.0
    %1390 = vmatpush1.msra.mxu0 0.0
    %1391 = vmatprep.subr.mxu0 0.0
    %1392 = vmatpush1.msra.mxu0 0.0
    %1393 = vmatprep.subr.mxu0 0.0
    %1394 = vmatpush1.msra.mxu0 0.0
    %1395 = vmatprep.subr.mxu0 0.0
    %1396 = vmatpush1.msra.mxu0 0.0
    %1397 = vmatprep.subr.mxu0 0.0
    %1398 = vmatpush1.msra.mxu0 0.0
    %1399 = vmatprep.subr.mxu0 0.0
    %1400 = vmatpush1.msra.mxu0 0.0
    %1401 = vmatprep.subr.mxu0 0.0
    %1402 = vmatpush1.msra.mxu0 0.0
    %1403 = vmatprep.subr.mxu0 0.0
    %1404 = vmatpush1.msra.mxu0 0.0
    %1405 = vmatprep.subr.mxu0 0.0
    %1406 = vmatpush1.msra.mxu0 0.0
    %1407 = vmatprep.subr.mxu0 0.0
    %1408 = vmatpush1.msra.mxu0 0.0
    %1409 = vmatprep.subr.mxu0 0.0
    %1410 = vmatpush1.msra.mxu0 0.0
    %1411 = vmatprep.mubr.f32.mxu0 0.0
    %1412 = vmatmul.mubr.f32.gmra.mrb[0].mxu0 %v322
    %v1413 = vpop.f32.mrb[0].mxu0
    %v1414 = vadd.f32 0.0, %v1413
    %v1415 = vpop.f32.mrb[0].mxu0
    %1416 = vdwg.mxu0
    %v1417 = vmul.f32 %v1414, 0.0625
    %v1418 = vlaneseq
    %v1419 = vshrl.u32 %v1418, 7
    %v1420 = vsub.s32 0, %v1419
    %v1421 = vrot.slane %v1417, %v1420
    %v1422 = vsub.f32 %v1345, %v1421
    %v1423 = vsub.f32 %v1346, %v1421
    %v1424 = vmul.f32 %v1422, %v1422
    %v1425 = vmul.f32 %v1423, %v1423
    %1426 = vmatprep.subr.mxu0 0.0
    %1427 = vmatpush1.msra.mxu0 %v1424
    %1428 = vmatprep.subr.mxu0 0.0
    %1429 = vmatpush1.msra.mxu0 %v1425
    %1430 = vmatprep.subr.mxu0 0.0
    %1431 = vmatpush1.msra.mxu0 0.0
    %1432 = vmatprep.subr.mxu0 0.0
    %1433 = vmatpush1.msra.mxu0 0.0
    %1434 = vmatprep.subr.mxu0 0.0
    %1435 = vmatpush1.msra.mxu0 0.0
    %1436 = vmatprep.subr.mxu0 0.0
    %1437 = vmatpush1.msra.mxu0 0.0
    %1438 = vmatprep.subr.mxu0 0.0
    %1439 = vmatpush1.msra.mxu0 0.0
    %1440 = vmatprep.subr.mxu0 0.0
    %1441 = vmatpush1.msra.mxu0 0.0
    %1442 = vmatprep.subr.mxu0 0.0
    %1443 = vmatpush1.msra.mxu0 0.0
    %1444 = vmatprep.subr.mxu0 0.0
    %1445 = vmatpush1.msra.mxu0 0.0
    %1446 = vmatprep.subr.mxu0 0.0
    %1447 = vmatpush1.msra.mxu0 0.0
    %1448 = vmatprep.subr.mxu0 0.0
    %1449 = vmatpush1.msra.mxu0 0.0
    %1450 = vmatprep.subr.mxu0 0.0
    %1451 = vmatpush1.msra.mxu0 0.0
    %1452 = vmatprep.subr.mxu0 0.0
    %1453 = vmatpush1.msra.mxu0 0.0
    %1454 = vmatprep.subr.mxu0 0.0
    %1455 = vmatpush1.msra.mxu0 0.0
    %1456 = vmatprep.subr.mxu0 0.0
    %1457 = vmatpush1.msra.mxu0 0.0
    %1458 = vmatprep.subr.mxu0 0.0
    %1459 = vmatpush1.msra.mxu0 0.0
    %1460 = vmatprep.subr.mxu0 0.0
    %1461 = vmatpush1.msra.mxu0 0.0
    %1462 = vmatprep.subr.mxu0 0.0
    %1463 = vmatpush1.msra.mxu0 0.0
    %1464 = vmatprep.subr.mxu0 0.0
    %1465 = vmatpush1.msra.mxu0 0.0
    %1466 = vmatprep.subr.mxu0 0.0
    %1467 = vmatpush1.msra.mxu0 0.0
    %1468 = vmatprep.subr.mxu0 0.0
    %1469 = vmatpush1.msra.mxu0 0.0
    %1470 = vmatprep.subr.mxu0 0.0
    %1471 = vmatpush1.msra.mxu0 0.0
    %1472 = vmatprep.subr.mxu0 0.0
    %1473 = vmatpush1.msra.mxu0 0.0
    %1474 = vmatprep.subr.mxu0 0.0
    %1475 = vmatpush1.msra.mxu0 0.0
    %1476 = vmatprep.subr.mxu0 0.0
    %1477 = vmatpush1.msra.mxu0 0.0
    %1478 = vmatprep.subr.mxu0 0.0
    %1479 = vmatpush1.msra.mxu0 0.0
    %1480 = vmatprep.subr.mxu0 0.0
    %1481 = vmatpush1.msra.mxu0 0.0
    %1482 = vmatprep.subr.mxu0 0.0
    %1483 = vmatpush1.msra.mxu0 0.0
    %1484 = vmatprep.subr.mxu0 0.0
    %1485 = vmatpush1.msra.mxu0 0.0
    %1486 = vmatprep.subr.mxu0 0.0
    %1487 = vmatpush1.msra.mxu0 0.0
    %1488 = vmatprep.subr.mxu0 0.0
    %1489 = vmatpush1.msra.mxu0 0.0
    %1490 = vmatprep.mubr.f32.mxu0 0.0
    %1491 = vmatmul.mubr.f32.gmra.mrb[0].mxu0 %v322
    %v1492 = vpop.f32.mrb[0].mxu0
    %v1493 = vadd.f32 0.0, %v1492
    %v1494 = vpop.f32.mrb[0].mxu0
    %1495 = vdwg.mxu0
    %v1496 = vmul.f32 %v1493, 0.0625
    %v1497 = vadd.f32 %v1496, 1e-05
    %v1498 = vrsqrt.pop %v1497
    %v1499 = vld [vmem:[#allocation10 + $0x3] sm:$0x1]
    %v1500 = vmul.f32 %v1498, %v1499
    %v1501 = vlaneseq
    %v1502 = vshrl.u32 %v1501, 7
    %v1503 = vsub.s32 0, %v1502
    %v1504 = vrot.slane %v1500, %v1503
    %v1505 = vmul.f32 %v1422, %v1504
    %v1506 = vmul.f32 %v1423, %v1504
    %v1507 = vld [vmem:[#allocation12 + $0x3] sm:$0x1]
    %v1508 = vlaneseq
    %v1509 = vshrl.u32 %v1508, 7
    %v1510 = vsub.s32 0, %v1509
    %v1511 = vrot.slane %v1507, %v1510
    %v1512 = vadd.f32 %v1505, %v1511
    %v1513 = vadd.f32 %v1506, %v1511
    %s1514 = scalar_lea.vmem [#allocation9], 128
    %v1515 = vld [vmem:[%s1514] sm:$0xff]
    %v1516 = vld [vmem:[%s1514 + $0x8] sm:$0xff]
    %v1517 = vld [vmem:[%s1514 + $0x10] sm:$0xff]
    %v1518 = vld [vmem:[%s1514 + $0x18] sm:$0xff]
    %v1520 = vsel %vm136, %v1512, 0
    %v1523 = vsel %vm136, %v1513, 0
    %1525 = vmatprep.subr.mxu0 0.0
    %1526 = vmatpush1.msra.mxu0 %v1515
    %1527 = vmatprep.subr.mxu0 0.0
    %1528 = vmatpush1.msra.mxu0 %v1516
    %1529 = vmatprep.subr.mxu0 0.0
    %1530 = vmatpush1.msra.mxu0 %v1517
    %1531 = vmatprep.subr.mxu0 0.0
    %1532 = vmatpush1.msra.mxu0 %v1518
    %1533 = vmatprep.subr.mxu0 0.0
    %1534 = vmatpush1.msra.mxu0 0.0
    %1535 = vmatprep.subr.mxu0 0.0
    %1536 = vmatpush1.msra.mxu0 0.0
    %1537 = vmatprep.subr.mxu0 0.0
    %1538 = vmatpush1.msra.mxu0 0.0
    %1539 = vmatprep.subr.mxu0 0.0
    %1540 = vmatpush1.msra.mxu0 0.0
    %1541 = vmatprep.subr.mxu0 0.0
    %1542 = vmatpush1.msra.mxu0 0.0
    %1543 = vmatprep.subr.mxu0 0.0
    %1544 = vmatpush1.msra.mxu0 0.0
    %1545 = vmatprep.subr.mxu0 0.0
    %1546 = vmatpush1.msra.mxu0 0.0
    %1547 = vmatprep.subr.mxu0 0.0
    %1548 = vmatpush1.msra.mxu0 0.0
    %1549 = vmatprep.subr.mxu0 0.0
    %1550 = vmatpush1.msra.mxu0 0.0
    %1551 = vmatprep.subr.mxu0 0.0
    %1552 = vmatpush1.msra.mxu0 0.0
    %1553 = vmatprep.subr.mxu0 0.0
    %1554 = vmatpush1.msra.mxu0 0.0
    %1555 = vmatprep.subr.mxu0 0.0
    %1556 = vmatpush1.msra.mxu0 0.0
    %1557 = vmatprep.subr.mxu0 0.0
    %1558 = vmatpush1.msra.mxu0 0.0
    %1559 = vmatprep.subr.mxu0 0.0
    %1560 = vmatpush1.msra.mxu0 0.0
    %1561 = vmatprep.subr.mxu0 0.0
    %1562 = vmatpush1.msra.mxu0 0.0
    %1563 = vmatprep.subr.mxu0 0.0
    %1564 = vmatpush1.msra.mxu0 0.0
    %1565 = vmatprep.subr.mxu0 0.0
    %1566 = vmatpush1.msra.mxu0 0.0
    %1567 = vmatprep.subr.mxu0 0.0
    %1568 = vmatpush1.msra.mxu0 0.0
    %1569 = vmatprep.subr.mxu0 0.0
    %1570 = vmatpush1.msra.mxu0 0.0
    %1571 = vmatprep.subr.mxu0 0.0
    %1572 = vmatpush1.msra.mxu0 0.0
    %1573 = vmatprep.subr.mxu0 0.0
    %1574 = vmatpush1.msra.mxu0 0.0
    %1575 = vmatprep.subr.mxu0 0.0
    %1576 = vmatpush1.msra.mxu0 0.0
    %1577 = vmatprep.subr.mxu0 0.0
    %1578 = vmatpush1.msra.mxu0 0.0
    %1579 = vmatprep.subr.mxu0 0.0
    %1580 = vmatpush1.msra.mxu0 0.0
    %1581 = vmatprep.subr.mxu0 0.0
    %1582 = vmatpush1.msra.mxu0 0.0
    %1583 = vmatprep.subr.mxu0 0.0
    %1584 = vmatpush1.msra.mxu0 0.0
    %1585 = vmatprep.subr.mxu0 0.0
    %1586 = vmatpush1.msra.mxu0 0.0
    %1587 = vmatprep.subr.mxu0 0.0
    %1588 = vmatpush1.msra.mxu0 0.0
    %1589 = vmatprep.mubr.f32.mxu0 0.0
    %1590 = vmatmul.mubr.f32.gmra.mrb[0].mxu0 %v1520
    %v1591 = vpop.f32.mrb[0].mxu0
    %v1592 = vadd.f32 0.0, %v1591
    %v1593 = vpop.f32.mrb[0].mxu0
    %1594 = vmatprep.mubr.f32.mxu0 0.0
    %1595 = vmatmul.mubr.f32.gmra.mrb[0].mxu0 %v1523
    %v1596 = vpop.f32.mrb[0].mxu0
    %v1597 = vadd.f32 0.0, %v1596
    %v1598 = vpop.f32.mrb[0].mxu0
    %1599 = vdwg.mxu0
    %v1600 = vld [vmem:[%s6 + $0x4] sm:$0x1]
    %v1601 = vlaneseq
    %v1602 = vshrl.u32 %v1601, 7
    %v1603 = vsub.s32 0, %v1602
    %v1604 = vrot.slane %v1600, %v1603
    %1605 = vmatprep.subr.mxu0 0.0
    %1606 = vmatpush1.msra.mxu0 %v1592
    %1607 = vmatprep.subr.mxu0 0.0
    %1608 = vmatpush1.msra.mxu0 %v1597
    %1609 = vmatprep.subr.mxu0 0.0
    %1610 = vmatpush1.msra.mxu0 0.0
    %1611 = vmatprep.subr.mxu0 0.0
    %1612 = vmatpush1.msra.mxu0 0.0
    %1613 = vmatprep.subr.mxu0 0.0
    %1614 = vmatpush1.msra.mxu0 0.0
    %1615 = vmatprep.subr.mxu0 0.0
    %1616 = vmatpush1.msra.mxu0 0.0
    %1617 = vmatprep.subr.mxu0 0.0
    %1618 = vmatpush1.msra.mxu0 0.0
    %1619 = vmatprep.subr.mxu0 0.0
    %1620 = vmatpush1.msra.mxu0 0.0
    %1621 = vmatprep.subr.mxu0 0.0
    %1622 = vmatpush1.msra.mxu0 0.0
    %1623 = vmatprep.subr.mxu0 0.0
    %1624 = vmatpush1.msra.mxu0 0.0
    %1625 = vmatprep.subr.mxu0 0.0
    %1626 = vmatpush1.msra.mxu0 0.0
    %1627 = vmatprep.subr.mxu0 0.0
    %1628 = vmatpush1.msra.mxu0 0.0
    %1629 = vmatprep.subr.mxu0 0.0
    %1630 = vmatpush1.msra.mxu0 0.0
    %1631 = vmatprep.subr.mxu0 0.0
    %1632 = vmatpush1.msra.mxu0 0.0
    %1633 = vmatprep.subr.mxu0 0.0
    %1634 = vmatpush1.msra.mxu0 0.0
    %1635 = vmatprep.subr.mxu0 0.0
    %1636 = vmatpush1.msra.mxu0 0.0
    %1637 = vmatprep.subr.mxu0 0.0
    %1638 = vmatpush1.msra.mxu0 0.0
    %1639 = vmatprep.subr.mxu0 0.0
    %1640 = vmatpush1.msra.mxu0 0.0
    %1641 = vmatprep.subr.mxu0 0.0
    %1642 = vmatpush1.msra.mxu0 0.0
    %1643 = vmatprep.subr.mxu0 0.0
    %1644 = vmatpush1.msra.mxu0 0.0
    %1645 = vmatprep.subr.mxu0 0.0
    %1646 = vmatpush1.msra.mxu0 0.0
    %1647 = vmatprep.subr.mxu0 0.0
    %1648 = vmatpush1.msra.mxu0 0.0
    %1649 = vmatprep.subr.mxu0 0.0
    %1650 = vmatpush1.msra.mxu0 0.0
    %1651 = vmatprep.subr.mxu0 0.0
    %1652 = vmatpush1.msra.mxu0 0.0
    %1653 = vmatprep.subr.mxu0 0.0
    %1654 = vmatpush1.msra.mxu0 0.0
    %1655 = vmatprep.subr.mxu0 0.0
    %1656 = vmatpush1.msra.mxu0 0.0
    %1657 = vmatprep.subr.mxu0 0.0
    %1658 = vmatpush1.msra.mxu0 0.0
    %1659 = vmatprep.subr.mxu0 0.0
    %1660 = vmatpush1.msra.mxu0 0.0
    %1661 = vmatprep.subr.mxu0 0.0
    %1662 = vmatpush1.msra.mxu0 0.0
    %1663 = vmatprep.subr.mxu0 0.0
    %1664 = vmatpush1.msra.mxu0 0.0
    %1665 = vmatprep.subr.mxu0 0.0
    %1666 = vmatpush1.msra.mxu0 0.0
    %1667 = vmatprep.subr.mxu0 0.0
    %1668 = vmatpush1.msra.mxu0 0.0
    %1669 = vmatprep.mubr.f32.mxu0 0.0
    %1670 = vmatmul.mubr.f32.gmra.mrb[0].mxu0 %v233
    %v1671 = vpop.f32.mrb[0].mxu0
    %v1672 = vadd.f32 %v1604, %v1671
    %v1673 = vpop.f32.mrb[0].mxu0
    %1674 = vmatprep.mubr.f32.mxu0 0.0
    %1675 = vmatmul.mubr.f32.gmra.mrb[0].mxu0 %v236
    %v1676 = vpop.f32.mrb[0].mxu0
    %v1677 = vadd.f32 %v1604, %v1676
    %v1678 = vpop.f32.mrb[0].mxu0
    %1679 = vdwg.mxu0
    %s1680 = sld [smem:[#allocation2 + $0x4]]
    %vm1681 = vcmp.gt.f32.partialorder %v1672, 0.0
    %vm1682 = vcmp.gt.f32.partialorder %v1677, 0.0
    %v1683 = vstv %s1680
    %v1684 = vmul.f32 %v1683, %v1672
    %v1685 = vmul.f32 %v1683, %v1677
    %v1686 = vsel %vm1681, %v1672, %v1684
    %v1687 = vsel %vm1682, %v1677, %v1685
    %1688 = vmatprep.subr.mxu0 0.0
    %1689 = vmatpush1.msra.mxu0 %v1686
    %1690 = vmatprep.subr.mxu0 0.0
    %1691 = vmatpush1.msra.mxu0 %v1687
    %1692 = vmatprep.subr.mxu0 0.0
    %1693 = vmatpush1.msra.mxu0 0.0
    %1694 = vmatprep.subr.mxu0 0.0
    %1695 = vmatpush1.msra.mxu0 0.0
    %1696 = vmatprep.subr.mxu0 0.0
    %1697 = vmatpush1.msra.mxu0 0.0
    %1698 = vmatprep.subr.mxu0 0.0
    %1699 = vmatpush1.msra.mxu0 0.0
    %1700 = vmatprep.subr.mxu0 0.0
    %1701 = vmatpush1.msra.mxu0 0.0
    %1702 = vmatprep.subr.mxu0 0.0
    %1703 = vmatpush1.msra.mxu0 0.0
    %1704 = vmatprep.subr.mxu0 0.0
    %1705 = vmatpush1.msra.mxu0 0.0
    %1706 = vmatprep.subr.mxu0 0.0
    %1707 = vmatpush1.msra.mxu0 0.0
    %1708 = vmatprep.subr.mxu0 0.0
    %1709 = vmatpush1.msra.mxu0 0.0
    %1710 = vmatprep.subr.mxu0 0.0
    %1711 = vmatpush1.msra.mxu0 0.0
    %1712 = vmatprep.subr.mxu0 0.0
    %1713 = vmatpush1.msra.mxu0 0.0
    %1714 = vmatprep.subr.mxu0 0.0
    %1715 = vmatpush1.msra.mxu0 0.0
    %1716 = vmatprep.subr.mxu0 0.0
    %1717 = vmatpush1.msra.mxu0 0.0
    %1718 = vmatprep.subr.mxu0 0.0
    %1719 = vmatpush1.msra.mxu0 0.0
    %1720 = vmatprep.subr.mxu0 0.0
    %1721 = vmatpush1.msra.mxu0 0.0
    %1722 = vmatprep.subr.mxu0 0.0
    %1723 = vmatpush1.msra.mxu0 0.0
    %1724 = vmatprep.subr.mxu0 0.0
    %1725 = vmatpush1.msra.mxu0 0.0
    %1726 = vmatprep.subr.mxu0 0.0
    %1727 = vmatpush1.msra.mxu0 0.0
    %1728 = vmatprep.subr.mxu0 0.0
    %1729 = vmatpush1.msra.mxu0 0.0
    %1730 = vmatprep.subr.mxu0 0.0
    %1731 = vmatpush1.msra.mxu0 0.0
    %1732 = vmatprep.subr.mxu0 0.0
    %1733 = vmatpush1.msra.mxu0 0.0
    %1734 = vmatprep.subr.mxu0 0.0
    %1735 = vmatpush1.msra.mxu0 0.0
    %1736 = vmatprep.subr.mxu0 0.0
    %1737 = vmatpush1.msra.mxu0 0.0
    %1738 = vmatprep.subr.mxu0 0.0
    %1739 = vmatpush1.msra.mxu0 0.0
    %1740 = vmatprep.subr.mxu0 0.0
    %1741 = vmatpush1.msra.mxu0 0.0
    %1742 = vmatprep.subr.mxu0 0.0
    %1743 = vmatpush1.msra.mxu0 0.0
    %1744 = vmatprep.subr.mxu0 0.0
    %1745 = vmatpush1.msra.mxu0 0.0
    %1746 = vmatprep.subr.mxu0 0.0
    %1747 = vmatpush1.msra.mxu0 0.0
    %1748 = vmatprep.subr.mxu0 0.0
    %1749 = vmatpush1.msra.mxu0 0.0
    %1750 = vmatprep.subr.mxu0 0.0
    %1751 = vmatpush1.msra.mxu0 0.0
    %1752 = vmatprep.mubr.f32.mxu0 0.0
    %1753 = vmatmul.mubr.f32.gmra.mrb[0].mxu0 %v322
    %v1754 = vpop.f32.mrb[0].mxu0
    %v1755 = vadd.f32 0.0, %v1754
    %v1756 = vpop.f32.mrb[0].mxu0
    %1757 = vdwg.mxu0
    %v1758 = vmul.f32 %v1755, 0.0625
    %v1759 = vlaneseq
    %v1760 = vshrl.u32 %v1759, 7
    %v1761 = vsub.s32 0, %v1760
    %v1762 = vrot.slane %v1758, %v1761
    %v1763 = vsub.f32 %v1686, %v1762
    %v1764 = vsub.f32 %v1687, %v1762
    %v1765 = vmul.f32 %v1763, %v1763
    %v1766 = vmul.f32 %v1764, %v1764
    %1767 = vmatprep.subr.mxu0 0.0
    %1768 = vmatpush1.msra.mxu0 %v1765
    %1769 = vmatprep.subr.mxu0 0.0
    %1770 = vmatpush1.msra.mxu0 %v1766
    %1771 = vmatprep.subr.mxu0 0.0
    %1772 = vmatpush1.msra.mxu0 0.0
    %1773 = vmatprep.subr.mxu0 0.0
    %1774 = vmatpush1.msra.mxu0 0.0
    %1775 = vmatprep.subr.mxu0 0.0
    %1776 = vmatpush1.msra.mxu0 0.0
    %1777 = vmatprep.subr.mxu0 0.0
    %1778 = vmatpush1.msra.mxu0 0.0
    %1779 = vmatprep.subr.mxu0 0.0
    %1780 = vmatpush1.msra.mxu0 0.0
    %1781 = vmatprep.subr.mxu0 0.0
    %1782 = vmatpush1.msra.mxu0 0.0
    %1783 = vmatprep.subr.mxu0 0.0
    %1784 = vmatpush1.msra.mxu0 0.0
    %1785 = vmatprep.subr.mxu0 0.0
    %1786 = vmatpush1.msra.mxu0 0.0
    %1787 = vmatprep.subr.mxu0 0.0
    %1788 = vmatpush1.msra.mxu0 0.0
    %1789 = vmatprep.subr.mxu0 0.0
    %1790 = vmatpush1.msra.mxu0 0.0
    %1791 = vmatprep.subr.mxu0 0.0
    %1792 = vmatpush1.msra.mxu0 0.0
    %1793 = vmatprep.subr.mxu0 0.0
    %1794 = vmatpush1.msra.mxu0 0.0
    %1795 = vmatprep.subr.mxu0 0.0
    %1796 = vmatpush1.msra.mxu0 0.0
    %1797 = vmatprep.subr.mxu0 0.0
    %1798 = vmatpush1.msra.mxu0 0.0
    %1799 = vmatprep.subr.mxu0 0.0
    %1800 = vmatpush1.msra.mxu0 0.0
    %1801 = vmatprep.subr.mxu0 0.0
    %1802 = vmatpush1.msra.mxu0 0.0
    %1803 = vmatprep.subr.mxu0 0.0
    %1804 = vmatpush1.msra.mxu0 0.0
    %1805 = vmatprep.subr.mxu0 0.0
    %1806 = vmatpush1.msra.mxu0 0.0
    %1807 = vmatprep.subr.mxu0 0.0
    %1808 = vmatpush1.msra.mxu0 0.0
    %1809 = vmatprep.subr.mxu0 0.0
    %1810 = vmatpush1.msra.mxu0 0.0
    %1811 = vmatprep.subr.mxu0 0.0
    %1812 = vmatpush1.msra.mxu0 0.0
    %1813 = vmatprep.subr.mxu0 0.0
    %1814 = vmatpush1.msra.mxu0 0.0
    %1815 = vmatprep.subr.mxu0 0.0
    %1816 = vmatpush1.msra.mxu0 0.0
    %1817 = vmatprep.subr.mxu0 0.0
    %1818 = vmatpush1.msra.mxu0 0.0
    %1819 = vmatprep.subr.mxu0 0.0
    %1820 = vmatpush1.msra.mxu0 0.0
    %1821 = vmatprep.subr.mxu0 0.0
    %1822 = vmatpush1.msra.mxu0 0.0
    %1823 = vmatprep.subr.mxu0 0.0
    %1824 = vmatpush1.msra.mxu0 0.0
    %1825 = vmatprep.subr.mxu0 0.0
    %1826 = vmatpush1.msra.mxu0 0.0
    %1827 = vmatprep.subr.mxu0 0.0
    %1828 = vmatpush1.msra.mxu0 0.0
    %1829 = vmatprep.subr.mxu0 0.0
    %1830 = vmatpush1.msra.mxu0 0.0
    %1831 = vmatprep.mubr.f32.mxu0 0.0
    %1832 = vmatmul.mubr.f32.gmra.mrb[0].mxu0 %v322
    %v1833 = vpop.f32.mrb[0].mxu0
    %v1834 = vadd.f32 0.0, %v1833
    %v1835 = vpop.f32.mrb[0].mxu0
    %1836 = vdwg.mxu0
    %v1837 = vmul.f32 %v1834, 0.0625
    %v1838 = vadd.f32 %v1837, 1e-05
    %v1839 = vrsqrt.pop %v1838
    %v1840 = vld [vmem:[#allocation10 + $0x4] sm:$0x1]
    %v1841 = vmul.f32 %v1839, %v1840
    %v1842 = vlaneseq
    %v1843 = vshrl.u32 %v1842, 7
    %v1844 = vsub.s32 0, %v1843
    %v1845 = vrot.slane %v1841, %v1844
    %v1846 = vmul.f32 %v1763, %v1845
    %v1847 = vmul.f32 %v1764, %v1845
    %v1848 = vld [vmem:[#allocation12 + $0x4] sm:$0x1]
    %v1849 = vlaneseq
    %v1850 = vshrl.u32 %v1849, 7
    %v1851 = vsub.s32 0, %v1850
    %v1852 = vrot.slane %v1848, %v1851
    %v1853 = vadd.f32 %v1846, %v1852
    %v1854 = vadd.f32 %v1847, %v1852
    %1855 = vst.msk [vmem:[#allocation14] sm:$0xff] %vm136, %v1853
    %1856 = vst.msk [vmem:[#allocation14 + $0x8] sm:$0xff] %vm136, %v1854
    %s1857 = scalar_lea.vmem [#allocation9], 160
    %v1858 = vld [vmem:[%s1857] sm:$0xff]
    %v1859 = vld [vmem:[%s1857 + $0x8] sm:$0xff]
    %v1860 = vld [vmem:[%s1857 + $0x10] sm:$0xff]
    %v1861 = vld [vmem:[%s1857 + $0x18] sm:$0xff]
    %v1863 = vsel %vm136, %v1853, 0
    %v1866 = vsel %vm136, %v1854, 0
    %1868 = vmatprep.subr.mxu0 0.0
    %1869 = vmatpush1.msra.mxu0 %v1858
    %1870 = vmatprep.subr.mxu0 0.0
    %1871 = vmatpush1.msra.mxu0 %v1859
    %1872 = vmatprep.subr.mxu0 0.0
    %1873 = vmatpush1.msra.mxu0 %v1860
    %1874 = vmatprep.subr.mxu0 0.0
    %1875 = vmatpush1.msra.mxu0 %v1861
    %1876 = vmatprep.subr.mxu0 0.0
    %1877 = vmatpush1.msra.mxu0 0.0
    %1878 = vmatprep.subr.mxu0 0.0
    %1879 = vmatpush1.msra.mxu0 0.0
    %1880 = vmatprep.subr.mxu0 0.0
    %1881 = vmatpush1.msra.mxu0 0.0
    %1882 = vmatprep.subr.mxu0 0.0
    %1883 = vmatpush1.msra.mxu0 0.0
    %1884 = vmatprep.subr.mxu0 0.0
    %1885 = vmatpush1.msra.mxu0 0.0
    %1886 = vmatprep.subr.mxu0 0.0
    %1887 = vmatpush1.msra.mxu0 0.0
    %1888 = vmatprep.subr.mxu0 0.0
    %1889 = vmatpush1.msra.mxu0 0.0
    %1890 = vmatprep.subr.mxu0 0.0
    %1891 = vmatpush1.msra.mxu0 0.0
    %1892 = vmatprep.subr.mxu0 0.0
    %1893 = vmatpush1.msra.mxu0 0.0
    %1894 = vmatprep.subr.mxu0 0.0
    %1895 = vmatpush1.msra.mxu0 0.0
    %1896 = vmatprep.subr.mxu0 0.0
    %1897 = vmatpush1.msra.mxu0 0.0
    %1898 = vmatprep.subr.mxu0 0.0
    %1899 = vmatpush1.msra.mxu0 0.0
    %1900 = vmatprep.subr.mxu0 0.0
    %1901 = vmatpush1.msra.mxu0 0.0
    %1902 = vmatprep.subr.mxu0 0.0
    %1903 = vmatpush1.msra.mxu0 0.0
    %1904 = vmatprep.subr.mxu0 0.0
    %1905 = vmatpush1.msra.mxu0 0.0
    %1906 = vmatprep.subr.mxu0 0.0
    %1907 = vmatpush1.msra.mxu0 0.0
    %1908 = vmatprep.subr.mxu0 0.0
    %1909 = vmatpush1.msra.mxu0 0.0
    %1910 = vmatprep.subr.mxu0 0.0
    %1911 = vmatpush1.msra.mxu0 0.0
    %1912 = vmatprep.subr.mxu0 0.0
    %1913 = vmatpush1.msra.mxu0 0.0
    %1914 = vmatprep.subr.mxu0 0.0
    %1915 = vmatpush1.msra.mxu0 0.0
    %1916 = vmatprep.subr.mxu0 0.0
    %1917 = vmatpush1.msra.mxu0 0.0
    %1918 = vmatprep.subr.mxu0 0.0
    %1919 = vmatpush1.msra.mxu0 0.0
    %1920 = vmatprep.subr.mxu0 0.0
    %1921 = vmatpush1.msra.mxu0 0.0
    %1922 = vmatprep.subr.mxu0 0.0
    %1923 = vmatpush1.msra.mxu0 0.0
    %1924 = vmatprep.subr.mxu0 0.0
    %1925 = vmatpush1.msra.mxu0 0.0
    %1926 = vmatprep.subr.mxu0 0.0
    %1927 = vmatpush1.msra.mxu0 0.0
    %1928 = vmatprep.subr.mxu0 0.0
    %1929 = vmatpush1.msra.mxu0 0.0
    %1930 = vmatprep.subr.mxu0 0.0
    %1931 = vmatpush1.msra.mxu0 0.0
    %1932 = vmatprep.mubr.f32.mxu0 0.0
    %1933 = vmatmul.mubr.f32.gmra.mrb[0].mxu0 %v1863
    %v1934 = vpop.f32.mrb[0].mxu0
    %v1935 = vadd.f32 0.0, %v1934
    %v1936 = vpop.f32.mrb[0].mxu0
    %1937 = vmatprep.mubr.f32.mxu0 0.0
    %1938 = vmatmul.mubr.f32.gmra.mrb[0].mxu0 %v1866
    %v1939 = vpop.f32.mrb[0].mxu0
    %v1940 = vadd.f32 0.0, %v1939
    %v1941 = vpop.f32.mrb[0].mxu0
    %1942 = vdwg.mxu0
    %v1943 = vld [vmem:[%s6 + $0x5] sm:$0x1]
    %v1944 = vlaneseq
    %v1945 = vshrl.u32 %v1944, 7
    %v1946 = vsub.s32 0, %v1945
    %v1947 = vrot.slane %v1943, %v1946
    %1948 = vmatprep.subr.mxu0 0.0
    %1949 = vmatpush1.msra.mxu0 %v1935
    %1950 = vmatprep.subr.mxu0 0.0
    %1951 = vmatpush1.msra.mxu0 %v1940
    %1952 = vmatprep.subr.mxu0 0.0
    %1953 = vmatpush1.msra.mxu0 0.0
    %1954 = vmatprep.subr.mxu0 0.0
    %1955 = vmatpush1.msra.mxu0 0.0
    %1956 = vmatprep.subr.mxu0 0.0
    %1957 = vmatpush1.msra.mxu0 0.0
    %1958 = vmatprep.subr.mxu0 0.0
    %1959 = vmatpush1.msra.mxu0 0.0
    %1960 = vmatprep.subr.mxu0 0.0
    %1961 = vmatpush1.msra.mxu0 0.0
    %1962 = vmatprep.subr.mxu0 0.0
    %1963 = vmatpush1.msra.mxu0 0.0
    %1964 = vmatprep.subr.mxu0 0.0
    %1965 = vmatpush1.msra.mxu0 0.0
    %1966 = vmatprep.subr.mxu0 0.0
    %1967 = vmatpush1.msra.mxu0 0.0
    %1968 = vmatprep.subr.mxu0 0.0
    %1969 = vmatpush1.msra.mxu0 0.0
    %1970 = vmatprep.subr.mxu0 0.0
    %1971 = vmatpush1.msra.mxu0 0.0
    %1972 = vmatprep.subr.mxu0 0.0
    %1973 = vmatpush1.msra.mxu0 0.0
    %1974 = vmatprep.subr.mxu0 0.0
    %1975 = vmatpush1.msra.mxu0 0.0
    %1976 = vmatprep.subr.mxu0 0.0
    %1977 = vmatpush1.msra.mxu0 0.0
    %1978 = vmatprep.subr.mxu0 0.0
    %1979 = vmatpush1.msra.mxu0 0.0
    %1980 = vmatprep.subr.mxu0 0.0
    %1981 = vmatpush1.msra.mxu0 0.0
    %1982 = vmatprep.subr.mxu0 0.0
    %1983 = vmatpush1.msra.mxu0 0.0
    %1984 = vmatprep.subr.mxu0 0.0
    %1985 = vmatpush1.msra.mxu0 0.0
    %1986 = vmatprep.subr.mxu0 0.0
    %1987 = vmatpush1.msra.mxu0 0.0
    %1988 = vmatprep.subr.mxu0 0.0
    %1989 = vmatpush1.msra.mxu0 0.0
    %1990 = vmatprep.subr.mxu0 0.0
    %1991 = vmatpush1.msra.mxu0 0.0
    %1992 = vmatprep.subr.mxu0 0.0
    %1993 = vmatpush1.msra.mxu0 0.0
    %1994 = vmatprep.subr.mxu0 0.0
    %1995 = vmatpush1.msra.mxu0 0.0
    %1996 = vmatprep.subr.mxu0 0.0
    %1997 = vmatpush1.msra.mxu0 0.0
    %1998 = vmatprep.subr.mxu0 0.0
    %1999 = vmatpush1.msra.mxu0 0.0
    %2000 = vmatprep.subr.mxu0 0.0
    %2001 = vmatpush1.msra.mxu0 0.0
    %2002 = vmatprep.subr.mxu0 0.0
    %2003 = vmatpush1.msra.mxu0 0.0
    %2004 = vmatprep.subr.mxu0 0.0
    %2005 = vmatpush1.msra.mxu0 0.0
    %2006 = vmatprep.subr.mxu0 0.0
    %2007 = vmatpush1.msra.mxu0 0.0
    %2008 = vmatprep.subr.mxu0 0.0
    %2009 = vmatpush1.msra.mxu0 0.0
    %2010 = vmatprep.subr.mxu0 0.0
    %2011 = vmatpush1.msra.mxu0 0.0
    %2012 = vmatprep.mubr.f32.mxu0 0.0
    %2013 = vmatmul.mubr.f32.gmra.mrb[0].mxu0 %v233
    %v2014 = vpop.f32.mrb[0].mxu0
    %v2015 = vadd.f32 %v1947, %v2014
    %v2016 = vpop.f32.mrb[0].mxu0
    %2017 = vmatprep.mubr.f32.mxu0 0.0
    %2018 = vmatmul.mubr.f32.gmra.mrb[0].mxu0 %v236
    %v2019 = vpop.f32.mrb[0].mxu0
    %v2020 = vadd.f32 %v1947, %v2019
    %v2021 = vpop.f32.mrb[0].mxu0
    %2022 = vdwg.mxu0
    %s2023 = sld [smem:[#allocation2 + $0x5]]
    %vm2024 = vcmp.gt.f32.partialorder %v2015, 0.0
    %vm2025 = vcmp.gt.f32.partialorder %v2020, 0.0
    %v2026 = vstv %s2023
    %v2027 = vmul.f32 %v2026, %v2015
    %v2028 = vmul.f32 %v2026, %v2020
    %v2029 = vsel %vm2024, %v2015, %v2027
    %v2030 = vsel %vm2025, %v2020, %v2028
    %2031 = vmatprep.subr.mxu0 0.0
    %2032 = vmatpush1.msra.mxu0 %v2029
    %2033 = vmatprep.subr.mxu0 0.0
    %2034 = vmatpush1.msra.mxu0 %v2030
    %2035 = vmatprep.subr.mxu0 0.0
    %2036 = vmatpush1.msra.mxu0 0.0
    %2037 = vmatprep.subr.mxu0 0.0
    %2038 = vmatpush1.msra.mxu0 0.0
    %2039 = vmatprep.subr.mxu0 0.0
    %2040 = vmatpush1.msra.mxu0 0.0
    %2041 = vmatprep.subr.mxu0 0.0
    %2042 = vmatpush1.msra.mxu0 0.0
    %2043 = vmatprep.subr.mxu0 0.0
    %2044 = vmatpush1.msra.mxu0 0.0
    %2045 = vmatprep.subr.mxu0 0.0
    %2046 = vmatpush1.msra.mxu0 0.0
    %2047 = vmatprep.subr.mxu0 0.0
    %2048 = vmatpush1.msra.mxu0 0.0
    %2049 = vmatprep.subr.mxu0 0.0
    %2050 = vmatpush1.msra.mxu0 0.0
    %2051 = vmatprep.subr.mxu0 0.0
    %2052 = vmatpush1.msra.mxu0 0.0
    %2053 = vmatprep.subr.mxu0 0.0
    %2054 = vmatpush1.msra.mxu0 0.0
    %2055 = vmatprep.subr.mxu0 0.0
    %2056 = vmatpush1.msra.mxu0 0.0
    %2057 = vmatprep.subr.mxu0 0.0
    %2058 = vmatpush1.msra.mxu0 0.0
    %2059 = vmatprep.subr.mxu0 0.0
    %2060 = vmatpush1.msra.mxu0 0.0
    %2061 = vmatprep.subr.mxu0 0.0
    %2062 = vmatpush1.msra.mxu0 0.0
    %2063 = vmatprep.subr.mxu0 0.0
    %2064 = vmatpush1.msra.mxu0 0.0
    %2065 = vmatprep.subr.mxu0 0.0
    %2066 = vmatpush1.msra.mxu0 0.0
    %2067 = vmatprep.subr.mxu0 0.0
    %2068 = vmatpush1.msra.mxu0 0.0
    %2069 = vmatprep.subr.mxu0 0.0
    %2070 = vmatpush1.msra.mxu0 0.0
    %2071 = vmatprep.subr.mxu0 0.0
    %2072 = vmatpush1.msra.mxu0 0.0
    %2073 = vmatprep.subr.mxu0 0.0
    %2074 = vmatpush1.msra.mxu0 0.0
    %2075 = vmatprep.subr.mxu0 0.0
    %2076 = vmatpush1.msra.mxu0 0.0
    %2077 = vmatprep.subr.mxu0 0.0
    %2078 = vmatpush1.msra.mxu0 0.0
    %2079 = vmatprep.subr.mxu0 0.0
    %2080 = vmatpush1.msra.mxu0 0.0
    %2081 = vmatprep.subr.mxu0 0.0
    %2082 = vmatpush1.msra.mxu0 0.0
    %2083 = vmatprep.subr.mxu0 0.0
    %2084 = vmatpush1.msra.mxu0 0.0
    %2085 = vmatprep.subr.mxu0 0.0
    %2086 = vmatpush1.msra.mxu0 0.0
    %2087 = vmatprep.subr.mxu0 0.0
    %2088 = vmatpush1.msra.mxu0 0.0
    %2089 = vmatprep.subr.mxu0 0.0
    %2090 = vmatpush1.msra.mxu0 0.0
    %2091 = vmatprep.subr.mxu0 0.0
    %2092 = vmatpush1.msra.mxu0 0.0
    %2093 = vmatprep.subr.mxu0 0.0
    %2094 = vmatpush1.msra.mxu0 0.0
    %2095 = vmatprep.mubr.f32.mxu0 0.0
    %2096 = vmatmul.mubr.f32.gmra.mrb[0].mxu0 %v322
    %v2097 = vpop.f32.mrb[0].mxu0
    %v2098 = vadd.f32 0.0, %v2097
    %v2099 = vpop.f32.mrb[0].mxu0
    %2100 = vdwg.mxu0
    %v2101 = vmul.f32 %v2098, 0.0625
    %v2102 = vlaneseq
    %v2103 = vshrl.u32 %v2102, 7
    %v2104 = vsub.s32 0, %v2103
    %v2105 = vrot.slane %v2101, %v2104
    %v2106 = vsub.f32 %v2029, %v2105
    %v2107 = vsub.f32 %v2030, %v2105
    %v2108 = vmul.f32 %v2106, %v2106
    %v2109 = vmul.f32 %v2107, %v2107
    %2110 = vmatprep.subr.mxu0 0.0
    %2111 = vmatpush1.msra.mxu0 %v2108
    %2112 = vmatprep.subr.mxu0 0.0
    %2113 = vmatpush1.msra.mxu0 %v2109
    %2114 = vmatprep.subr.mxu0 0.0
    %2115 = vmatpush1.msra.mxu0 0.0
    %2116 = vmatprep.subr.mxu0 0.0
    %2117 = vmatpush1.msra.mxu0 0.0
    %2118 = vmatprep.subr.mxu0 0.0
    %2119 = vmatpush1.msra.mxu0 0.0
    %2120 = vmatprep.subr.mxu0 0.0
    %2121 = vmatpush1.msra.mxu0 0.0
    %2122 = vmatprep.subr.mxu0 0.0
    %2123 = vmatpush1.msra.mxu0 0.0
    %2124 = vmatprep.subr.mxu0 0.0
    %2125 = vmatpush1.msra.mxu0 0.0
    %2126 = vmatprep.subr.mxu0 0.0
    %2127 = vmatpush1.msra.mxu0 0.0
    %2128 = vmatprep.subr.mxu0 0.0
    %2129 = vmatpush1.msra.mxu0 0.0
    %2130 = vmatprep.subr.mxu0 0.0
    %2131 = vmatpush1.msra.mxu0 0.0
    %2132 = vmatprep.subr.mxu0 0.0
    %2133 = vmatpush1.msra.mxu0 0.0
    %2134 = vmatprep.subr.mxu0 0.0
    %2135 = vmatpush1.msra.mxu0 0.0
    %2136 = vmatprep.subr.mxu0 0.0
    %2137 = vmatpush1.msra.mxu0 0.0
    %2138 = vmatprep.subr.mxu0 0.0
    %2139 = vmatpush1.msra.mxu0 0.0
    %2140 = vmatprep.subr.mxu0 0.0
    %2141 = vmatpush1.msra.mxu0 0.0
    %2142 = vmatprep.subr.mxu0 0.0
    %2143 = vmatpush1.msra.mxu0 0.0
    %2144 = vmatprep.subr.mxu0 0.0
    %2145 = vmatpush1.msra.mxu0 0.0
    %2146 = vmatprep.subr.mxu0 0.0
    %2147 = vmatpush1.msra.mxu0 0.0
    %2148 = vmatprep.subr.mxu0 0.0
    %2149 = vmatpush1.msra.mxu0 0.0
    %2150 = vmatprep.subr.mxu0 0.0
    %2151 = vmatpush1.msra.mxu0 0.0
    %2152 = vmatprep.subr.mxu0 0.0
    %2153 = vmatpush1.msra.mxu0 0.0
    %2154 = vmatprep.subr.mxu0 0.0
    %2155 = vmatpush1.msra.mxu0 0.0
    %2156 = vmatprep.subr.mxu0 0.0
    %2157 = vmatpush1.msra.mxu0 0.0
    %2158 = vmatprep.subr.mxu0 0.0
    %2159 = vmatpush1.msra.mxu0 0.0
    %2160 = vmatprep.subr.mxu0 0.0
    %2161 = vmatpush1.msra.mxu0 0.0
    %2162 = vmatprep.subr.mxu0 0.0
    %2163 = vmatpush1.msra.mxu0 0.0
    %2164 = vmatprep.subr.mxu0 0.0
    %2165 = vmatpush1.msra.mxu0 0.0
    %2166 = vmatprep.subr.mxu0 0.0
    %2167 = vmatpush1.msra.mxu0 0.0
    %2168 = vmatprep.subr.mxu0 0.0
    %2169 = vmatpush1.msra.mxu0 0.0
    %2170 = vmatprep.subr.mxu0 0.0
    %2171 = vmatpush1.msra.mxu0 0.0
    %2172 = vmatprep.subr.mxu0 0.0
    %2173 = vmatpush1.msra.mxu0 0.0
    %2174 = vmatprep.mubr.f32.mxu0 0.0
    %2175 = vmatmul.mubr.f32.gmra.mrb[0].mxu0 %v322
    %v2176 = vpop.f32.mrb[0].mxu0
    %v2177 = vadd.f32 0.0, %v2176
    %v2178 = vpop.f32.mrb[0].mxu0
    %2179 = vdwg.mxu0
    %v2180 = vmul.f32 %v2177, 0.0625
    %v2181 = vadd.f32 %v2180, 1e-05
    %v2182 = vrsqrt.pop %v2181
    %v2183 = vld [vmem:[#allocation10 + $0x5] sm:$0x1]
    %v2184 = vmul.f32 %v2182, %v2183
    %v2185 = vlaneseq
    %v2186 = vshrl.u32 %v2185, 7
    %v2187 = vsub.s32 0, %v2186
    %v2188 = vrot.slane %v2184, %v2187
    %v2189 = vmul.f32 %v2106, %v2188
    %v2190 = vmul.f32 %v2107, %v2188
    %v2191 = vld [vmem:[#allocation12 + $0x5] sm:$0x1]
    %v2192 = vlaneseq
    %v2193 = vshrl.u32 %v2192, 7
    %v2194 = vsub.s32 0, %v2193
    %v2195 = vrot.slane %v2191, %v2194
    %v2196 = vadd.f32 %v2189, %v2195
    %v2197 = vadd.f32 %v2190, %v2195
    %s2198 = scalar_lea.vmem [#allocation9], 192
    %v2199 = vld [vmem:[%s2198] sm:$0xff]
    %v2200 = vld [vmem:[%s2198 + $0x8] sm:$0xff]
    %v2201 = vld [vmem:[%s2198 + $0x10] sm:$0xff]
    %v2202 = vld [vmem:[%s2198 + $0x18] sm:$0xff]
    %v2204 = vsel %vm136, %v2196, 0
    %v2207 = vsel %vm136, %v2197, 0
    %2209 = vmatprep.subr.mxu0 0.0
    %2210 = vmatpush1.msra.mxu0 %v2199
    %2211 = vmatprep.subr.mxu0 0.0
    %2212 = vmatpush1.msra.mxu0 %v2200
    %2213 = vmatprep.subr.mxu0 0.0
    %2214 = vmatpush1.msra.mxu0 %v2201
    %2215 = vmatprep.subr.mxu0 0.0
    %2216 = vmatpush1.msra.mxu0 %v2202
    %2217 = vmatprep.subr.mxu0 0.0
    %2218 = vmatpush1.msra.mxu0 0.0
    %2219 = vmatprep.subr.mxu0 0.0
    %2220 = vmatpush1.msra.mxu0 0.0
    %2221 = vmatprep.subr.mxu0 0.0
    %2222 = vmatpush1.msra.mxu0 0.0
    %2223 = vmatprep.subr.mxu0 0.0
    %2224 = vmatpush1.msra.mxu0 0.0
    %2225 = vmatprep.subr.mxu0 0.0
    %2226 = vmatpush1.msra.mxu0 0.0
    %2227 = vmatprep.subr.mxu0 0.0
    %2228 = vmatpush1.msra.mxu0 0.0
    %2229 = vmatprep.subr.mxu0 0.0
    %2230 = vmatpush1.msra.mxu0 0.0
    %2231 = vmatprep.subr.mxu0 0.0
    %2232 = vmatpush1.msra.mxu0 0.0
    %2233 = vmatprep.subr.mxu0 0.0
    %2234 = vmatpush1.msra.mxu0 0.0
    %2235 = vmatprep.subr.mxu0 0.0
    %2236 = vmatpush1.msra.mxu0 0.0
    %2237 = vmatprep.subr.mxu0 0.0
    %2238 = vmatpush1.msra.mxu0 0.0
    %2239 = vmatprep.subr.mxu0 0.0
    %2240 = vmatpush1.msra.mxu0 0.0
    %2241 = vmatprep.subr.mxu0 0.0
    %2242 = vmatpush1.msra.mxu0 0.0
    %2243 = vmatprep.subr.mxu0 0.0
    %2244 = vmatpush1.msra.mxu0 0.0
    %2245 = vmatprep.subr.mxu0 0.0
    %2246 = vmatpush1.msra.mxu0 0.0
    %2247 = vmatprep.subr.mxu0 0.0
    %2248 = vmatpush1.msra.mxu0 0.0
    %2249 = vmatprep.subr.mxu0 0.0
    %2250 = vmatpush1.msra.mxu0 0.0
    %2251 = vmatprep.subr.mxu0 0.0
    %2252 = vmatpush1.msra.mxu0 0.0
    %2253 = vmatprep.subr.mxu0 0.0
    %2254 = vmatpush1.msra.mxu0 0.0
    %2255 = vmatprep.subr.mxu0 0.0
    %2256 = vmatpush1.msra.mxu0 0.0
    %2257 = vmatprep.subr.mxu0 0.0
    %2258 = vmatpush1.msra.mxu0 0.0
    %2259 = vmatprep.subr.mxu0 0.0
    %2260 = vmatpush1.msra.mxu0 0.0
    %2261 = vmatprep.subr.mxu0 0.0
    %2262 = vmatpush1.msra.mxu0 0.0
    %2263 = vmatprep.subr.mxu0 0.0
    %2264 = vmatpush1.msra.mxu0 0.0
    %2265 = vmatprep.subr.mxu0 0.0
    %2266 = vmatpush1.msra.mxu0 0.0
    %2267 = vmatprep.subr.mxu0 0.0
    %2268 = vmatpush1.msra.mxu0 0.0
    %2269 = vmatprep.subr.mxu0 0.0
    %2270 = vmatpush1.msra.mxu0 0.0
    %2271 = vmatprep.subr.mxu0 0.0
    %2272 = vmatpush1.msra.mxu0 0.0
    %2273 = vmatprep.mubr.f32.mxu0 0.0
    %2274 = vmatmul.mubr.f32.gmra.mrb[0].mxu0 %v2204
    %v2275 = vpop.f32.mrb[0].mxu0
    %v2276 = vadd.f32 0.0, %v2275
    %v2277 = vpop.f32.mrb[0].mxu0
    %2278 = vmatprep.mubr.f32.mxu0 0.0
    %2279 = vmatmul.mubr.f32.gmra.mrb[0].mxu0 %v2207
    %v2280 = vpop.f32.mrb[0].mxu0
    %v2281 = vadd.f32 0.0, %v2280
    %v2282 = vpop.f32.mrb[0].mxu0
    %2283 = vdwg.mxu0
    %v2284 = vld [vmem:[%s6 + $0x6] sm:$0x1]
    %v2285 = vlaneseq
    %v2286 = vshrl.u32 %v2285, 7
    %v2287 = vsub.s32 0, %v2286
    %v2288 = vrot.slane %v2284, %v2287
    %2289 = vmatprep.subr.mxu0 0.0
    %2290 = vmatpush1.msra.mxu0 %v2276
    %2291 = vmatprep.subr.mxu0 0.0
    %2292 = vmatpush1.msra.mxu0 %v2281
    %2293 = vmatprep.subr.mxu0 0.0
    %2294 = vmatpush1.msra.mxu0 0.0
    %2295 = vmatprep.subr.mxu0 0.0
    %2296 = vmatpush1.msra.mxu0 0.0
    %2297 = vmatprep.subr.mxu0 0.0
    %2298 = vmatpush1.msra.mxu0 0.0
    %2299 = vmatprep.subr.mxu0 0.0
    %2300 = vmatpush1.msra.mxu0 0.0
    %2301 = vmatprep.subr.mxu0 0.0
    %2302 = vmatpush1.msra.mxu0 0.0
    %2303 = vmatprep.subr.mxu0 0.0
    %2304 = vmatpush1.msra.mxu0 0.0
    %2305 = vmatprep.subr.mxu0 0.0
    %2306 = vmatpush1.msra.mxu0 0.0
    %2307 = vmatprep.subr.mxu0 0.0
    %2308 = vmatpush1.msra.mxu0 0.0
    %2309 = vmatprep.subr.mxu0 0.0
    %2310 = vmatpush1.msra.mxu0 0.0
    %2311 = vmatprep.subr.mxu0 0.0
    %2312 = vmatpush1.msra.mxu0 0.0
    %2313 = vmatprep.subr.mxu0 0.0
    %2314 = vmatpush1.msra.mxu0 0.0
    %2315 = vmatprep.subr.mxu0 0.0
    %2316 = vmatpush1.msra.mxu0 0.0
    %2317 = vmatprep.subr.mxu0 0.0
    %2318 = vmatpush1.msra.mxu0 0.0
    %2319 = vmatprep.subr.mxu0 0.0
    %2320 = vmatpush1.msra.mxu0 0.0
    %2321 = vmatprep.subr.mxu0 0.0
    %2322 = vmatpush1.msra.mxu0 0.0
    %2323 = vmatprep.subr.mxu0 0.0
    %2324 = vmatpush1.msra.mxu0 0.0
    %2325 = vmatprep.subr.mxu0 0.0
    %2326 = vmatpush1.msra.mxu0 0.0
    %2327 = vmatprep.subr.mxu0 0.0
    %2328 = vmatpush1.msra.mxu0 0.0
    %2329 = vmatprep.subr.mxu0 0.0
    %2330 = vmatpush1.msra.mxu0 0.0
    %2331 = vmatprep.subr.mxu0 0.0
    %2332 = vmatpush1.msra.mxu0 0.0
    %2333 = vmatprep.subr.mxu0 0.0
    %2334 = vmatpush1.msra.mxu0 0.0
    %2335 = vmatprep.subr.mxu0 0.0
    %2336 = vmatpush1.msra.mxu0 0.0
    %2337 = vmatprep.subr.mxu0 0.0
    %2338 = vmatpush1.msra.mxu0 0.0
    %2339 = vmatprep.subr.mxu0 0.0
    %2340 = vmatpush1.msra.mxu0 0.0
    %2341 = vmatprep.subr.mxu0 0.0
    %2342 = vmatpush1.msra.mxu0 0.0
    %2343 = vmatprep.subr.mxu0 0.0
    %2344 = vmatpush1.msra.mxu0 0.0
    %2345 = vmatprep.subr.mxu0 0.0
    %2346 = vmatpush1.msra.mxu0 0.0
    %2347 = vmatprep.subr.mxu0 0.0
    %2348 = vmatpush1.msra.mxu0 0.0
    %2349 = vmatprep.subr.mxu0 0.0
    %2350 = vmatpush1.msra.mxu0 0.0
    %2351 = vmatprep.subr.mxu0 0.0
    %2352 = vmatpush1.msra.mxu0 0.0
    %2353 = vmatprep.mubr.f32.mxu0 0.0
    %2354 = vmatmul.mubr.f32.gmra.mrb[0].mxu0 %v233
    %v2355 = vpop.f32.mrb[0].mxu0
    %v2356 = vadd.f32 %v2288, %v2355
    %v2357 = vpop.f32.mrb[0].mxu0
    %2358 = vmatprep.mubr.f32.mxu0 0.0
    %2359 = vmatmul.mubr.f32.gmra.mrb[0].mxu0 %v236
    %v2360 = vpop.f32.mrb[0].mxu0
    %v2361 = vadd.f32 %v2288, %v2360
    %v2362 = vpop.f32.mrb[0].mxu0
    %2363 = vdwg.mxu0
    %s2364 = sld [smem:[#allocation2 + $0x6]]
    %vm2365 = vcmp.gt.f32.partialorder %v2356, 0.0
    %vm2366 = vcmp.gt.f32.partialorder %v2361, 0.0
    %v2367 = vstv %s2364
    %v2368 = vmul.f32 %v2367, %v2356
    %v2369 = vmul.f32 %v2367, %v2361
    %v2370 = vsel %vm2365, %v2356, %v2368
    %v2371 = vsel %vm2366, %v2361, %v2369
    %2372 = vmatprep.subr.mxu0 0.0
    %2373 = vmatpush1.msra.mxu0 %v2370
    %2374 = vmatprep.subr.mxu0 0.0
    %2375 = vmatpush1.msra.mxu0 %v2371
    %2376 = vmatprep.subr.mxu0 0.0
    %2377 = vmatpush1.msra.mxu0 0.0
    %2378 = vmatprep.subr.mxu0 0.0
    %2379 = vmatpush1.msra.mxu0 0.0
    %2380 = vmatprep.subr.mxu0 0.0
    %2381 = vmatpush1.msra.mxu0 0.0
    %2382 = vmatprep.subr.mxu0 0.0
    %2383 = vmatpush1.msra.mxu0 0.0
    %2384 = vmatprep.subr.mxu0 0.0
    %2385 = vmatpush1.msra.mxu0 0.0
    %2386 = vmatprep.subr.mxu0 0.0
    %2387 = vmatpush1.msra.mxu0 0.0
    %2388 = vmatprep.subr.mxu0 0.0
    %2389 = vmatpush1.msra.mxu0 0.0
    %2390 = vmatprep.subr.mxu0 0.0
    %2391 = vmatpush1.msra.mxu0 0.0
    %2392 = vmatprep.subr.mxu0 0.0
    %2393 = vmatpush1.msra.mxu0 0.0
    %2394 = vmatprep.subr.mxu0 0.0
    %2395 = vmatpush1.msra.mxu0 0.0
    %2396 = vmatprep.subr.mxu0 0.0
    %2397 = vmatpush1.msra.mxu0 0.0
    %2398 = vmatprep.subr.mxu0 0.0
    %2399 = vmatpush1.msra.mxu0 0.0
    %2400 = vmatprep.subr.mxu0 0.0
    %2401 = vmatpush1.msra.mxu0 0.0
    %2402 = vmatprep.subr.mxu0 0.0
    %2403 = vmatpush1.msra.mxu0 0.0
    %2404 = vmatprep.subr.mxu0 0.0
    %2405 = vmatpush1.msra.mxu0 0.0
    %2406 = vmatprep.subr.mxu0 0.0
    %2407 = vmatpush1.msra.mxu0 0.0
    %2408 = vmatprep.subr.mxu0 0.0
    %2409 = vmatpush1.msra.mxu0 0.0
    %2410 = vmatprep.subr.mxu0 0.0
    %2411 = vmatpush1.msra.mxu0 0.0
    %2412 = vmatprep.subr.mxu0 0.0
    %2413 = vmatpush1.msra.mxu0 0.0
    %2414 = vmatprep.subr.mxu0 0.0
    %2415 = vmatpush1.msra.mxu0 0.0
    %2416 = vmatprep.subr.mxu0 0.0
    %2417 = vmatpush1.msra.mxu0 0.0
    %2418 = vmatprep.subr.mxu0 0.0
    %2419 = vmatpush1.msra.mxu0 0.0
    %2420 = vmatprep.subr.mxu0 0.0
    %2421 = vmatpush1.msra.mxu0 0.0
    %2422 = vmatprep.subr.mxu0 0.0
    %2423 = vmatpush1.msra.mxu0 0.0
    %2424 = vmatprep.subr.mxu0 0.0
    %2425 = vmatpush1.msra.mxu0 0.0
    %2426 = vmatprep.subr.mxu0 0.0
    %2427 = vmatpush1.msra.mxu0 0.0
    %2428 = vmatprep.subr.mxu0 0.0
    %2429 = vmatpush1.msra.mxu0 0.0
    %2430 = vmatprep.subr.mxu0 0.0
    %2431 = vmatpush1.msra.mxu0 0.0
    %2432 = vmatprep.subr.mxu0 0.0
    %2433 = vmatpush1.msra.mxu0 0.0
    %2434 = vmatprep.subr.mxu0 0.0
    %2435 = vmatpush1.msra.mxu0 0.0
    %2436 = vmatprep.mubr.f32.mxu0 0.0
    %2437 = vmatmul.mubr.f32.gmra.mrb[0].mxu0 %v322
    %v2438 = vpop.f32.mrb[0].mxu0
    %v2439 = vadd.f32 0.0, %v2438
    %v2440 = vpop.f32.mrb[0].mxu0
    %2441 = vdwg.mxu0
    %v2442 = vmul.f32 %v2439, 0.0625
    %v2443 = vlaneseq
    %v2444 = vshrl.u32 %v2443, 7
    %v2445 = vsub.s32 0, %v2444
    %v2446 = vrot.slane %v2442, %v2445
    %v2447 = vsub.f32 %v2370, %v2446
    %v2448 = vsub.f32 %v2371, %v2446
    %v2449 = vmul.f32 %v2447, %v2447
    %v2450 = vmul.f32 %v2448, %v2448
    %2451 = vmatprep.subr.mxu0 0.0
    %2452 = vmatpush1.msra.mxu0 %v2449
    %2453 = vmatprep.subr.mxu0 0.0
    %2454 = vmatpush1.msra.mxu0 %v2450
    %2455 = vmatprep.subr.mxu0 0.0
    %2456 = vmatpush1.msra.mxu0 0.0
    %2457 = vmatprep.subr.mxu0 0.0
    %2458 = vmatpush1.msra.mxu0 0.0
    %2459 = vmatprep.subr.mxu0 0.0
    %2460 = vmatpush1.msra.mxu0 0.0
    %2461 = vmatprep.subr.mxu0 0.0
    %2462 = vmatpush1.msra.mxu0 0.0
    %2463 = vmatprep.subr.mxu0 0.0
    %2464 = vmatpush1.msra.mxu0 0.0
    %2465 = vmatprep.subr.mxu0 0.0
    %2466 = vmatpush1.msra.mxu0 0.0
    %2467 = vmatprep.subr.mxu0 0.0
    %2468 = vmatpush1.msra.mxu0 0.0
    %2469 = vmatprep.subr.mxu0 0.0
    %2470 = vmatpush1.msra.mxu0 0.0
    %2471 = vmatprep.subr.mxu0 0.0
    %2472 = vmatpush1.msra.mxu0 0.0
    %2473 = vmatprep.subr.mxu0 0.0
    %2474 = vmatpush1.msra.mxu0 0.0
    %2475 = vmatprep.subr.mxu0 0.0
    %2476 = vmatpush1.msra.mxu0 0.0
    %2477 = vmatprep.subr.mxu0 0.0
    %2478 = vmatpush1.msra.mxu0 0.0
    %2479 = vmatprep.subr.mxu0 0.0
    %2480 = vmatpush1.msra.mxu0 0.0
    %2481 = vmatprep.subr.mxu0 0.0
    %2482 = vmatpush1.msra.mxu0 0.0
    %2483 = vmatprep.subr.mxu0 0.0
    %2484 = vmatpush1.msra.mxu0 0.0
    %2485 = vmatprep.subr.mxu0 0.0
    %2486 = vmatpush1.msra.mxu0 0.0
    %2487 = vmatprep.subr.mxu0 0.0
    %2488 = vmatpush1.msra.mxu0 0.0
    %2489 = vmatprep.subr.mxu0 0.0
    %2490 = vmatpush1.msra.mxu0 0.0
    %2491 = vmatprep.subr.mxu0 0.0
    %2492 = vmatpush1.msra.mxu0 0.0
    %2493 = vmatprep.subr.mxu0 0.0
    %2494 = vmatpush1.msra.mxu0 0.0
    %2495 = vmatprep.subr.mxu0 0.0
    %2496 = vmatpush1.msra.mxu0 0.0
    %2497 = vmatprep.subr.mxu0 0.0
    %2498 = vmatpush1.msra.mxu0 0.0
    %2499 = vmatprep.subr.mxu0 0.0
    %2500 = vmatpush1.msra.mxu0 0.0
    %2501 = vmatprep.subr.mxu0 0.0
    %2502 = vmatpush1.msra.mxu0 0.0
    %2503 = vmatprep.subr.mxu0 0.0
    %2504 = vmatpush1.msra.mxu0 0.0
    %2505 = vmatprep.subr.mxu0 0.0
    %2506 = vmatpush1.msra.mxu0 0.0
    %2507 = vmatprep.subr.mxu0 0.0
    %2508 = vmatpush1.msra.mxu0 0.0
    %2509 = vmatprep.subr.mxu0 0.0
    %2510 = vmatpush1.msra.mxu0 0.0
    %2511 = vmatprep.subr.mxu0 0.0
    %2512 = vmatpush1.msra.mxu0 0.0
    %2513 = vmatprep.subr.mxu0 0.0
    %2514 = vmatpush1.msra.mxu0 0.0
    %2515 = vmatprep.mubr.f32.mxu0 0.0
    %2516 = vmatmul.mubr.f32.gmra.mrb[0].mxu0 %v322
    %v2517 = vpop.f32.mrb[0].mxu0
    %v2518 = vadd.f32 0.0, %v2517
    %v2519 = vpop.f32.mrb[0].mxu0
    %2520 = vdwg.mxu0
    %v2521 = vmul.f32 %v2518, 0.0625
    %v2522 = vadd.f32 %v2521, 1e-05
    %v2523 = vrsqrt.pop %v2522
    %v2524 = vld [vmem:[#allocation10 + $0x6] sm:$0x1]
    %v2525 = vmul.f32 %v2523, %v2524
    %v2526 = vlaneseq
    %v2527 = vshrl.u32 %v2526, 7
    %v2528 = vsub.s32 0, %v2527
    %v2529 = vrot.slane %v2525, %v2528
    %v2530 = vmul.f32 %v2447, %v2529
    %v2531 = vmul.f32 %v2448, %v2529
    %v2532 = vld [vmem:[#allocation12 + $0x6] sm:$0x1]
    %v2533 = vlaneseq
    %v2534 = vshrl.u32 %v2533, 7
    %v2535 = vsub.s32 0, %v2534
    %v2536 = vrot.slane %v2532, %v2535
    %v2537 = vadd.f32 %v2530, %v2536
    %v2538 = vadd.f32 %v2531, %v2536
    %s2539 = scalar_lea.vmem [#allocation9], 224
    %v2540 = vld [vmem:[%s2539] sm:$0xff]
    %v2541 = vld [vmem:[%s2539 + $0x8] sm:$0xff]
    %v2542 = vld [vmem:[%s2539 + $0x10] sm:$0xff]
    %v2543 = vld [vmem:[%s2539 + $0x18] sm:$0xff]
    %v2545 = vsel %vm136, %v2537, 0
    %v2548 = vsel %vm136, %v2538, 0
    %2550 = vmatprep.subr.mxu0 0.0
    %2551 = vmatpush1.msra.mxu0 %v2540
    %2552 = vmatprep.subr.mxu0 0.0
    %2553 = vmatpush1.msra.mxu0 %v2541
    %2554 = vmatprep.subr.mxu0 0.0
    %2555 = vmatpush1.msra.mxu0 %v2542
    %2556 = vmatprep.subr.mxu0 0.0
    %2557 = vmatpush1.msra.mxu0 %v2543
    %2558 = vmatprep.subr.mxu0 0.0
    %2559 = vmatpush1.msra.mxu0 0.0
    %2560 = vmatprep.subr.mxu0 0.0
    %2561 = vmatpush1.msra.mxu0 0.0
    %2562 = vmatprep.subr.mxu0 0.0
    %2563 = vmatpush1.msra.mxu0 0.0
    %2564 = vmatprep.subr.mxu0 0.0
    %2565 = vmatpush1.msra.mxu0 0.0
    %2566 = vmatprep.subr.mxu0 0.0
    %2567 = vmatpush1.msra.mxu0 0.0
    %2568 = vmatprep.subr.mxu0 0.0
    %2569 = vmatpush1.msra.mxu0 0.0
    %2570 = vmatprep.subr.mxu0 0.0
    %2571 = vmatpush1.msra.mxu0 0.0
    %2572 = vmatprep.subr.mxu0 0.0
    %2573 = vmatpush1.msra.mxu0 0.0
    %2574 = vmatprep.subr.mxu0 0.0
    %2575 = vmatpush1.msra.mxu0 0.0
    %2576 = vmatprep.subr.mxu0 0.0
    %2577 = vmatpush1.msra.mxu0 0.0
    %2578 = vmatprep.subr.mxu0 0.0
    %2579 = vmatpush1.msra.mxu0 0.0
    %2580 = vmatprep.subr.mxu0 0.0
    %2581 = vmatpush1.msra.mxu0 0.0
    %2582 = vmatprep.subr.mxu0 0.0
    %2583 = vmatpush1.msra.mxu0 0.0
    %2584 = vmatprep.subr.mxu0 0.0
    %2585 = vmatpush1.msra.mxu0 0.0
    %2586 = vmatprep.subr.mxu0 0.0
    %2587 = vmatpush1.msra.mxu0 0.0
    %2588 = vmatprep.subr.mxu0 0.0
    %2589 = vmatpush1.msra.mxu0 0.0
    %2590 = vmatprep.subr.mxu0 0.0
    %2591 = vmatpush1.msra.mxu0 0.0
    %2592 = vmatprep.subr.mxu0 0.0
    %2593 = vmatpush1.msra.mxu0 0.0
    %2594 = vmatprep.subr.mxu0 0.0
    %2595 = vmatpush1.msra.mxu0 0.0
    %2596 = vmatprep.subr.mxu0 0.0
    %2597 = vmatpush1.msra.mxu0 0.0
    %2598 = vmatprep.subr.mxu0 0.0
    %2599 = vmatpush1.msra.mxu0 0.0
    %2600 = vmatprep.subr.mxu0 0.0
    %2601 = vmatpush1.msra.mxu0 0.0
    %2602 = vmatprep.subr.mxu0 0.0
    %2603 = vmatpush1.msra.mxu0 0.0
    %2604 = vmatprep.subr.mxu0 0.0
    %2605 = vmatpush1.msra.mxu0 0.0
    %2606 = vmatprep.subr.mxu0 0.0
    %2607 = vmatpush1.msra.mxu0 0.0
    %2608 = vmatprep.subr.mxu0 0.0
    %2609 = vmatpush1.msra.mxu0 0.0
    %2610 = vmatprep.subr.mxu0 0.0
    %2611 = vmatpush1.msra.mxu0 0.0
    %2612 = vmatprep.subr.mxu0 0.0
    %2613 = vmatpush1.msra.mxu0 0.0
    %2614 = vmatprep.mubr.f32.mxu0 0.0
    %2615 = vmatmul.mubr.f32.gmra.mrb[0].mxu0 %v2545
    %v2616 = vpop.f32.mrb[0].mxu0
    %v2617 = vadd.f32 0.0, %v2616
    %v2618 = vpop.f32.mrb[0].mxu0
    %2619 = vmatprep.mubr.f32.mxu0 0.0
    %2620 = vmatmul.mubr.f32.gmra.mrb[0].mxu0 %v2548
    %v2621 = vpop.f32.mrb[0].mxu0
    %v2622 = vadd.f32 0.0, %v2621
    %v2623 = vpop.f32.mrb[0].mxu0
    %2624 = vdwg.mxu0
    %v2625 = vld [vmem:[%s6 + $0x7] sm:$0x1]
    %v2626 = vlaneseq
    %v2627 = vshrl.u32 %v2626, 7
    %v2628 = vsub.s32 0, %v2627
    %v2629 = vrot.slane %v2625, %v2628
    %2630 = vmatprep.subr.mxu0 0.0
    %2631 = vmatpush1.msra.mxu0 %v2617
    %2632 = vmatprep.subr.mxu0 0.0
    %2633 = vmatpush1.msra.mxu0 %v2622
    %2634 = vmatprep.subr.mxu0 0.0
    %2635 = vmatpush1.msra.mxu0 0.0
    %2636 = vmatprep.subr.mxu0 0.0
    %2637 = vmatpush1.msra.mxu0 0.0
    %2638 = vmatprep.subr.mxu0 0.0
    %2639 = vmatpush1.msra.mxu0 0.0
    %2640 = vmatprep.subr.mxu0 0.0
    %2641 = vmatpush1.msra.mxu0 0.0
    %2642 = vmatprep.subr.mxu0 0.0
    %2643 = vmatpush1.msra.mxu0 0.0
    %2644 = vmatprep.subr.mxu0 0.0
    %2645 = vmatpush1.msra.mxu0 0.0
    %2646 = vmatprep.subr.mxu0 0.0
    %2647 = vmatpush1.msra.mxu0 0.0
    %2648 = vmatprep.subr.mxu0 0.0
    %2649 = vmatpush1.msra.mxu0 0.0
    %2650 = vmatprep.subr.mxu0 0.0
    %2651 = vmatpush1.msra.mxu0 0.0
    %2652 = vmatprep.subr.mxu0 0.0
    %2653 = vmatpush1.msra.mxu0 0.0
    %2654 = vmatprep.subr.mxu0 0.0
    %2655 = vmatpush1.msra.mxu0 0.0
    %2656 = vmatprep.subr.mxu0 0.0
    %2657 = vmatpush1.msra.mxu0 0.0
    %2658 = vmatprep.subr.mxu0 0.0
    %2659 = vmatpush1.msra.mxu0 0.0
    %2660 = vmatprep.subr.mxu0 0.0
    %2661 = vmatpush1.msra.mxu0 0.0
    %2662 = vmatprep.subr.mxu0 0.0
    %2663 = vmatpush1.msra.mxu0 0.0
    %2664 = vmatprep.subr.mxu0 0.0
    %2665 = vmatpush1.msra.mxu0 0.0
    %2666 = vmatprep.subr.mxu0 0.0
    %2667 = vmatpush1.msra.mxu0 0.0
    %2668 = vmatprep.subr.mxu0 0.0
    %2669 = vmatpush1.msra.mxu0 0.0
    %2670 = vmatprep.subr.mxu0 0.0
    %2671 = vmatpush1.msra.mxu0 0.0
    %2672 = vmatprep.subr.mxu0 0.0
    %2673 = vmatpush1.msra.mxu0 0.0
    %2674 = vmatprep.subr.mxu0 0.0
    %2675 = vmatpush1.msra.mxu0 0.0
    %2676 = vmatprep.subr.mxu0 0.0
    %2677 = vmatpush1.msra.mxu0 0.0
    %2678 = vmatprep.subr.mxu0 0.0
    %2679 = vmatpush1.msra.mxu0 0.0
    %2680 = vmatprep.subr.mxu0 0.0
    %2681 = vmatpush1.msra.mxu0 0.0
    %2682 = vmatprep.subr.mxu0 0.0
    %2683 = vmatpush1.msra.mxu0 0.0
    %2684 = vmatprep.subr.mxu0 0.0
    %2685 = vmatpush1.msra.mxu0 0.0
    %2686 = vmatprep.subr.mxu0 0.0
    %2687 = vmatpush1.msra.mxu0 0.0
    %2688 = vmatprep.subr.mxu0 0.0
    %2689 = vmatpush1.msra.mxu0 0.0
    %2690 = vmatprep.subr.mxu0 0.0
    %2691 = vmatpush1.msra.mxu0 0.0
    %2692 = vmatprep.subr.mxu0 0.0
    %2693 = vmatpush1.msra.mxu0 0.0
    %2694 = vmatprep.mubr.f32.mxu0 0.0
    %2695 = vmatmul.mubr.f32.gmra.mrb[0].mxu0 %v233
    %v2696 = vpop.f32.mrb[0].mxu0
    %v2697 = vadd.f32 %v2629, %v2696
    %v2698 = vpop.f32.mrb[0].mxu0
    %2699 = vmatprep.mubr.f32.mxu0 0.0
    %2700 = vmatmul.mubr.f32.gmra.mrb[0].mxu0 %v236
    %v2701 = vpop.f32.mrb[0].mxu0
    %v2702 = vadd.f32 %v2629, %v2701
    %v2703 = vpop.f32.mrb[0].mxu0
    %2704 = vdwg.mxu0
    %s2705 = sld [smem:[#allocation2 + $0x7]]
    %vm2706 = vcmp.gt.f32.partialorder %v2697, 0.0
    %vm2707 = vcmp.gt.f32.partialorder %v2702, 0.0
    %v2708 = vstv %s2705
    %v2709 = vmul.f32 %v2708, %v2697
    %v2710 = vmul.f32 %v2708, %v2702
    %v2711 = vsel %vm2706, %v2697, %v2709
    %v2712 = vsel %vm2707, %v2702, %v2710
    %2713 = vmatprep.subr.mxu0 0.0
    %2714 = vmatpush1.msra.mxu0 %v2711
    %2715 = vmatprep.subr.mxu0 0.0
    %2716 = vmatpush1.msra.mxu0 %v2712
    %2717 = vmatprep.subr.mxu0 0.0
    %2718 = vmatpush1.msra.mxu0 0.0
    %2719 = vmatprep.subr.mxu0 0.0
    %2720 = vmatpush1.msra.mxu0 0.0
    %2721 = vmatprep.subr.mxu0 0.0
    %2722 = vmatpush1.msra.mxu0 0.0
    %2723 = vmatprep.subr.mxu0 0.0
    %2724 = vmatpush1.msra.mxu0 0.0
    %2725 = vmatprep.subr.mxu0 0.0
    %2726 = vmatpush1.msra.mxu0 0.0
    %2727 = vmatprep.subr.mxu0 0.0
    %2728 = vmatpush1.msra.mxu0 0.0
    %2729 = vmatprep.subr.mxu0 0.0
    %2730 = vmatpush1.msra.mxu0 0.0
    %2731 = vmatprep.subr.mxu0 0.0
    %2732 = vmatpush1.msra.mxu0 0.0
    %2733 = vmatprep.subr.mxu0 0.0
    %2734 = vmatpush1.msra.mxu0 0.0
    %2735 = vmatprep.subr.mxu0 0.0
    %2736 = vmatpush1.msra.mxu0 0.0
    %2737 = vmatprep.subr.mxu0 0.0
    %2738 = vmatpush1.msra.mxu0 0.0
    %2739 = vmatprep.subr.mxu0 0.0
    %2740 = vmatpush1.msra.mxu0 0.0
    %2741 = vmatprep.subr.mxu0 0.0
    %2742 = vmatpush1.msra.mxu0 0.0
    %2743 = vmatprep.subr.mxu0 0.0
    %2744 = vmatpush1.msra.mxu0 0.0
    %2745 = vmatprep.subr.mxu0 0.0
    %2746 = vmatpush1.msra.mxu0 0.0
    %2747 = vmatprep.subr.mxu0 0.0
    %2748 = vmatpush1.msra.mxu0 0.0
    %2749 = vmatprep.subr.mxu0 0.0
    %2750 = vmatpush1.msra.mxu0 0.0
    %2751 = vmatprep.subr.mxu0 0.0
    %2752 = vmatpush1.msra.mxu0 0.0
    %2753 = vmatprep.subr.mxu0 0.0
    %2754 = vmatpush1.msra.mxu0 0.0
    %2755 = vmatprep.subr.mxu0 0.0
    %2756 = vmatpush1.msra.mxu0 0.0
    %2757 = vmatprep.subr.mxu0 0.0
    %2758 = vmatpush1.msra.mxu0 0.0
    %2759 = vmatprep.subr.mxu0 0.0
    %2760 = vmatpush1.msra.mxu0 0.0
    %2761 = vmatprep.subr.mxu0 0.0
    %2762 = vmatpush1.msra.mxu0 0.0
    %2763 = vmatprep.subr.mxu0 0.0
    %2764 = vmatpush1.msra.mxu0 0.0
    %2765 = vmatprep.subr.mxu0 0.0
    %2766 = vmatpush1.msra.mxu0 0.0
    %2767 = vmatprep.subr.mxu0 0.0
    %2768 = vmatpush1.msra.mxu0 0.0
    %2769 = vmatprep.subr.mxu0 0.0
    %2770 = vmatpush1.msra.mxu0 0.0
    %2771 = vmatprep.subr.mxu0 0.0
    %2772 = vmatpush1.msra.mxu0 0.0
    %2773 = vmatprep.subr.mxu0 0.0
    %2774 = vmatpush1.msra.mxu0 0.0
    %2775 = vmatprep.subr.mxu0 0.0
    %2776 = vmatpush1.msra.mxu0 0.0
    %2777 = vmatprep.mubr.f32.mxu0 0.0
    %2778 = vmatmul.mubr.f32.gmra.mrb[0].mxu0 %v322
    %v2779 = vpop.f32.mrb[0].mxu0
    %v2780 = vadd.f32 0.0, %v2779
    %v2781 = vpop.f32.mrb[0].mxu0
    %2782 = vdwg.mxu0
    %v2783 = vmul.f32 %v2780, 0.0625
    %v2784 = vlaneseq
    %v2785 = vshrl.u32 %v2784, 7
    %v2786 = vsub.s32 0, %v2785
    %v2787 = vrot.slane %v2783, %v2786
    %v2788 = vsub.f32 %v2711, %v2787
    %v2789 = vsub.f32 %v2712, %v2787
    %v2790 = vmul.f32 %v2788, %v2788
    %v2791 = vmul.f32 %v2789, %v2789
    %2792 = vmatprep.subr.mxu0 0.0
    %2793 = vmatpush1.msra.mxu0 %v2790
    %2794 = vmatprep.subr.mxu0 0.0
    %2795 = vmatpush1.msra.mxu0 %v2791
    %2796 = vmatprep.subr.mxu0 0.0
    %2797 = vmatpush1.msra.mxu0 0.0
    %2798 = vmatprep.subr.mxu0 0.0
    %2799 = vmatpush1.msra.mxu0 0.0
    %2800 = vmatprep.subr.mxu0 0.0
    %2801 = vmatpush1.msra.mxu0 0.0
    %2802 = vmatprep.subr.mxu0 0.0
    %2803 = vmatpush1.msra.mxu0 0.0
    %2804 = vmatprep.subr.mxu0 0.0
    %2805 = vmatpush1.msra.mxu0 0.0
    %2806 = vmatprep.subr.mxu0 0.0
    %2807 = vmatpush1.msra.mxu0 0.0
    %2808 = vmatprep.subr.mxu0 0.0
    %2809 = vmatpush1.msra.mxu0 0.0
    %2810 = vmatprep.subr.mxu0 0.0
    %2811 = vmatpush1.msra.mxu0 0.0
    %2812 = vmatprep.subr.mxu0 0.0
    %2813 = vmatpush1.msra.mxu0 0.0
    %2814 = vmatprep.subr.mxu0 0.0
    %2815 = vmatpush1.msra.mxu0 0.0
    %2816 = vmatprep.subr.mxu0 0.0
    %2817 = vmatpush1.msra.mxu0 0.0
    %2818 = vmatprep.subr.mxu0 0.0
    %2819 = vmatpush1.msra.mxu0 0.0
    %2820 = vmatprep.subr.mxu0 0.0
    %2821 = vmatpush1.msra.mxu0 0.0
    %2822 = vmatprep.subr.mxu0 0.0
    %2823 = vmatpush1.msra.mxu0 0.0
    %2824 = vmatprep.subr.mxu0 0.0
    %2825 = vmatpush1.msra.mxu0 0.0
    %2826 = vmatprep.subr.mxu0 0.0
    %2827 = vmatpush1.msra.mxu0 0.0
    %2828 = vmatprep.subr.mxu0 0.0
    %2829 = vmatpush1.msra.mxu0 0.0
    %2830 = vmatprep.subr.mxu0 0.0
    %2831 = vmatpush1.msra.mxu0 0.0
    %2832 = vmatprep.subr.mxu0 0.0
    %2833 = vmatpush1.msra.mxu0 0.0
    %2834 = vmatprep.subr.mxu0 0.0
    %2835 = vmatpush1.msra.mxu0 0.0
    %2836 = vmatprep.subr.mxu0 0.0
    %2837 = vmatpush1.msra.mxu0 0.0
    %2838 = vmatprep.subr.mxu0 0.0
    %2839 = vmatpush1.msra.mxu0 0.0
    %2840 = vmatprep.subr.mxu0 0.0
    %2841 = vmatpush1.msra.mxu0 0.0
    %2842 = vmatprep.subr.mxu0 0.0
    %2843 = vmatpush1.msra.mxu0 0.0
    %2844 = vmatprep.subr.mxu0 0.0
    %2845 = vmatpush1.msra.mxu0 0.0
    %2846 = vmatprep.subr.mxu0 0.0
    %2847 = vmatpush1.msra.mxu0 0.0
    %2848 = vmatprep.subr.mxu0 0.0
    %2849 = vmatpush1.msra.mxu0 0.0
    %2850 = vmatprep.subr.mxu0 0.0
    %2851 = vmatpush1.msra.mxu0 0.0
    %2852 = vmatprep.subr.mxu0 0.0
    %2853 = vmatpush1.msra.mxu0 0.0
    %2854 = vmatprep.subr.mxu0 0.0
    %2855 = vmatpush1.msra.mxu0 0.0
    %2856 = vmatprep.mubr.f32.mxu0 0.0
    %2857 = vmatmul.mubr.f32.gmra.mrb[0].mxu0 %v322
    %v2858 = vpop.f32.mrb[0].mxu0
    %v2859 = vadd.f32 0.0, %v2858
    %v2860 = vpop.f32.mrb[0].mxu0
    %2861 = vdwg.mxu0
    %v2862 = vmul.f32 %v2859, 0.0625
    %v2863 = vadd.f32 %v2862, 1e-05
    %v2864 = vrsqrt.pop %v2863
    %v2865 = vld [vmem:[#allocation10 + $0x7] sm:$0x1]
    %v2866 = vmul.f32 %v2864, %v2865
    %v2867 = vlaneseq
    %v2868 = vshrl.u32 %v2867, 7
    %v2869 = vsub.s32 0, %v2868
    %v2870 = vrot.slane %v2866, %v2869
    %v2871 = vmul.f32 %v2788, %v2870
    %v2872 = vmul.f32 %v2789, %v2870
    %v2873 = vld [vmem:[#allocation12 + $0x7] sm:$0x1]
    %v2874 = vlaneseq
    %v2875 = vshrl.u32 %v2874, 7
    %v2876 = vsub.s32 0, %v2875
    %v2877 = vrot.slane %v2873, %v2876
    %v2878 = vadd.f32 %v2871, %v2877
    %v2879 = vadd.f32 %v2872, %v2877
    %s2880 = scalar_lea.vmem [#allocation9], 256
    %v2881 = vld [vmem:[%s2880] sm:$0xff]
    %v2882 = vld [vmem:[%s2880 + $0x8] sm:$0xff]
    %v2883 = vld [vmem:[%s2880 + $0x10] sm:$0xff]
    %v2884 = vld [vmem:[%s2880 + $0x18] sm:$0xff]
    %v2886 = vsel %vm136, %v2878, 0
    %v2889 = vsel %vm136, %v2879, 0
    %2891 = vmatprep.subr.mxu0 0.0
    %2892 = vmatpush1.msra.mxu0 %v2881
    %2893 = vmatprep.subr.mxu0 0.0
    %2894 = vmatpush1.msra.mxu0 %v2882
    %2895 = vmatprep.subr.mxu0 0.0
    %2896 = vmatpush1.msra.mxu0 %v2883
    %2897 = vmatprep.subr.mxu0 0.0
    %2898 = vmatpush1.msra.mxu0 %v2884
    %2899 = vmatprep.subr.mxu0 0.0
    %2900 = vmatpush1.msra.mxu0 0.0
    %2901 = vmatprep.subr.mxu0 0.0
    %2902 = vmatpush1.msra.mxu0 0.0
    %2903 = vmatprep.subr.mxu0 0.0
    %2904 = vmatpush1.msra.mxu0 0.0
    %2905 = vmatprep.subr.mxu0 0.0
    %2906 = vmatpush1.msra.mxu0 0.0
    %2907 = vmatprep.subr.mxu0 0.0
    %2908 = vmatpush1.msra.mxu0 0.0
    %2909 = vmatprep.subr.mxu0 0.0
    %2910 = vmatpush1.msra.mxu0 0.0
    %2911 = vmatprep.subr.mxu0 0.0
    %2912 = vmatpush1.msra.mxu0 0.0
    %2913 = vmatprep.subr.mxu0 0.0
    %2914 = vmatpush1.msra.mxu0 0.0
    %2915 = vmatprep.subr.mxu0 0.0
    %2916 = vmatpush1.msra.mxu0 0.0
    %2917 = vmatprep.subr.mxu0 0.0
    %2918 = vmatpush1.msra.mxu0 0.0
    %2919 = vmatprep.subr.mxu0 0.0
    %2920 = vmatpush1.msra.mxu0 0.0
    %2921 = vmatprep.subr.mxu0 0.0
    %2922 = vmatpush1.msra.mxu0 0.0
    %2923 = vmatprep.subr.mxu0 0.0
    %2924 = vmatpush1.msra.mxu0 0.0
    %2925 = vmatprep.subr.mxu0 0.0
    %2926 = vmatpush1.msra.mxu0 0.0
    %2927 = vmatprep.subr.mxu0 0.0
    %2928 = vmatpush1.msra.mxu0 0.0
    %2929 = vmatprep.subr.mxu0 0.0
    %2930 = vmatpush1.msra.mxu0 0.0
    %2931 = vmatprep.subr.mxu0 0.0
    %2932 = vmatpush1.msra.mxu0 0.0
    %2933 = vmatprep.subr.mxu0 0.0
    %2934 = vmatpush1.msra.mxu0 0.0
    %2935 = vmatprep.subr.mxu0 0.0
    %2936 = vmatpush1.msra.mxu0 0.0
    %2937 = vmatprep.subr.mxu0 0.0
    %2938 = vmatpush1.msra.mxu0 0.0
    %2939 = vmatprep.subr.mxu0 0.0
    %2940 = vmatpush1.msra.mxu0 0.0
    %2941 = vmatprep.subr.mxu0 0.0
    %2942 = vmatpush1.msra.mxu0 0.0
    %2943 = vmatprep.subr.mxu0 0.0
    %2944 = vmatpush1.msra.mxu0 0.0
    %2945 = vmatprep.subr.mxu0 0.0
    %2946 = vmatpush1.msra.mxu0 0.0
    %2947 = vmatprep.subr.mxu0 0.0
    %2948 = vmatpush1.msra.mxu0 0.0
    %2949 = vmatprep.subr.mxu0 0.0
    %2950 = vmatpush1.msra.mxu0 0.0
    %2951 = vmatprep.subr.mxu0 0.0
    %2952 = vmatpush1.msra.mxu0 0.0
    %2953 = vmatprep.subr.mxu0 0.0
    %2954 = vmatpush1.msra.mxu0 0.0
    %2955 = vmatprep.mubr.f32.mxu0 0.0
    %2956 = vmatmul.mubr.f32.gmra.mrb[0].mxu0 %v2886
    %v2957 = vpop.f32.mrb[0].mxu0
    %v2958 = vadd.f32 0.0, %v2957
    %v2959 = vpop.f32.mrb[0].mxu0
    %2960 = vmatprep.mubr.f32.mxu0 0.0
    %2961 = vmatmul.mubr.f32.gmra.mrb[0].mxu0 %v2889
    %v2962 = vpop.f32.mrb[0].mxu0
    %v2963 = vadd.f32 0.0, %v2962
    %v2964 = vpop.f32.mrb[0].mxu0
    %2965 = vdwg.mxu0
    %v2966 = vld [vmem:[%s6 + $0x8] sm:$0x1]
    %v2967 = vlaneseq
    %v2968 = vshrl.u32 %v2967, 7
    %v2969 = vsub.s32 0, %v2968
    %v2970 = vrot.slane %v2966, %v2969
    %2971 = vmatprep.subr.mxu0 0.0
    %2972 = vmatpush1.msra.mxu0 %v2958
    %2973 = vmatprep.subr.mxu0 0.0
    %2974 = vmatpush1.msra.mxu0 %v2963
    %2975 = vmatprep.subr.mxu0 0.0
    %2976 = vmatpush1.msra.mxu0 0.0
    %2977 = vmatprep.subr.mxu0 0.0
    %2978 = vmatpush1.msra.mxu0 0.0
    %2979 = vmatprep.subr.mxu0 0.0
    %2980 = vmatpush1.msra.mxu0 0.0
    %2981 = vmatprep.subr.mxu0 0.0
    %2982 = vmatpush1.msra.mxu0 0.0
    %2983 = vmatprep.subr.mxu0 0.0
    %2984 = vmatpush1.msra.mxu0 0.0
    %2985 = vmatprep.subr.mxu0 0.0
    %2986 = vmatpush1.msra.mxu0 0.0
    %2987 = vmatprep.subr.mxu0 0.0
    %2988 = vmatpush1.msra.mxu0 0.0
    %2989 = vmatprep.subr.mxu0 0.0
    %2990 = vmatpush1.msra.mxu0 0.0
    %2991 = vmatprep.subr.mxu0 0.0
    %2992 = vmatpush1.msra.mxu0 0.0
    %2993 = vmatprep.subr.mxu0 0.0
    %2994 = vmatpush1.msra.mxu0 0.0
    %2995 = vmatprep.subr.mxu0 0.0
    %2996 = vmatpush1.msra.mxu0 0.0
    %2997 = vmatprep.subr.mxu0 0.0
    %2998 = vmatpush1.msra.mxu0 0.0
    %2999 = vmatprep.subr.mxu0 0.0
    %3000 = vmatpush1.msra.mxu0 0.0
    %3001 = vmatprep.subr.mxu0 0.0
    %3002 = vmatpush1.msra.mxu0 0.0
    %3003 = vmatprep.subr.mxu0 0.0
    %3004 = vmatpush1.msra.mxu0 0.0
    %3005 = vmatprep.subr.mxu0 0.0
    %3006 = vmatpush1.msra.mxu0 0.0
    %3007 = vmatprep.subr.mxu0 0.0
    %3008 = vmatpush1.msra.mxu0 0.0
    %3009 = vmatprep.subr.mxu0 0.0
    %3010 = vmatpush1.msra.mxu0 0.0
    %3011 = vmatprep.subr.mxu0 0.0
    %3012 = vmatpush1.msra.mxu0 0.0
    %3013 = vmatprep.subr.mxu0 0.0
    %3014 = vmatpush1.msra.mxu0 0.0
    %3015 = vmatprep.subr.mxu0 0.0
    %3016 = vmatpush1.msra.mxu0 0.0
    %3017 = vmatprep.subr.mxu0 0.0
    %3018 = vmatpush1.msra.mxu0 0.0
    %3019 = vmatprep.subr.mxu0 0.0
    %3020 = vmatpush1.msra.mxu0 0.0
    %3021 = vmatprep.subr.mxu0 0.0
    %3022 = vmatpush1.msra.mxu0 0.0
    %3023 = vmatprep.subr.mxu0 0.0
    %3024 = vmatpush1.msra.mxu0 0.0
    %3025 = vmatprep.subr.mxu0 0.0
    %3026 = vmatpush1.msra.mxu0 0.0
    %3027 = vmatprep.subr.mxu0 0.0
    %3028 = vmatpush1.msra.mxu0 0.0
    %3029 = vmatprep.subr.mxu0 0.0
    %3030 = vmatpush1.msra.mxu0 0.0
    %3031 = vmatprep.subr.mxu0 0.0
    %3032 = vmatpush1.msra.mxu0 0.0
    %3033 = vmatprep.subr.mxu0 0.0
    %3034 = vmatpush1.msra.mxu0 0.0
    %3035 = vmatprep.mubr.f32.mxu0 0.0
    %3036 = vmatmul.mubr.f32.gmra.mrb[0].mxu0 %v233
    %v3037 = vpop.f32.mrb[0].mxu0
    %v3038 = vadd.f32 %v2970, %v3037
    %v3039 = vpop.f32.mrb[0].mxu0
    %3040 = vmatprep.mubr.f32.mxu0 0.0
    %3041 = vmatmul.mubr.f32.gmra.mrb[0].mxu0 %v236
    %v3042 = vpop.f32.mrb[0].mxu0
    %v3043 = vadd.f32 %v2970, %v3042
    %v3044 = vpop.f32.mrb[0].mxu0
    %3045 = vdwg.mxu0
    %s3046 = sld [smem:[#allocation2 + $0x8]]
    %vm3047 = vcmp.gt.f32.partialorder %v3038, 0.0
    %vm3048 = vcmp.gt.f32.partialorder %v3043, 0.0
    %v3049 = vstv %s3046
    %v3050 = vmul.f32 %v3049, %v3038
    %v3051 = vmul.f32 %v3049, %v3043
    %v3052 = vsel %vm3047, %v3038, %v3050
    %v3053 = vsel %vm3048, %v3043, %v3051
    %3054 = vmatprep.subr.mxu0 0.0
    %3055 = vmatpush1.msra.mxu0 %v3052
    %3056 = vmatprep.subr.mxu0 0.0
    %3057 = vmatpush1.msra.mxu0 %v3053
    %3058 = vmatprep.subr.mxu0 0.0
    %3059 = vmatpush1.msra.mxu0 0.0
    %3060 = vmatprep.subr.mxu0 0.0
    %3061 = vmatpush1.msra.mxu0 0.0
    %3062 = vmatprep.subr.mxu0 0.0
    %3063 = vmatpush1.msra.mxu0 0.0
    %3064 = vmatprep.subr.mxu0 0.0
    %3065 = vmatpush1.msra.mxu0 0.0
    %3066 = vmatprep.subr.mxu0 0.0
    %3067 = vmatpush1.msra.mxu0 0.0
    %3068 = vmatprep.subr.mxu0 0.0
    %3069 = vmatpush1.msra.mxu0 0.0
    %3070 = vmatprep.subr.mxu0 0.0
    %3071 = vmatpush1.msra.mxu0 0.0
    %3072 = vmatprep.subr.mxu0 0.0
    %3073 = vmatpush1.msra.mxu0 0.0
    %3074 = vmatprep.subr.mxu0 0.0
    %3075 = vmatpush1.msra.mxu0 0.0
    %3076 = vmatprep.subr.mxu0 0.0
    %3077 = vmatpush1.msra.mxu0 0.0
    %3078 = vmatprep.subr.mxu0 0.0
    %3079 = vmatpush1.msra.mxu0 0.0
    %3080 = vmatprep.subr.mxu0 0.0
    %3081 = vmatpush1.msra.mxu0 0.0
    %3082 = vmatprep.subr.mxu0 0.0
    %3083 = vmatpush1.msra.mxu0 0.0
    %3084 = vmatprep.subr.mxu0 0.0
    %3085 = vmatpush1.msra.mxu0 0.0
    %3086 = vmatprep.subr.mxu0 0.0
    %3087 = vmatpush1.msra.mxu0 0.0
    %3088 = vmatprep.subr.mxu0 0.0
    %3089 = vmatpush1.msra.mxu0 0.0
    %3090 = vmatprep.subr.mxu0 0.0
    %3091 = vmatpush1.msra.mxu0 0.0
    %3092 = vmatprep.subr.mxu0 0.0
    %3093 = vmatpush1.msra.mxu0 0.0
    %3094 = vmatprep.subr.mxu0 0.0
    %3095 = vmatpush1.msra.mxu0 0.0
    %3096 = vmatprep.subr.mxu0 0.0
    %3097 = vmatpush1.msra.mxu0 0.0
    %3098 = vmatprep.subr.mxu0 0.0
    %3099 = vmatpush1.msra.mxu0 0.0
    %3100 = vmatprep.subr.mxu0 0.0
    %3101 = vmatpush1.msra.mxu0 0.0
    %3102 = vmatprep.subr.mxu0 0.0
    %3103 = vmatpush1.msra.mxu0 0.0
    %3104 = vmatprep.subr.mxu0 0.0
    %3105 = vmatpush1.msra.mxu0 0.0
    %3106 = vmatprep.subr.mxu0 0.0
    %3107 = vmatpush1.msra.mxu0 0.0
    %3108 = vmatprep.subr.mxu0 0.0
    %3109 = vmatpush1.msra.mxu0 0.0
    %3110 = vmatprep.subr.mxu0 0.0
    %3111 = vmatpush1.msra.mxu0 0.0
    %3112 = vmatprep.subr.mxu0 0.0
    %3113 = vmatpush1.msra.mxu0 0.0
    %3114 = vmatprep.subr.mxu0 0.0
    %3115 = vmatpush1.msra.mxu0 0.0
    %3116 = vmatprep.subr.mxu0 0.0
    %3117 = vmatpush1.msra.mxu0 0.0
    %3118 = vmatprep.mubr.f32.mxu0 0.0
    %3119 = vmatmul.mubr.f32.gmra.mrb[0].mxu0 %v322
    %v3120 = vpop.f32.mrb[0].mxu0
    %v3121 = vadd.f32 0.0, %v3120
    %v3122 = vpop.f32.mrb[0].mxu0
    %3123 = vdwg.mxu0
    %v3124 = vmul.f32 %v3121, 0.0625
    %v3125 = vlaneseq
    %v3126 = vshrl.u32 %v3125, 7
    %v3127 = vsub.s32 0, %v3126
    %v3128 = vrot.slane %v3124, %v3127
    %v3129 = vsub.f32 %v3052, %v3128
    %v3130 = vsub.f32 %v3053, %v3128
    %v3131 = vmul.f32 %v3129, %v3129
    %v3132 = vmul.f32 %v3130, %v3130
    %3133 = vmatprep.subr.mxu0 0.0
    %3134 = vmatpush1.msra.mxu0 %v3131
    %3135 = vmatprep.subr.mxu0 0.0
    %3136 = vmatpush1.msra.mxu0 %v3132
    %3137 = vmatprep.subr.mxu0 0.0
    %3138 = vmatpush1.msra.mxu0 0.0
    %3139 = vmatprep.subr.mxu0 0.0
    %3140 = vmatpush1.msra.mxu0 0.0
    %3141 = vmatprep.subr.mxu0 0.0
    %3142 = vmatpush1.msra.mxu0 0.0
    %3143 = vmatprep.subr.mxu0 0.0
    %3144 = vmatpush1.msra.mxu0 0.0
    %3145 = vmatprep.subr.mxu0 0.0
    %3146 = vmatpush1.msra.mxu0 0.0
    %3147 = vmatprep.subr.mxu0 0.0
    %3148 = vmatpush1.msra.mxu0 0.0
    %3149 = vmatprep.subr.mxu0 0.0
    %3150 = vmatpush1.msra.mxu0 0.0
    %3151 = vmatprep.subr.mxu0 0.0
    %3152 = vmatpush1.msra.mxu0 0.0
    %3153 = vmatprep.subr.mxu0 0.0
    %3154 = vmatpush1.msra.mxu0 0.0
    %3155 = vmatprep.subr.mxu0 0.0
    %3156 = vmatpush1.msra.mxu0 0.0
    %3157 = vmatprep.subr.mxu0 0.0
    %3158 = vmatpush1.msra.mxu0 0.0
    %3159 = vmatprep.subr.mxu0 0.0
    %3160 = vmatpush1.msra.mxu0 0.0
    %3161 = vmatprep.subr.mxu0 0.0
    %3162 = vmatpush1.msra.mxu0 0.0
    %3163 = vmatprep.subr.mxu0 0.0
    %3164 = vmatpush1.msra.mxu0 0.0
    %3165 = vmatprep.subr.mxu0 0.0
    %3166 = vmatpush1.msra.mxu0 0.0
    %3167 = vmatprep.subr.mxu0 0.0
    %3168 = vmatpush1.msra.mxu0 0.0
    %3169 = vmatprep.subr.mxu0 0.0
    %3170 = vmatpush1.msra.mxu0 0.0
    %3171 = vmatprep.subr.mxu0 0.0
    %3172 = vmatpush1.msra.mxu0 0.0
    %3173 = vmatprep.subr.mxu0 0.0
    %3174 = vmatpush1.msra.mxu0 0.0
    %3175 = vmatprep.subr.mxu0 0.0
    %3176 = vmatpush1.msra.mxu0 0.0
    %3177 = vmatprep.subr.mxu0 0.0
    %3178 = vmatpush1.msra.mxu0 0.0
    %3179 = vmatprep.subr.mxu0 0.0
    %3180 = vmatpush1.msra.mxu0 0.0
    %3181 = vmatprep.subr.mxu0 0.0
    %3182 = vmatpush1.msra.mxu0 0.0
    %3183 = vmatprep.subr.mxu0 0.0
    %3184 = vmatpush1.msra.mxu0 0.0
    %3185 = vmatprep.subr.mxu0 0.0
    %3186 = vmatpush1.msra.mxu0 0.0
    %3187 = vmatprep.subr.mxu0 0.0
    %3188 = vmatpush1.msra.mxu0 0.0
    %3189 = vmatprep.subr.mxu0 0.0
    %3190 = vmatpush1.msra.mxu0 0.0
    %3191 = vmatprep.subr.mxu0 0.0
    %3192 = vmatpush1.msra.mxu0 0.0
    %3193 = vmatprep.subr.mxu0 0.0
    %3194 = vmatpush1.msra.mxu0 0.0
    %3195 = vmatprep.subr.mxu0 0.0
    %3196 = vmatpush1.msra.mxu0 0.0
    %3197 = vmatprep.mubr.f32.mxu0 0.0
    %3198 = vmatmul.mubr.f32.gmra.mrb[0].mxu0 %v322
    %v3199 = vpop.f32.mrb[0].mxu0
    %v3200 = vadd.f32 0.0, %v3199
    %v3201 = vpop.f32.mrb[0].mxu0
    %3202 = vdwg.mxu0
    %v3203 = vmul.f32 %v3200, 0.0625
    %v3204 = vadd.f32 %v3203, 1e-05
    %v3205 = vrsqrt.pop %v3204
    %v3206 = vld [vmem:[#allocation10 + $0x8] sm:$0x1]
    %v3207 = vmul.f32 %v3205, %v3206
    %v3208 = vlaneseq
    %v3209 = vshrl.u32 %v3208, 7
    %v3210 = vsub.s32 0, %v3209
    %v3211 = vrot.slane %v3207, %v3210
    %v3212 = vmul.f32 %v3129, %v3211
    %v3213 = vmul.f32 %v3130, %v3211
    %v3214 = vld [vmem:[#allocation12 + $0x8] sm:$0x1]
    %v3215 = vlaneseq
    %v3216 = vshrl.u32 %v3215, 7
    %v3217 = vsub.s32 0, %v3216
    %v3218 = vrot.slane %v3214, %v3217
    %v3219 = vadd.f32 %v3212, %v3218
    %v3220 = vadd.f32 %v3213, %v3218
    %s3221 = scalar_lea.vmem [#allocation9], 288
    %v3222 = vld [vmem:[%s3221] sm:$0xff]
    %v3223 = vld [vmem:[%s3221 + $0x8] sm:$0xff]
    %v3224 = vld [vmem:[%s3221 + $0x10] sm:$0xff]
    %v3225 = vld [vmem:[%s3221 + $0x18] sm:$0xff]
    %v3227 = vsel %vm136, %v3219, 0
    %v3230 = vsel %vm136, %v3220, 0
    %3232 = vmatprep.subr.mxu0 0.0
    %3233 = vmatpush1.msra.mxu0 %v3222
    %3234 = vmatprep.subr.mxu0 0.0
    %3235 = vmatpush1.msra.mxu0 %v3223
    %3236 = vmatprep.subr.mxu0 0.0
    %3237 = vmatpush1.msra.mxu0 %v3224
    %3238 = vmatprep.subr.mxu0 0.0
    %3239 = vmatpush1.msra.mxu0 %v3225
    %3240 = vmatprep.subr.mxu0 0.0
    %3241 = vmatpush1.msra.mxu0 0.0
    %3242 = vmatprep.subr.mxu0 0.0
    %3243 = vmatpush1.msra.mxu0 0.0
    %3244 = vmatprep.subr.mxu0 0.0
    %3245 = vmatpush1.msra.mxu0 0.0
    %3246 = vmatprep.subr.mxu0 0.0
    %3247 = vmatpush1.msra.mxu0 0.0
    %3248 = vmatprep.subr.mxu0 0.0
    %3249 = vmatpush1.msra.mxu0 0.0
    %3250 = vmatprep.subr.mxu0 0.0
    %3251 = vmatpush1.msra.mxu0 0.0
    %3252 = vmatprep.subr.mxu0 0.0
    %3253 = vmatpush1.msra.mxu0 0.0
    %3254 = vmatprep.subr.mxu0 0.0
    %3255 = vmatpush1.msra.mxu0 0.0
    %3256 = vmatprep.subr.mxu0 0.0
    %3257 = vmatpush1.msra.mxu0 0.0
    %3258 = vmatprep.subr.mxu0 0.0
    %3259 = vmatpush1.msra.mxu0 0.0
    %3260 = vmatprep.subr.mxu0 0.0
    %3261 = vmatpush1.msra.mxu0 0.0
    %3262 = vmatprep.subr.mxu0 0.0
    %3263 = vmatpush1.msra.mxu0 0.0
    %3264 = vmatprep.subr.mxu0 0.0
    %3265 = vmatpush1.msra.mxu0 0.0
    %3266 = vmatprep.subr.mxu0 0.0
    %3267 = vmatpush1.msra.mxu0 0.0
    %3268 = vmatprep.subr.mxu0 0.0
    %3269 = vmatpush1.msra.mxu0 0.0
    %3270 = vmatprep.subr.mxu0 0.0
    %3271 = vmatpush1.msra.mxu0 0.0
    %3272 = vmatprep.subr.mxu0 0.0
    %3273 = vmatpush1.msra.mxu0 0.0
    %3274 = vmatprep.subr.mxu0 0.0
    %3275 = vmatpush1.msra.mxu0 0.0
    %3276 = vmatprep.subr.mxu0 0.0
    %3277 = vmatpush1.msra.mxu0 0.0
    %3278 = vmatprep.subr.mxu0 0.0
    %3279 = vmatpush1.msra.mxu0 0.0
    %3280 = vmatprep.subr.mxu0 0.0
    %3281 = vmatpush1.msra.mxu0 0.0
    %3282 = vmatprep.subr.mxu0 0.0
    %3283 = vmatpush1.msra.mxu0 0.0
    %3284 = vmatprep.subr.mxu0 0.0
    %3285 = vmatpush1.msra.mxu0 0.0
    %3286 = vmatprep.subr.mxu0 0.0
    %3287 = vmatpush1.msra.mxu0 0.0
    %3288 = vmatprep.subr.mxu0 0.0
    %3289 = vmatpush1.msra.mxu0 0.0
    %3290 = vmatprep.subr.mxu0 0.0
    %3291 = vmatpush1.msra.mxu0 0.0
    %3292 = vmatprep.subr.mxu0 0.0
    %3293 = vmatpush1.msra.mxu0 0.0
    %3294 = vmatprep.subr.mxu0 0.0
    %3295 = vmatpush1.msra.mxu0 0.0
    %3296 = vmatprep.mubr.f32.mxu0 0.0
    %3297 = vmatmul.mubr.f32.gmra.mrb[0].mxu0 %v3227
    %v3298 = vpop.f32.mrb[0].mxu0
    %v3299 = vadd.f32 0.0, %v3298
    %v3300 = vpop.f32.mrb[0].mxu0
    %3301 = vmatprep.mubr.f32.mxu0 0.0
    %3302 = vmatmul.mubr.f32.gmra.mrb[0].mxu0 %v3230
    %v3303 = vpop.f32.mrb[0].mxu0
    %v3304 = vadd.f32 0.0, %v3303
    %v3305 = vpop.f32.mrb[0].mxu0
    %3306 = vdwg.mxu0
    %v3307 = vld [vmem:[%s6 + $0x9] sm:$0x1]
    %v3308 = vlaneseq
    %v3309 = vshrl.u32 %v3308, 7
    %v3310 = vsub.s32 0, %v3309
    %v3311 = vrot.slane %v3307, %v3310
    %3312 = vmatprep.subr.mxu0 0.0
    %3313 = vmatpush1.msra.mxu0 %v3299
    %3314 = vmatprep.subr.mxu0 0.0
    %3315 = vmatpush1.msra.mxu0 %v3304
    %3316 = vmatprep.subr.mxu0 0.0
    %3317 = vmatpush1.msra.mxu0 0.0
    %3318 = vmatprep.subr.mxu0 0.0
    %3319 = vmatpush1.msra.mxu0 0.0
    %3320 = vmatprep.subr.mxu0 0.0
    %3321 = vmatpush1.msra.mxu0 0.0
    %3322 = vmatprep.subr.mxu0 0.0
    %3323 = vmatpush1.msra.mxu0 0.0
    %3324 = vmatprep.subr.mxu0 0.0
    %3325 = vmatpush1.msra.mxu0 0.0
    %3326 = vmatprep.subr.mxu0 0.0
    %3327 = vmatpush1.msra.mxu0 0.0
    %3328 = vmatprep.subr.mxu0 0.0
    %3329 = vmatpush1.msra.mxu0 0.0
    %3330 = vmatprep.subr.mxu0 0.0
    %3331 = vmatpush1.msra.mxu0 0.0
    %3332 = vmatprep.subr.mxu0 0.0
    %3333 = vmatpush1.msra.mxu0 0.0
    %3334 = vmatprep.subr.mxu0 0.0
    %3335 = vmatpush1.msra.mxu0 0.0
    %3336 = vmatprep.subr.mxu0 0.0
    %3337 = vmatpush1.msra.mxu0 0.0
    %3338 = vmatprep.subr.mxu0 0.0
    %3339 = vmatpush1.msra.mxu0 0.0
    %3340 = vmatprep.subr.mxu0 0.0
    %3341 = vmatpush1.msra.mxu0 0.0
    %3342 = vmatprep.subr.mxu0 0.0
    %3343 = vmatpush1.msra.mxu0 0.0
    %3344 = vmatprep.subr.mxu0 0.0
    %3345 = vmatpush1.msra.mxu0 0.0
    %3346 = vmatprep.subr.mxu0 0.0
    %3347 = vmatpush1.msra.mxu0 0.0
    %3348 = vmatprep.subr.mxu0 0.0
    %3349 = vmatpush1.msra.mxu0 0.0
    %3350 = vmatprep.subr.mxu0 0.0
    %3351 = vmatpush1.msra.mxu0 0.0
    %3352 = vmatprep.subr.mxu0 0.0
    %3353 = vmatpush1.msra.mxu0 0.0
    %3354 = vmatprep.subr.mxu0 0.0
    %3355 = vmatpush1.msra.mxu0 0.0
    %3356 = vmatprep.subr.mxu0 0.0
    %3357 = vmatpush1.msra.mxu0 0.0
    %3358 = vmatprep.subr.mxu0 0.0
    %3359 = vmatpush1.msra.mxu0 0.0
    %3360 = vmatprep.subr.mxu0 0.0
    %3361 = vmatpush1.msra.mxu0 0.0
    %3362 = vmatprep.subr.mxu0 0.0
    %3363 = vmatpush1.msra.mxu0 0.0
    %3364 = vmatprep.subr.mxu0 0.0
    %3365 = vmatpush1.msra.mxu0 0.0
    %3366 = vmatprep.subr.mxu0 0.0
    %3367 = vmatpush1.msra.mxu0 0.0
    %3368 = vmatprep.subr.mxu0 0.0
    %3369 = vmatpush1.msra.mxu0 0.0
    %3370 = vmatprep.subr.mxu0 0.0
    %3371 = vmatpush1.msra.mxu0 0.0
    %3372 = vmatprep.subr.mxu0 0.0
    %3373 = vmatpush1.msra.mxu0 0.0
    %3374 = vmatprep.subr.mxu0 0.0
    %3375 = vmatpush1.msra.mxu0 0.0
    %3376 = vmatprep.mubr.f32.mxu0 0.0
    %3377 = vmatmul.mubr.f32.gmra.mrb[0].mxu0 %v233
    %v3378 = vpop.f32.mrb[0].mxu0
    %v3379 = vadd.f32 %v3311, %v3378
    %v3380 = vpop.f32.mrb[0].mxu0
    %3381 = vmatprep.mubr.f32.mxu0 0.0
    %3382 = vmatmul.mubr.f32.gmra.mrb[0].mxu0 %v236
    %v3383 = vpop.f32.mrb[0].mxu0
    %v3384 = vadd.f32 %v3311, %v3383
    %v3385 = vpop.f32.mrb[0].mxu0
    %3386 = vdwg.mxu0
    %s3387 = sld [smem:[#allocation2 + $0x9]]
    %vm3388 = vcmp.gt.f32.partialorder %v3379, 0.0
    %vm3389 = vcmp.gt.f32.partialorder %v3384, 0.0
    %v3390 = vstv %s3387
    %v3391 = vmul.f32 %v3390, %v3379
    %v3392 = vmul.f32 %v3390, %v3384
    %v3393 = vsel %vm3388, %v3379, %v3391
    %v3394 = vsel %vm3389, %v3384, %v3392
    %3395 = vst.msk [vmem:[#allocation16] sm:$0xff] %vm136, %v3393
    %3396 = vst.msk [vmem:[#allocation16 + $0x8] sm:$0xff] %vm136, %v3394
    // Predicated region
    $region62: #{tpu_custom_call.1} parent=1 // pred_check
      _
    $region63: #{tpu_custom_call.1} parent=1 // pred_check_branch
      %3398 = sbr.rel (0) target = $region65
    $region64: #{tpu_custom_call.1} parent=1 // pred_region
      %s3400 = ssub.s32 256, 256
      %3401 = vsyncadd [#allocation4], %s3400
      %s3402 = sshll.u32 [#allocation13], 4
      %s3403 = int_to_ptr.vmem [resolvable:$true] %s3402
      %3408 = dma.vmem_to_hbm [thread:$0]  %s3403, 256, %s9, [#allocation4], 128, 128, 8
    $region65: #{tpu_custom_call.1} parent=1 // pred_fallthru
      _
    // Predicated region
    $region66: #{tpu_custom_call.1} parent=1 // pred_check
      _
    $region67: #{tpu_custom_call.1} parent=1 // pred_check_branch
      %3410 = sbr.rel (0) target = $region69
    $region68: #{tpu_custom_call.1} parent=1 // pred_region
      %s3412 = ssub.s32 256, 256
      %3413 = vsyncadd [#allocation15], %s3412
      %s3414 = sshll.u32 [#allocation14], 4
      %s3415 = int_to_ptr.vmem [resolvable:$true] %s3414
      %3420 = dma.vmem_to_hbm [thread:$0]  %s3415, 256, %s10, [#allocation15], 128, 128, 8
    $region69: #{tpu_custom_call.1} parent=1 // pred_fallthru
      _
    // Predicated region
    $region70: #{tpu_custom_call.1} parent=1 // pred_check
      _
    $region71: #{tpu_custom_call.1} parent=1 // pred_check_branch
      %3422 = sbr.rel (0) target = $region73
    $region72: #{tpu_custom_call.1} parent=1 // pred_region
      %s3424 = ssub.s32 256, 256
      %3425 = vsyncadd [#allocation15], %s3424
      %s3426 = sshll.u32 [#allocation16], 4
      %s3427 = int_to_ptr.vmem [resolvable:$true] %s3426
      %3432 = dma.vmem_to_hbm [thread:$0]  %s3427, 256, %s11, [#allocation15], 128, 128, 8
    $region73: #{tpu_custom_call.1} parent=1 // pred_fallthru
      _
    // Predicated region
    $region74: #{tpu_custom_call.1} parent=1 // pred_check
      _
    $region75: #{tpu_custom_call.1} parent=1 // pred_check_branch
      %3434 = sbr.rel (0) target = $region77
    $region76: #{tpu_custom_call.1} parent=1 // pred_region
      %3435 = dma.done [#allocation4], 256
    $region77: #{tpu_custom_call.1} parent=1 // pred_fallthru
      _
    // Predicated region
    $region78: #{tpu_custom_call.1} parent=1 // pred_check
      _
    $region79: #{tpu_custom_call.1} parent=1 // pred_check_branch
      %3437 = sbr.rel (0) target = $region81
    $region80: #{tpu_custom_call.1} parent=1 // pred_region
      %3438 = dma.done [#allocation15], 256
    $region81: #{tpu_custom_call.1} parent=1 // pred_fallthru
      _
    // Predicated region
    $region82: #{tpu_custom_call.1} parent=1 // pred_check
      _
    $region83: #{tpu_custom_call.1} parent=1 // pred_check_branch
      %3440 = sbr.rel (0) target = $region85
    $region84: #{tpu_custom_call.1} parent=1 // pred_region
      %3441 = dma.done [#allocation15], 256
    $region85: #{tpu_custom_call.1} parent=1 // pred_fallthru
      _
    %3442 = vsyncpa [#allocation3], 1
    %3443 = vsyncpa [#allocation8], 1
    %3444 = vsyncpa [#allocation11], 1
    %3445 = vsyncpa [#allocation4], 1
    %3446 = vsyncpa [#allocation15], 1
    %3447 = vsyncpa [#allocation5], 1

</llo_original>
